<compile_context>
chip_gen: v5e
topology: v5e:2x2
jax: 0.10.0
libtpu: 0.0.40
codegen_flags: <defaults>
</compile_context>

<pallas_src>
import functools
import math

import jax
import jax.numpy as jnp
from jax.experimental import pallas as pl
from jax.experimental.pallas import tpu as pltpu


MATMUL_DTYPE = jnp.bfloat16     # MXU operand dtype (f32 accumulation)
WEIGHT_DTYPE = jnp.bfloat16     # HBM weight storage dtype
ACT_DTYPE = jnp.bfloat16        # inter-kernel activation dtype
NEG_INF = -1e9                  # additive mask value (applied in f32)


def _detect_vmem_capacity():
    try:
        info = pltpu.get_tpu_info()
        cap = getattr(info, "vmem_capacity_bytes", None)
        if cap:
            return int(cap)
    except Exception:
        pass
    return 64 * 1024 * 1024     # conservative (v7x-sized) default


_VMEM_CAPACITY = _detect_vmem_capacity()
if _VMEM_CAPACITY >= 100 * 1024 * 1024:
    # v5e / v6e: 128 MiB VMEM -> larger tiles, higher scoped-VMEM limit.
    VMEM_LIMIT = 100 * 1024 * 1024
    TM_CAP, TN_CAP, TK_CAP = 512, 512, 1024
    TH_CAP = 1024
    TQ_CAP, TKV_CAP = 512, 1024
else:
    # v7x (64 MiB VMEM) or unknown: conservative budget.
    VMEM_LIMIT = 48 * 1024 * 1024
    TM_CAP, TN_CAP, TK_CAP = 256, 256, 512
    TH_CAP = 512
    TQ_CAP, TKV_CAP = 256, 512


def _round_up(x, m):
    return ((x + m - 1) // m) * m


def _tile_and_pad(dim, cap, align):
    """Return (tile, padded_dim).

    If dim fits under the cap the tile is the full extent (always layout-legal, no
    padding). Otherwise the tile is `align`-aligned, <= cap, and divides padded_dim;
    we prefer minimal padding (align-rounded dim) if a tile >= cap/2 divides it,
    else pad up to a multiple of the cap."""
    if dim <= cap:
        return dim, dim
    cap = (cap // align) * align
    p = _round_up(dim, align)
    t = cap
    while t >= max(align, cap // 2):
        if p % t == 0:
            return t, p
        t -= align
    return cap, _round_up(dim, cap)


# ----------------------------- tiled linear -----------------------------

def _linear_kernel(x_ref, w_ref, b_ref, o_ref, acc_ref, *, activation):
    @pl.when(pl.program_id(2) == 0)
    def _():
        acc_ref[...] = jnp.zeros_like(acc_ref)

    acc_ref[...] += jnp.dot(
        x_ref[...].astype(MATMUL_DTYPE),
        w_ref[...].astype(MATMUL_DTYPE),
        preferred_element_type=jnp.float32)

    @pl.when(pl.program_id(2) == pl.num_programs(2) - 1)
    def _():
        out = acc_ref[...] + b_ref[...]
        if activation == "relu":
            out = jnp.maximum(out, 0.0)
        o_ref[...] = out.astype(o_ref.dtype)


def linear(x, w, b, activation=None, out_dtype=ACT_DTYPE):
    """x: (M, K) @ w: (K, N) + b: (N,) -> (M, N). bf16 operands, f32 accumulation."""
    M, K = x.shape
    K2, N = w.shape
    assert K == K2
    tm, Mp = _tile_and_pad(M, TM_CAP, 8)
    tn, Np = _tile_and_pad(N, TN_CAP, 128)
    tk, Kp = _tile_and_pad(K, TK_CAP, 128)

    xp = x if (Mp == M and Kp == K) else jnp.pad(x, ((0, Mp - M), (0, Kp - K)))
    wp = w if (Kp == K and Np == N) else jnp.pad(w, ((0, Kp - K), (0, Np - N)))
    bp = b if Np == N else jnp.pad(b, (0, Np - N))

    kern = functools.partial(_linear_kernel, activation=activation)
    out = pl.pallas_call(
        kern,
        grid=(Mp // tm, Np // tn, Kp // tk),
        out_shape=jax.ShapeDtypeStruct((Mp, Np), out_dtype),
        in_specs=[
            pl.BlockSpec((tm, tk), lambda i, j, k: (i, k)),
            pl.BlockSpec((tk, tn), lambda i, j, k: (k, j)),
            pl.BlockSpec((1, tn), lambda i, j, k: (0, j)),
        ],
        out_specs=pl.BlockSpec((tm, tn), lambda i, j, k: (i, j)),
        scratch_shapes=[pltpu.VMEM((tm, tn), jnp.float32)],
        compiler_params=pltpu.CompilerParams(
            dimension_semantics=("parallel", "parallel", "arbitrary"),
            vmem_limit_bytes=VMEM_LIMIT),
    )(xp, wp, bp.reshape(1, Np).astype(jnp.float32))

    if Mp != M or Np != N:
        out = out[:M, :N]
    return out


# ----------------------------- fused residual + layernorm -----------------------------

def _add_ln_kernel(x_ref, r_ref, g_ref, b_ref, o_ref, *, eps):
    x = x_ref[...].astype(jnp.float32) + r_ref[...].astype(jnp.float32)
    mean = jnp.mean(x, axis=-1, keepdims=True)
    var = jnp.mean(jnp.square(x - mean), axis=-1, keepdims=True)
    inv = jax.lax.rsqrt(var + eps)
    o_ref[...] = ((x - mean) * inv * g_ref[...] + b_ref[...]).astype(o_ref.dtype)


def add_layernorm(x, resid, gamma, beta, eps=1e-5):
    """LayerNorm(x + resid), row-tiled; f32 statistics, bf16 output."""
    M, D = x.shape
    tm, Mp = _tile_and_pad(M, 512, 8)
    xp = x if Mp == M else jnp.pad(x, ((0, Mp - M), (0, 0)))
    rp = resid if Mp == M else jnp.pad(resid, ((0, Mp - M), (0, 0)))
    kern = functools.partial(_add_ln_kernel, eps=eps)
    out = pl.pallas_call(
        kern,
        grid=(Mp // tm,),
        out_shape=jax.ShapeDtypeStruct((Mp, D), ACT_DTYPE),
        in_specs=[
            pl.BlockSpec((tm, D), lambda i: (i, 0)),
            pl.BlockSpec((tm, D), lambda i: (i, 0)),
            pl.BlockSpec((1, D), lambda i: (0, 0)),
            pl.BlockSpec((1, D), lambda i: (0, 0)),
        ],
        out_specs=pl.BlockSpec((tm, D), lambda i: (i, 0)),
        compiler_params=pltpu.CompilerParams(
            dimension_semantics=("parallel",),
            vmem_limit_bytes=VMEM_LIMIT),
    )(xp, rp, gamma.reshape(1, D).astype(jnp.float32),
      beta.reshape(1, D).astype(jnp.float32))
    return out[:M] if Mp != M else out


# ----------------------------- fused feed-forward (FF1 + ReLU + FF2) -----------------------------

def _ffn_kernel(x_ref, w1_ref, b1_ref, w2_ref, b2_ref, o_ref, acc_ref):
    @pl.when(pl.program_id(1) == 0)
    def _():
        acc_ref[...] = jnp.zeros_like(acc_ref)

    h = jnp.dot(x_ref[...].astype(MATMUL_DTYPE), w1_ref[...].astype(MATMUL_DTYPE),
                preferred_element_type=jnp.float32) + b1_ref[...]
    h = jnp.maximum(h, 0.0)
    acc_ref[...] += jnp.dot(h.astype(MATMUL_DTYPE), w2_ref[...].astype(MATMUL_DTYPE),
                            preferred_element_type=jnp.float32)

    @pl.when(pl.program_id(1) == pl.num_programs(1) - 1)
    def _():
        o_ref[...] = (acc_ref[...] + b2_ref[...]).astype(o_ref.dtype)


def ffn(x, fp):
    """relu(x @ W1 + b1) @ W2 + b2 with the (M, 4D) hidden kept in VMEM (h-tiled)."""
    M, D = x.shape
    Hdim = fp["w1"].shape[1]
    tm, Mp = _tile_and_pad(M, TM_CAP, 8)
    th, Hp = _tile_and_pad(Hdim, TH_CAP, 128)

    xp = x if Mp == M else jnp.pad(x, ((0, Mp - M), (0, 0)))
    w1p = fp["w1"] if Hp == Hdim else jnp.pad(fp["w1"], ((0, 0), (0, Hp - Hdim)))
    b1p = fp["b1"] if Hp == Hdim else jnp.pad(fp["b1"], (0, Hp - Hdim))
    w2p = fp["w2"] if Hp == Hdim else jnp.pad(fp["w2"], ((0, Hp - Hdim), (0, 0)))

    out = pl.pallas_call(
        _ffn_kernel,
        grid=(Mp // tm, Hp // th),
        out_shape=jax.ShapeDtypeStruct((Mp, D), ACT_DTYPE),
        in_specs=[
            pl.BlockSpec((tm, D), lambda i, h: (i, 0)),
            pl.BlockSpec((D, th), lambda i, h: (0, h)),
            pl.BlockSpec((1, th), lambda i, h: (0, h)),
            pl.BlockSpec((th, D), lambda i, h: (h, 0)),
            pl.BlockSpec((1, D), lambda i, h: (0, 0)),
        ],
        out_specs=pl.BlockSpec((tm, D), lambda i, h: (i, 0)),
        scratch_shapes=[pltpu.VMEM((tm, D), jnp.float32)],
        compiler_params=pltpu.CompilerParams(
            dimension_semantics=("parallel", "arbitrary"),
            vmem_limit_bytes=VMEM_LIMIT),
    )(xp, w1p, b1p.reshape(1, Hp).astype(jnp.float32),
      w2p, fp["b2"].reshape(1, D).astype(jnp.float32))
    return out[:M] if Mp != M else out


# ----------------------------- flash-style attention core -----------------------------

def _flash_attn_kernel(q_ref, k_ref, v_ref, bias_ref, o_ref,
                       m_sc, l_sc, acc_sc, *, scale, causal):
    kv = pl.program_id(3)

    @pl.when(kv == 0)
    def _():
        m_sc[...] = jnp.full_like(m_sc, -jnp.inf)
        l_sc[...] = jnp.zeros_like(l_sc)
        acc_sc[...] = jnp.zeros_like(acc_sc)

    q = q_ref[0, 0]                      # (tq, Dh) bf16
    k = k_ref[0, 0]                      # (tk, Dh) bf16
    v = v_ref[0, 0]                      # (tk, Dh) bf16

    s = jax.lax.dot_general(q, k, (((1,), (1,)), ((), ())),
                            preferred_element_type=jnp.float32) * scale
    s = s + bias_ref[0]                  # (1, tk) additive key-pad bias (f32)

    if causal:
        tq, tk = s.shape
        row = jax.lax.broadcasted_iota(jnp.int32, (tq, tk), 0) + pl.program_id(2) * tq
        col = jax.lax.broadcasted_iota(jnp.int32, (tq, tk), 1) + kv * tk
        s = jnp.where(row >= col, s, NEG_INF)

    m_prev = m_sc[...]
    m_new = jnp.maximum(m_prev, jnp.max(s, axis=-1, keepdims=True))
    alpha = jnp.exp(m_prev - m_new)
    p = jnp.exp(s - m_new)
    l_sc[...] = alpha * l_sc[...] + jnp.sum(p, axis=-1, keepdims=True)
    acc_sc[...] = alpha * acc_sc[...] + jnp.dot(
        p.astype(MATMUL_DTYPE), v, preferred_element_type=jnp.float32)
    m_sc[...] = m_new

    @pl.when(kv == pl.num_programs(3) - 1)
    def _():
        o_ref[0, 0] = (acc_sc[...] *
                       pl.reciprocal(l_sc[...], approx=True)).astype(o_ref.dtype)


def mha_core(q, k, v, key_bias, *, causal):
    """q,k,v: (B, H, S, Dh) bf16; key_bias: (B, 1, Sk) additive f32 -> (B, H, Sq, Dh)."""
    B, H, Sq, Dh = q.shape
    Sk = k.shape[2]
    tq, Sqp = _tile_and_pad(Sq, TQ_CAP, 8)
    tk, Skp = _tile_and_pad(Sk, TKV_CAP, 128)

    if Sqp != Sq:
        q = jnp.pad(q, ((0, 0), (0, 0), (0, Sqp - Sq), (0, 0)))
    if Skp != Sk:
        k = jnp.pad(k, ((0, 0), (0, 0), (0, Skp - Sk), (0, 0)))
        v = jnp.pad(v, ((0, 0), (0, 0), (0, Skp - Sk), (0, 0)))
        key_bias = jnp.pad(key_bias, ((0, 0), (0, 0), (0, Skp - Sk)),
                           constant_values=NEG_INF)

    kern = functools.partial(_flash_attn_kernel,
                             scale=1.0 / math.sqrt(Dh), causal=causal)
    out = pl.pallas_call(
        kern,
        grid=(B, H, Sqp // tq, Skp // tk),
        out_shape=jax.ShapeDtypeStruct((B, H, Sqp, Dh), ACT_DTYPE),
        in_specs=[
            pl.BlockSpec((1, 1, tq, Dh), lambda b, h, qi, ki: (b, h, qi, 0)),
            pl.BlockSpec((1, 1, tk, Dh), lambda b, h, qi, ki: (b, h, ki, 0)),
            pl.BlockSpec((1, 1, tk, Dh), lambda b, h, qi, ki: (b, h, ki, 0)),
            pl.BlockSpec((1, 1, tk), lambda b, h, qi, ki: (b, 0, ki)),
        ],
        out_specs=pl.BlockSpec((1, 1, tq, Dh), lambda b, h, qi, ki: (b, h, qi, 0)),
        scratch_shapes=[pltpu.VMEM((tq, 1), jnp.float32),
                        pltpu.VMEM((tq, 1), jnp.float32),
                        pltpu.VMEM((tq, Dh), jnp.float32)],
        compiler_params=pltpu.CompilerParams(
            dimension_semantics=("parallel", "parallel", "parallel", "arbitrary"),
            vmem_limit_bytes=VMEM_LIMIT),
    )(q, k, v, key_bias)

    if Sqp != Sq:
        out = out[:, :, :Sq, :]
    return out


# ----------------------------- model glue (plain JAX) -----------------------------

def multi_head_attention(p, x_q, x_kv, key_bias, B, H, causal):
    D = p["wo"].shape[0]
    Dh = D // H
    Sq = x_q.shape[0] // B
    Sk = x_kv.shape[0] // B

    if "wqkv" in p:      # self-attention: fused QKV projection (pre-concatenated weight)
        qkv = linear(x_q, p["wqkv"], p["bqkv"])                 # (B*Sq, 3D) bf16
        q, k, v = qkv[:, :D], qkv[:, D:2 * D], qkv[:, 2 * D:]
    else:                # cross-attention: fused KV projection of the encoder output
        q = linear(x_q, p["wq"], p["bq"])
        kv = linear(x_kv, p["wkv"], p["bkv"])                   # (B*Sk, 2D) bf16
        k, v = kv[:, :D], kv[:, D:]

    # TODO(synk): with production head_dim (>=128) fold the head split into
    # mha_core's BlockSpec index_map instead of this XLA reshape/transpose.
    qh = q.reshape(B, Sq, H, Dh).transpose(0, 2, 1, 3)
    kh = k.reshape(B, Sk, H, Dh).transpose(0, 2, 1, 3)
    vh = v.reshape(B, Sk, H, Dh).transpose(0, 2, 1, 3)
    ctx = mha_core(qh, kh, vh, key_bias, causal=causal)          # (B, H, Sq, Dh) bf16
    ctx = ctx.transpose(0, 2, 1, 3).reshape(B * Sq, D)
    return linear(ctx, p["wo"], p["bo"])


def encoder_block(p, x, src_key_bias, B, H):
    attn = multi_head_attention(p["attn"], x, x, src_key_bias, B, H, causal=False)
    x = add_layernorm(x, attn, p["ln1"]["g"], p["ln1"]["b"])
    ff = ffn(x, p["ffn"])
    x = add_layernorm(x, ff, p["ln2"]["g"], p["ln2"]["b"])
    return x


def decoder_block(p, x, enc_out, src_key_bias, trg_key_bias, B, H):
    sa = multi_head_attention(p["self_attn"], x, x, trg_key_bias, B, H, causal=True)
    x = add_layernorm(x, sa, p["ln0"]["g"], p["ln0"]["b"])
    ca = multi_head_attention(p["cross_attn"], x, enc_out, src_key_bias, B, H,
                              causal=False)
    x = add_layernorm(x, ca, p["ln1"]["g"], p["ln1"]["b"])
    ff = ffn(x, p["ffn"])
    x = add_layernorm(x, ff, p["ln2"]["g"], p["ln2"]["b"])
    return x


def make_key_bias(tokens, pad_id):
    """Additive key-pad bias (B, 1, S): 0.0 for real tokens, -1e9 for pad."""
    keep = tokens != pad_id
    return jnp.where(keep, 0.0, NEG_INF).astype(jnp.float32)[:, None, :]


def transformer_forward(params, source, target, *, heads, pad_token_id=0):
    B, Ss = source.shape
    _, St = target.shape
    D = params["src_embed"].shape[1]

    src_key_bias = make_key_bias(source, pad_token_id)   # (B, 1, Ss)
    trg_key_bias = make_key_bias(target, pad_token_id)   # (B, 1, St) (causal added in-kernel)

    # --- encoder ---
    x = jnp.take(params["src_embed"], source, axis=0) * math.sqrt(D)
    x = (x + params["pos_enc"][:Ss][None, :, :]).reshape(B * Ss, D).astype(ACT_DTYPE)
    # TODO(synk): dropout (p=0.2) is identity (eval-mode semantics).
    for bp in params["encoder_blocks"]:
        x = encoder_block(bp, x, src_key_bias, B, heads)
    enc_out = x                                            # (B*Ss, D) bf16

    # --- decoder ---
    y = jnp.take(params["trg_embed"], target, axis=0) * math.sqrt(D)
    y = (y + params["pos_enc"][:St][None, :, :]).reshape(B * St, D).astype(ACT_DTYPE)
    for bp in params["decoder_blocks"]:
        y = decoder_block(bp, y, enc_out, src_key_bias, trg_key_bias, B, heads)

    # --- final vocab projection (vocab tiled / padded inside linear) ---
    out = linear(y, params["fc_out"]["w"], params["fc_out"]["b"], out_dtype=jnp.float32)
    V = params["fc_out"]["w"].shape[1]
    return out.reshape(B, St, V)


# ----------------------------- parameter init & preparation -----------------------------

def init_linear_params(key, fan_in, fan_out):
    kw, kb = jax.random.split(key)
    bound = 1.0 / math.sqrt(fan_in)
    return {
        "w": jax.random.uniform(kw, (fan_in, fan_out), jnp.float32, -bound, bound),
        "b": jax.random.uniform(kb, (fan_out,), jnp.float32, -bound, bound),
    }


def init_ln_params(dim):
    return {"g": jnp.ones((dim,), jnp.float32), "b": jnp.zeros((dim,), jnp.float32)}


def init_mha_params(key, dim):
    ks = jax.random.split(key, 4)
    return {name: init_linear_params(k, dim, dim)
            for name, k in zip(("q", "k", "v", "o"), ks)}


def init_block_params(key, dim, expansion):
    ks = jax.random.split(key, 3)
    return {
        "attn": init_mha_params(ks[0], dim),
        "ln1": init_ln_params(dim),
        "ff1": init_linear_params(ks[1], dim, dim * expansion),
        "ff2": init_linear_params(ks[2], dim * expansion, dim),
        "ln2": init_ln_params(dim),
    }


def init_decoder_block_params(key, dim, expansion):
    ks = jax.random.split(key, 4)
    return {
        "self_attn": init_mha_params(ks[0], dim),
        "ln0": init_ln_params(dim),
        "cross_attn": init_mha_params(ks[1], dim),
        "ln1": init_ln_params(dim),
        "ff1": init_linear_params(ks[2], dim, dim * expansion),
        "ff2": init_linear_params(ks[3], dim * expansion, dim),
        "ln2": init_ln_params(dim),
    }


def sinusoidal_pos_encoding(seq_len, dim):
    pos = jnp.arange(seq_len, dtype=jnp.float32)[:, None]
    i = jnp.arange(dim, dtype=jnp.float32)[None, :]
    angle = pos / jnp.power(10000.0, (2.0 * jnp.floor(i / 2.0)) / dim)
    pe = jnp.where(jnp.mod(jnp.arange(dim), 2) == 0, jnp.sin(angle), jnp.cos(angle))
    return pe  # (seq_len, dim)


def init_transformer_params(key, embed_dim, src_vocab, trg_vocab, seq_len,
                            num_blocks, expansion_factor):
    keys = jax.random.split(key, 3 + 2 * num_blocks)
    return {
        "src_embed": 0.02 * jax.random.normal(keys[0], (src_vocab, embed_dim), jnp.float32),
        "trg_embed": 0.02 * jax.random.normal(keys[1], (trg_vocab, embed_dim), jnp.float32),
        "pos_enc": sinusoidal_pos_encoding(seq_len, embed_dim),
        "encoder_blocks": [
            init_block_params(keys[2 + i], embed_dim, expansion_factor)
            for i in range(num_blocks)
        ],
        "decoder_blocks": [
            init_decoder_block_params(keys[2 + num_blocks + i], embed_dim, expansion_factor)
            for i in range(num_blocks)
        ],
        "fc_out": init_linear_params(keys[2 + 2 * num_blocks], embed_dim, trg_vocab),
    }


def _prep_self_mha(p):
    return {
        "wqkv": jnp.concatenate([p["q"]["w"], p["k"]["w"], p["v"]["w"]],
                                axis=1).astype(WEIGHT_DTYPE),
        "bqkv": jnp.concatenate([p["q"]["b"], p["k"]["b"], p["v"]["b"]],
                                axis=0).astype(jnp.float32),
        "wo": p["o"]["w"].astype(WEIGHT_DTYPE),
        "bo": p["o"]["b"].astype(jnp.float32),
    }


def _prep_cross_mha(p):
    return {
        "wq": p["q"]["w"].astype(WEIGHT_DTYPE),
        "bq": p["q"]["b"].astype(jnp.float32),
        "wkv": jnp.concatenate([p["k"]["w"], p["v"]["w"]], axis=1).astype(WEIGHT_DTYPE),
        "bkv": jnp.concatenate([p["k"]["b"], p["v"]["b"]], axis=0).astype(jnp.float32),
        "wo": p["o"]["w"].astype(WEIGHT_DTYPE),
        "bo": p["o"]["b"].astype(jnp.float32),
    }


def _prep_ffn(p1, p2):
    return {"w1": p1["w"].astype(WEIGHT_DTYPE), "b1": p1["b"].astype(jnp.float32),
            "w2": p2["w"].astype(WEIGHT_DTYPE), "b2": p2["b"].astype(jnp.float32)}


def prepare_params(raw):
    """One-time (outside jit) conversion: bf16 weights + pre-fused QKV / KV matrices."""
    enc = [{"attn": _prep_self_mha(bp["attn"]),
            "ln1": bp["ln1"],
            "ffn": _prep_ffn(bp["ff1"], bp["ff2"]),
            "ln2": bp["ln2"]} for bp in raw["encoder_blocks"]]
    dec = [{"self_attn": _prep_self_mha(bp["self_attn"]),
            "ln0": bp["ln0"],
            "cross_attn": _prep_cross_mha(bp["cross_attn"]),
            "ln1": bp["ln1"],
            "ffn": _prep_ffn(bp["ff1"], bp["ff2"]),
            "ln2": bp["ln2"]} for bp in raw["decoder_blocks"]]
    return {
        "src_embed": raw["src_embed"],
        "trg_embed": raw["trg_embed"],
        "pos_enc": raw["pos_enc"],
        "encoder_blocks": enc,
        "decoder_blocks": dec,
        "fc_out": {"w": raw["fc_out"]["w"].astype(WEIGHT_DTYPE),
                   "b": raw["fc_out"]["b"].astype(jnp.float32)},
    }


# ----------------------------- main -----------------------------

if __name__ == "__main__":
    EMBED_DIM = 32
    HEADS = 8
    SEQ_LEN = 8
    SRC_VOCAB = 16
    TRG_VOCAB = 19
    NUM_BLOCKS = 2
    EXPANSION = 4
    BATCH = 2
    PAD = 0

    root = jax.random.PRNGKey(0)
    k_par, k_src, k_trg = jax.random.split(root, 3)

    raw_params = init_transformer_params(k_par, EMBED_DIM, SRC_VOCAB, TRG_VOCAB,
                                         SEQ_LEN, NUM_BLOCKS, EXPANSION)
    params = prepare_params(raw_params)   # bf16 + fused weights, done once outside jit

    # tokens in [1, vocab); put a pad token at the end of batch 0 of source
    source = jax.random.randint(k_src, (BATCH, SEQ_LEN), 1, SRC_VOCAB, dtype=jnp.int32)
    target = jax.random.randint(k_trg, (BATCH, SEQ_LEN), 1, TRG_VOCAB, dtype=jnp.int32)
    source = source.at[0, -1].set(PAD)

    fwd = jax.jit(functools.partial(transformer_forward, heads=HEADS, pad_token_id=PAD))
    out = fwd(params, source, target)
    out = jax.block_until_ready(out)

    assert out.shape == (BATCH, SEQ_LEN, TRG_VOCAB), out.shape
    assert bool(jnp.all(jnp.isfinite(out)))
    print("KERNEL_OK")
</pallas_src>

<mosaic_0001>
module attributes {stable_mosaic.version = 11 : i64} {
  func.func @_linear_kernel(%arg0: i32, %arg1: i32, %arg2: i32, %arg3: memref<16x32xbf16, #tpu.memory_space<vmem>>, %arg4: memref<32x96xbf16, #tpu.memory_space<vmem>>, %arg5: memref<1x96xf32, #tpu.memory_space<vmem>>, %arg6: memref<16x96xbf16, #tpu.memory_space<vmem>>, %arg7: memref<16x96xf32, #tpu.memory_space<vmem>>) attributes {dimension_semantics = [#tpu.dimension_semantics<parallel>, #tpu.dimension_semantics<parallel>, #tpu.dimension_semantics<arbitrary>], iteration_bounds = array<i64: 1, 1, 1>, scalar_prefetch = 0 : i64, scratch_operands = 1 : i64, tpu.core_type = #tpu.core_type<tc>, window_params = [{transform_indices = @transform_0, window_bounds = array<i64: 16, 32>}, {transform_indices = @transform_1, window_bounds = array<i64: 32, 96>}, {transform_indices = @transform_2, window_bounds = array<i64: 1, 96>}, {transform_indices = @transform_3, window_bounds = array<i64: 16, 96>}]} {
    %c0_i32 = arith.constant 0 : i32
    %0 = arith.cmpi eq, %arg2, %c0_i32 : i32
    %1 = arith.extui %0 : i1 to i32
    %c0_i32_0 = arith.constant 0 : i32
    %2 = arith.cmpi ne, %1, %c0_i32_0 : i32
    scf.if %2 {
      %cst_10 = arith.constant 0.000000e+00 : f32
      %12 = vector.broadcast %cst_10 : f32 to vector<16x96xf32>
      %c0_11 = arith.constant 0 : index
      %c0_12 = arith.constant 0 : index
      %13 = vector.load %arg7[%c0_11, %c0_12] : memref<16x96xf32, #tpu.memory_space<vmem>>, vector<16x96xf32>
      tpu.vector_store %arg7[%c0_11, %c0_12], %12 {strides = array<i32>} : memref<16x96xf32, #tpu.memory_space<vmem>>, vector<16x96xf32>,
    } else {
    }
    %c0 = arith.constant 0 : index
    %c0_1 = arith.constant 0 : index
    %3 = vector.load %arg7[%c0, %c0_1] : memref<16x96xf32, #tpu.memory_space<vmem>>, vector<16x96xf32>
    %c0_2 = arith.constant 0 : index
    %c0_3 = arith.constant 0 : index
    %4 = vector.load %arg3[%c0_2, %c0_3] : memref<16x32xbf16, #tpu.memory_space<vmem>>, vector<16x32xbf16>
    %c0_4 = arith.constant 0 : index
    %c0_5 = arith.constant 0 : index
    %5 = vector.load %arg4[%c0_4, %c0_5] : memref<32x96xbf16, #tpu.memory_space<vmem>>, vector<32x96xbf16>
    %cst = arith.constant dense<0.000000e+00> : vector<16x96xf32>
    %6 = tpu.matmul %4, %5, %cst {dimension_numbers = #tpu.dot_dimension_numbers<[1], [0], [0], [1], [0, 0, 1, 1], [], []>} : vector<16x32xbf16>, vector<32x96xbf16>, vector<16x96xf32> -> vector<16x96xf32>
    %7 = arith.addf %3, %6 : vector<16x96xf32>
    %c0_6 = arith.constant 0 : index
    %c0_7 = arith.constant 0 : index
    %8 = vector.load %arg7[%c0_6, %c0_7] : memref<16x96xf32, #tpu.memory_space<vmem>>, vector<16x96xf32>
    tpu.vector_store %arg7[%c0_6, %c0_7], %7 {strides = array<i32>} : memref<16x96xf32, #tpu.memory_space<vmem>>, vector<16x96xf32>,
    %c0_i32_8 = arith.constant 0 : i32
    %9 = arith.cmpi eq, %arg2, %c0_i32_8 : i32
    %10 = arith.extui %9 : i1 to i32
    %c0_i32_9 = arith.constant 0 : i32
    %11 = arith.cmpi ne, %10, %c0_i32_9 : i32
    scf.if %11 {
      %c0_10 = arith.constant 0 : index
      %c0_11 = arith.constant 0 : index
      %12 = vector.load %arg7[%c0_10, %c0_11] : memref<16x96xf32, #tpu.memory_space<vmem>>, vector<16x96xf32>
      %c0_12 = arith.constant 0 : index
      %c0_13 = arith.constant 0 : index
      %13 = vector.load %arg5[%c0_12, %c0_13] : memref<1x96xf32, #tpu.memory_space<vmem>>, vector<1x96xf32>
      %14 = vector.broadcast %13 : vector<1x96xf32> to vector<16x96xf32>
      %15 = arith.addf %12, %14 : vector<16x96xf32>
      %16 = arith.truncf %15 : vector<16x96xf32> to vector<16x96xbf16>
      %c0_14 = arith.constant 0 : index
      %c0_15 = arith.constant 0 : index
      %17 = vector.load %arg6[%c0_14, %c0_15] : memref<16x96xbf16, #tpu.memory_space<vmem>>, vector<16x96xbf16>
      tpu.vector_store %arg6[%c0_14, %c0_15], %16 {strides = array<i32>} : memref<16x96xbf16, #tpu.memory_space<vmem>>, vector<16x96xbf16>,
    } else {
    }
    return
  }
  func.func @transform_0(%arg0: i32, %arg1: i32, %arg2: i32) -> (i32, i32) {
    %c0_i32 = arith.constant 0 : i32
    return %arg0, %arg2 : i32, i32
  }
  func.func @transform_1(%arg0: i32, %arg1: i32, %arg2: i32) -> (i32, i32) {
    %c0_i32 = arith.constant 0 : i32
    return %arg2, %arg1 : i32, i32
  }
  func.func @transform_2(%arg0: i32, %arg1: i32, %arg2: i32) -> (i32, i32) {
    %c0_i32 = arith.constant 0 : i32
    %c0_i32_0 = arith.constant 0 : i32
    return %c0_i32, %arg1 : i32, i32
  }
  func.func @transform_3(%arg0: i32, %arg1: i32, %arg2: i32) -> (i32, i32) {
    %c0_i32 = arith.constant 0 : i32
    return %arg0, %arg1 : i32, i32
  }
}

module attributes {stable_mosaic.version = 11 : i64} {
  func.func @_flash_attn_kernel(%arg0: i32, %arg1: i32, %arg2: i32, %arg3: i32, %arg4: memref<1x1x8x4xbf16, #tpu.memory_space<vmem>>, %arg5: memref<1x1x8x4xbf16, #tpu.memory_space<vmem>>, %arg6: memref<1x1x8x4xbf16, #tpu.memory_space<vmem>>, %arg7: memref<1x1x8xf32, #tpu.memory_space<vmem>>, %arg8: memref<1x1x8x4xbf16, #tpu.memory_space<vmem>>, %arg9: memref<8x1xf32, #tpu.memory_space<vmem>>, %arg10: memref<8x1xf32, #tpu.memory_space<vmem>>, %arg11: memref<8x4xf32, #tpu.memory_space<vmem>>) attributes {dimension_semantics = [#tpu.dimension_semantics<parallel>, #tpu.dimension_semantics<parallel>, #tpu.dimension_semantics<parallel>, #tpu.dimension_semantics<arbitrary>], iteration_bounds = array<i64: 2, 8, 1, 1>, scalar_prefetch = 0 : i64, scratch_operands = 3 : i64, tpu.core_type = #tpu.core_type<tc>, window_params = [{transform_indices = @transform_0, window_bounds = array<i64: 1, 1, 8, 4>}, {transform_indices = @transform_1, window_bounds = array<i64: 1, 1, 8, 4>}, {transform_indices = @transform_2, window_bounds = array<i64: 1, 1, 8, 4>}, {transform_indices = @transform_3, window_bounds = array<i64: 1, 1, 8>}, {transform_indices = @transform_4, window_bounds = array<i64: 1, 1, 8, 4>}]} {
    %c0_i32 = arith.constant 0 : i32
    %0 = arith.cmpi eq, %arg3, %c0_i32 : i32
    %1 = arith.extui %0 : i1 to i32
    %c0_i32_0 = arith.constant 0 : i32
    %2 = arith.cmpi ne, %1, %c0_i32_0 : i32
    scf.if %2 {
      %cst_35 = arith.constant 0xFF800000 : f32
      %53 = vector.broadcast %cst_35 : f32 to vector<8x1xf32>
      %c0_36 = arith.constant 0 : index
      %c0_37 = arith.constant 0 : index
      %54 = vector.load %arg9[%c0_36, %c0_37] : memref<8x1xf32, #tpu.memory_space<vmem>>, vector<8x1xf32>
      tpu.vector_store %arg9[%c0_36, %c0_37], %53 {strides = array<i32>} : memref<8x1xf32, #tpu.memory_space<vmem>>, vector<8x1xf32>,
      %cst_38 = arith.constant 0.000000e+00 : f32
      %55 = vector.broadcast %cst_38 : f32 to vector<8x1xf32>
      %c0_39 = arith.constant 0 : index
      %c0_40 = arith.constant 0 : index
      %56 = vector.load %arg10[%c0_39, %c0_40] : memref<8x1xf32, #tpu.memory_space<vmem>>, vector<8x1xf32>
      tpu.vector_store %arg10[%c0_39, %c0_40], %55 {strides = array<i32>} : memref<8x1xf32, #tpu.memory_space<vmem>>, vector<8x1xf32>,
      %cst_41 = arith.constant 0.000000e+00 : f32
      %57 = vector.broadcast %cst_41 : f32 to vector<8x4xf32>
      %c0_42 = arith.constant 0 : index
      %c0_43 = arith.constant 0 : index
      %58 = vector.load %arg11[%c0_42, %c0_43] : memref<8x4xf32, #tpu.memory_space<vmem>>, vector<8x4xf32>
      tpu.vector_store %arg11[%c0_42, %c0_43], %57 {strides = array<i32>} : memref<8x4xf32, #tpu.memory_space<vmem>>, vector<8x4xf32>,
    } else {
    }
    %c0 = arith.constant 0 : index
    %c0_1 = arith.constant 0 : index
    %c0_2 = arith.constant 0 : index
    %c0_3 = arith.constant 0 : index
    %3 = vector.load %arg4[%c0, %c0_1, %c0_2, %c0_3] : memref<1x1x8x4xbf16, #tpu.memory_space<vmem>>, vector<1x1x8x4xbf16>
    %4 = vector.shape_cast %3 : vector<1x1x8x4xbf16> to vector<8x4xbf16>
    %c0_4 = arith.constant 0 : index
    %c0_5 = arith.constant 0 : index
    %c0_6 = arith.constant 0 : index
    %c0_7 = arith.constant 0 : index
    %5 = vector.load %arg5[%c0_4, %c0_5, %c0_6, %c0_7] : memref<1x1x8x4xbf16, #tpu.memory_space<vmem>>, vector<1x1x8x4xbf16>
    %6 = vector.shape_cast %5 : vector<1x1x8x4xbf16> to vector<8x4xbf16>
    %c0_8 = arith.constant 0 : index
    %c0_9 = arith.constant 0 : index
    %c0_10 = arith.constant 0 : index
    %c0_11 = arith.constant 0 : index
    %7 = vector.load %arg6[%c0_8, %c0_9, %c0_10, %c0_11] : memref<1x1x8x4xbf16, #tpu.memory_space<vmem>>, vector<1x1x8x4xbf16>
    %8 = vector.shape_cast %7 : vector<1x1x8x4xbf16> to vector<8x4xbf16>
    %cst = arith.constant dense<0.000000e+00> : vector<8x8xf32>
    %9 = tpu.matmul %4, %6, %cst {dimension_numbers = #tpu.dot_dimension_numbers<[1], [1], [0], [0], [0, 0, 1, 0], [], []>} : vector<8x4xbf16>, vector<8x4xbf16>, vector<8x8xf32> -> vector<8x8xf32>
    %cst_12 = arith.constant 5.000000e-01 : f32
    %10 = vector.broadcast %cst_12 : f32 to vector<8x8xf32>
    %11 = arith.mulf %9, %10 : vector<8x8xf32>
    %c0_13 = arith.constant 0 : index
    %c0_14 = arith.constant 0 : index
    %c0_15 = arith.constant 0 : index
    %12 = vector.load %arg7[%c0_13, %c0_14, %c0_15] : memref<1x1x8xf32, #tpu.memory_space<vmem>>, vector<1x1x8xf32>
    %13 = vector.shape_cast %12 : vector<1x1x8xf32> to vector<1x8xf32>
    %14 = vector.broadcast %13 : vector<1x8xf32> to vector<8x8xf32>
    %15 = arith.addf %11, %14 : vector<8x8xf32>
    %16 = tpu.iota {dimensions = array<i32: 0>} : vector<8x8xi32>
    %c8_i32 = arith.constant 8 : i32
    %17 = arith.muli %arg2, %c8_i32 : i32
    %18 = vector.broadcast %17 : i32 to vector<8x8xi32>
    %19 = arith.addi %16, %18 : vector<8x8xi32>
    %20 = tpu.iota {dimensions = array<i32: 1>} : vector<8x8xi32>
    %c8_i32_16 = arith.constant 8 : i32
    %21 = arith.muli %arg3, %c8_i32_16 : i32
    %22 = vector.broadcast %21 : i32 to vector<8x8xi32>
    %23 = arith.addi %20, %22 : vector<8x8xi32>
    %24 = arith.cmpi sge, %19, %23 : vector<8x8xi32>
    %cst_17 = arith.constant -1.000000e+09 : f32
    %25 = vector.broadcast %cst_17 : f32 to vector<8x8xf32>
    %26 = arith.select %24, %15, %25 : vector<8x8xi1>, vector<8x8xf32>
    %c0_18 = arith.constant 0 : index
    %c0_19 = arith.constant 0 : index
    %27 = vector.load %arg9[%c0_18, %c0_19] : memref<8x1xf32, #tpu.memory_space<vmem>>, vector<8x1xf32>
    %cst_20 = arith.constant dense<0xFF800000> : vector<8xf32>
    %28 = vector.multi_reduction <maximumf>, %26, %cst_20 [1] : vector<8x8xf32> to vector<8xf32>
    %29 = vector.shape_cast %28 : vector<8xf32> to vector<8x1xf32>
    %30 = arith.maximumf %27, %29 : vector<8x1xf32>
    %31 = arith.subf %27, %30 : vector<8x1xf32>
    %32 = math.exp %31 : vector<8x1xf32>
    %33 = vector.broadcast %30 : vector<8x1xf32> to vector<8x8xf32>
    %34 = arith.subf %26, %33 : vector<8x8xf32>
    %35 = math.exp %34 : vector<8x8xf32>
    %c0_21 = arith.constant 0 : index
    %c0_22 = arith.constant 0 : index
    %36 = vector.load %arg10[%c0_21, %c0_22] : memref<8x1xf32, #tpu.memory_space<vmem>>, vector<8x1xf32>
    %37 = arith.mulf %32, %36 : vector<8x1xf32>
    %cst_23 = arith.constant dense<0.000000e+00> : vector<8xf32>
    %38 = vector.multi_reduction <add>, %35, %cst_23 [1] : vector<8x8xf32> to vector<8xf32>
    %39 = vector.shape_cast %38 : vector<8xf32> to vector<8x1xf32>
    %40 = arith.addf %37, %39 : vector<8x1xf32>
    %c0_24 = arith.constant 0 : index
    %c0_25 = arith.constant 0 : index
    %41 = vector.load %arg10[%c0_24, %c0_25] : memref<8x1xf32, #tpu.memory_space<vmem>>, vector<8x1xf32>
    tpu.vector_store %arg10[%c0_24, %c0_25], %40 {strides = array<i32>} : memref<8x1xf32, #tpu.memory_space<vmem>>, vector<8x1xf32>,
    %c0_26 = arith.constant 0 : index
    %c0_27 = arith.constant 0 : index
    %42 = vector.load %arg11[%c0_26, %c0_27] : memref<8x4xf32, #tpu.memory_space<vmem>>, vector<8x4xf32>
    %43 = vector.broadcast %32 : vector<8x1xf32> to vector<8x4xf32>
    %44 = arith.mulf %43, %42 : vector<8x4xf32>
    %45 = arith.truncf %35 : vector<8x8xf32> to vector<8x8xbf16>
    %cst_28 = arith.constant dense<0.000000e+00> : vector<8x4xf32>
    %46 = tpu.matmul %45, %8, %cst_28 {dimension_numbers = #tpu.dot_dimension_numbers<[1], [0], [0], [1], [0, 0, 1, 1], [], []>} : vector<8x8xbf16>, vector<8x4xbf16>, vector<8x4xf32> -> vector<8x4xf32>
    %47 = arith.addf %44, %46 : vector<8x4xf32>
    %c0_29 = arith.constant 0 : index
    %c0_30 = arith.constant 0 : index
    %48 = vector.load %arg11[%c0_29, %c0_30] : memref<8x4xf32, #tpu.memory_space<vmem>>, vector<8x4xf32>
    tpu.vector_store %arg11[%c0_29, %c0_30], %47 {strides = array<i32>} : memref<8x4xf32, #tpu.memory_space<vmem>>, vector<8x4xf32>,
    %c0_31 = arith.constant 0 : index
    %c0_32 = arith.constant 0 : index
    %49 = vector.load %arg9[%c0_31, %c0_32] : memref<8x1xf32, #tpu.memory_space<vmem>>, vector<8x1xf32>
    tpu.vector_store %arg9[%c0_31, %c0_32], %30 {strides = array<i32>} : memref<8x1xf32, #tpu.memory_space<vmem>>, vector<8x1xf32>,
    %c0_i32_33 = arith.constant 0 : i32
    %50 = arith.cmpi eq, %arg3, %c0_i32_33 : i32
    %51 = arith.extui %50 : i1 to i32
    %c0_i32_34 = arith.constant 0 : i32
    %52 = arith.cmpi ne, %51, %c0_i32_34 : i32
    scf.if %52 {
      %c0_35 = arith.constant 0 : index
      %c0_36 = arith.constant 0 : index
      %53 = vector.load %arg11[%c0_35, %c0_36] : memref<8x4xf32, #tpu.memory_space<vmem>>, vector<8x4xf32>
      %c0_37 = arith.constant 0 : index
      %c0_38 = arith.constant 0 : index
      %54 = vector.load %arg10[%c0_37, %c0_38] : memref<8x1xf32, #tpu.memory_space<vmem>>, vector<8x1xf32>
      %55 = tpu.reciprocal %54 {approx = true} : vector<8x1xf32> -> vector<8x1xf32>
      %56 = vector.broadcast %55 : vector<8x1xf32> to vector<8x4xf32>
      %57 = arith.mulf %53, %56 : vector<8x4xf32>
      %58 = arith.truncf %57 : vector<8x4xf32> to vector<8x4xbf16>
      %c0_39 = arith.constant 0 : index
      %c0_40 = arith.constant 0 : index
      %c0_41 = arith.constant 0 : index
      %c0_42 = arith.constant 0 : index
      %59 = vector.load %arg8[%c0_39, %c0_40, %c0_41, %c0_42] : memref<1x1x8x4xbf16, #tpu.memory_space<vmem>>, vector<1x1x8x4xbf16>
      %60 = vector.shape_cast %59 : vector<1x1x8x4xbf16> to vector<8x4xbf16>
      %61 = vector.shape_cast %58 : vector<8x4xbf16> to vector<1x1x8x4xbf16>
      tpu.vector_store %arg8[%c0_39, %c0_40, %c0_41, %c0_42], %61 {strides = array<i32>} : memref<1x1x8x4xbf16, #tpu.memory_space<vmem>>, vector<1x1x8x4xbf16>,
    } else {
    }
    return
  }
  func.func @transform_0(%arg0: i32, %arg1: i32, %arg2: i32, %arg3: i32) -> (i32, i32, i32, i32) {
    %c0_i32 = arith.constant 0 : i32
    %c0_i32_0 = arith.constant 0 : i32
    return %arg0, %arg1, %arg2, %c0_i32 : i32, i32, i32, i32
  }
  func.func @transform_1(%arg0: i32, %arg1: i32, %arg2: i32, %arg3: i32) -> (i32, i32, i32, i32) {
    %c0_i32 = arith.constant 0 : i32
    %c0_i32_0 = arith.constant 0 : i32
    return %arg0, %arg1, %arg3, %c0_i32 : i32, i32, i32, i32
  }
  func.func @transform_2(%arg0: i32, %arg1: i32, %arg2: i32, %arg3: i32) -> (i32, i32, i32, i32) {
    %c0_i32 = arith.constant 0 : i32
    %c0_i32_0 = arith.constant 0 : i32
    return %arg0, %arg1, %arg3, %c0_i32 : i32, i32, i32, i32
  }
  func.func @transform_3(%arg0: i32, %arg1: i32, %arg2: i32, %arg3: i32) -> (i32, i32, i32) {
    %c0_i32 = arith.constant 0 : i32
    %c0_i32_0 = arith.constant 0 : i32
    return %arg0, %c0_i32, %arg3 : i32, i32, i32
  }
  func.func @transform_4(%arg0: i32, %arg1: i32, %arg2: i32, %arg3: i32) -> (i32, i32, i32, i32) {
    %c0_i32 = arith.constant 0 : i32
    %c0_i32_0 = arith.constant 0 : i32
    return %arg0, %arg1, %arg2, %c0_i32 : i32, i32, i32, i32
  }
}

module attributes {stable_mosaic.version = 11 : i64} {
  func.func @_linear_kernel(%arg0: i32, %arg1: i32, %arg2: i32, %arg3: memref<16x32xbf16, #tpu.memory_space<vmem>>, %arg4: memref<32x32xbf16, #tpu.memory_space<vmem>>, %arg5: memref<1x32xf32, #tpu.memory_space<vmem>>, %arg6: memref<16x32xbf16, #tpu.memory_space<vmem>>, %arg7: memref<16x32xf32, #tpu.memory_space<vmem>>) attributes {dimension_semantics = [#tpu.dimension_semantics<parallel>, #tpu.dimension_semantics<parallel>, #tpu.dimension_semantics<arbitrary>], iteration_bounds = array<i64: 1, 1, 1>, scalar_prefetch = 0 : i64, scratch_operands = 1 : i64, tpu.core_type = #tpu.core_type<tc>, window_params = [{transform_indices = @transform_0, window_bounds = array<i64: 16, 32>}, {transform_indices = @transform_1, window_bounds = array<i64: 32, 32>}, {transform_indices = @transform_2, window_bounds = array<i64: 1, 32>}, {transform_indices = @transform_3, window_bounds = array<i64: 16, 32>}]} {
    %c0_i32 = arith.constant 0 : i32
    %0 = arith.cmpi eq, %arg2, %c0_i32 : i32
    %1 = arith.extui %0 : i1 to i32
    %c0_i32_0 = arith.constant 0 : i32
    %2 = arith.cmpi ne, %1, %c0_i32_0 : i32
    scf.if %2 {
      %cst_10 = arith.constant 0.000000e+00 : f32
      %12 = vector.broadcast %cst_10 : f32 to vector<16x32xf32>
      %c0_11 = arith.constant 0 : index
      %c0_12 = arith.constant 0 : index
      %13 = vector.load %arg7[%c0_11, %c0_12] : memref<16x32xf32, #tpu.memory_space<vmem>>, vector<16x32xf32>
      tpu.vector_store %arg7[%c0_11, %c0_12], %12 {strides = array<i32>} : memref<16x32xf32, #tpu.memory_space<vmem>>, vector<16x32xf32>,
    } else {
    }
    %c0 = arith.constant 0 : index
    %c0_1 = arith.constant 0 : index
    %3 = vector.load %arg7[%c0, %c0_1] : memref<16x32xf32, #tpu.memory_space<vmem>>, vector<16x32xf32>
    %c0_2 = arith.constant 0 : index
    %c0_3 = arith.constant 0 : index
    %4 = vector.load %arg3[%c0_2, %c0_3] : memref<16x32xbf16, #tpu.memory_space<vmem>>, vector<16x32xbf16>
    %c0_4 = arith.constant 0 : index
    %c0_5 = arith.constant 0 : index
    %5 = vector.load %arg4[%c0_4, %c0_5] : memref<32x32xbf16, #tpu.memory_space<vmem>>, vector<32x32xbf16>
    %cst = arith.constant dense<0.000000e+00> : vector<16x32xf32>
    %6 = tpu.matmul %4, %5, %cst {dimension_numbers = #tpu.dot_dimension_numbers<[1], [0], [0], [1], [0, 0, 1, 1], [], []>} : vector<16x32xbf16>, vector<32x32xbf16>, vector<16x32xf32> -> vector<16x32xf32>
    %7 = arith.addf %3, %6 : vector<16x32xf32>
    %c0_6 = arith.constant 0 : index
    %c0_7 = arith.constant 0 : index
    %8 = vector.load %arg7[%c0_6, %c0_7] : memref<16x32xf32, #tpu.memory_space<vmem>>, vector<16x32xf32>
    tpu.vector_store %arg7[%c0_6, %c0_7], %7 {strides = array<i32>} : memref<16x32xf32, #tpu.memory_space<vmem>>, vector<16x32xf32>,
    %c0_i32_8 = arith.constant 0 : i32
    %9 = arith.cmpi eq, %arg2, %c0_i32_8 : i32
    %10 = arith.extui %9 : i1 to i32
    %c0_i32_9 = arith.constant 0 : i32
    %11 = arith.cmpi ne, %10, %c0_i32_9 : i32
    scf.if %11 {
      %c0_10 = arith.constant 0 : index
      %c0_11 = arith.constant 0 : index
      %12 = vector.load %arg7[%c0_10, %c0_11] : memref<16x32xf32, #tpu.memory_space<vmem>>, vector<16x32xf32>
      %c0_12 = arith.constant 0 : index
      %c0_13 = arith.constant 0 : index
      %13 = vector.load %arg5[%c0_12, %c0_13] : memref<1x32xf32, #tpu.memory_space<vmem>>, vector<1x32xf32>
      %14 = vector.broadcast %13 : vector<1x32xf32> to vector<16x32xf32>
      %15 = arith.addf %12, %14 : vector<16x32xf32>
      %16 = arith.truncf %15 : vector<16x32xf32> to vector<16x32xbf16>
      %c0_14 = arith.constant 0 : index
      %c0_15 = arith.constant 0 : index
      %17 = vector.load %arg6[%c0_14, %c0_15] : memref<16x32xbf16, #tpu.memory_space<vmem>>, vector<16x32xbf16>
      tpu.vector_store %arg6[%c0_14, %c0_15], %16 {strides = array<i32>} : memref<16x32xbf16, #tpu.memory_space<vmem>>, vector<16x32xbf16>,
    } else {
    }
    return
  }
  func.func @transform_0(%arg0: i32, %arg1: i32, %arg2: i32) -> (i32, i32) {
    %c0_i32 = arith.constant 0 : i32
    return %arg0, %arg2 : i32, i32
  }
  func.func @transform_1(%arg0: i32, %arg1: i32, %arg2: i32) -> (i32, i32) {
    %c0_i32 = arith.constant 0 : i32
    return %arg2, %arg1 : i32, i32
  }
  func.func @transform_2(%arg0: i32, %arg1: i32, %arg2: i32) -> (i32, i32) {
    %c0_i32 = arith.constant 0 : i32
    %c0_i32_0 = arith.constant 0 : i32
    return %c0_i32, %arg1 : i32, i32
  }
  func.func @transform_3(%arg0: i32, %arg1: i32, %arg2: i32) -> (i32, i32) {
    %c0_i32 = arith.constant 0 : i32
    return %arg0, %arg1 : i32, i32
  }
}

module attributes {stable_mosaic.version = 11 : i64} {
  func.func @_add_ln_kernel(%arg0: i32, %arg1: memref<16x32xbf16, #tpu.memory_space<vmem>>, %arg2: memref<16x32xbf16, #tpu.memory_space<vmem>>, %arg3: memref<1x32xf32, #tpu.memory_space<vmem>>, %arg4: memref<1x32xf32, #tpu.memory_space<vmem>>, %arg5: memref<16x32xbf16, #tpu.memory_space<vmem>>) attributes {dimension_semantics = [#tpu.dimension_semantics<parallel>], iteration_bounds = array<i64: 1>, scalar_prefetch = 0 : i64, scratch_operands = 0 : i64, tpu.core_type = #tpu.core_type<tc>, window_params = [{transform_indices = @transform_0, window_bounds = array<i64: 16, 32>}, {transform_indices = @transform_1, window_bounds = array<i64: 16, 32>}, {pipeline_mode = #tpu.pipeline_mode<synchronous>, transform_indices = @transform_2, window_bounds = array<i64: 1, 32>}, {pipeline_mode = #tpu.pipeline_mode<synchronous>, transform_indices = @transform_3, window_bounds = array<i64: 1, 32>}, {transform_indices = @transform_4, window_bounds = array<i64: 16, 32>}]} {
    %c0 = arith.constant 0 : index
    %c0_0 = arith.constant 0 : index
    %0 = vector.load %arg1[%c0, %c0_0] : memref<16x32xbf16, #tpu.memory_space<vmem>>, vector<16x32xbf16>
    %1 = arith.extf %0 : vector<16x32xbf16> to vector<16x32xf32>
    %c0_1 = arith.constant 0 : index
    %c0_2 = arith.constant 0 : index
    %2 = vector.load %arg2[%c0_1, %c0_2] : memref<16x32xbf16, #tpu.memory_space<vmem>>, vector<16x32xbf16>
    %3 = arith.extf %2 : vector<16x32xbf16> to vector<16x32xf32>
    %4 = arith.addf %1, %3 : vector<16x32xf32>
    %cst = arith.constant dense<0.000000e+00> : vector<16xf32>
    %5 = vector.multi_reduction <add>, %4, %cst [1] : vector<16x32xf32> to vector<16xf32>
    %6 = vector.shape_cast %5 : vector<16xf32> to vector<16x1xf32>
    %cst_3 = arith.constant 3.200000e+01 : f32
    %7 = vector.broadcast %cst_3 : f32 to vector<16x1xf32>
    %8 = arith.divf %6, %7 : vector<16x1xf32>
    %9 = vector.broadcast %8 : vector<16x1xf32> to vector<16x32xf32>
    %10 = arith.subf %4, %9 : vector<16x32xf32>
    %11 = arith.mulf %10, %10 : vector<16x32xf32>
    %cst_4 = arith.constant dense<0.000000e+00> : vector<16xf32>
    %12 = vector.multi_reduction <add>, %11, %cst_4 [1] : vector<16x32xf32> to vector<16xf32>
    %13 = vector.shape_cast %12 : vector<16xf32> to vector<16x1xf32>
    %cst_5 = arith.constant 3.200000e+01 : f32
    %14 = vector.broadcast %cst_5 : f32 to vector<16x1xf32>
    %15 = arith.divf %13, %14 : vector<16x1xf32>
    %cst_6 = arith.constant 9.99999974E-6 : f32
    %16 = vector.broadcast %cst_6 : f32 to vector<16x1xf32>
    %17 = arith.addf %15, %16 : vector<16x1xf32>
    %18 = math.rsqrt %17 : vector<16x1xf32>
    %19 = vector.broadcast %8 : vector<16x1xf32> to vector<16x32xf32>
    %20 = arith.subf %4, %19 : vector<16x32xf32>
    %21 = vector.broadcast %18 : vector<16x1xf32> to vector<16x32xf32>
    %22 = arith.mulf %20, %21 : vector<16x32xf32>
    %c0_7 = arith.constant 0 : index
    %c0_8 = arith.constant 0 : index
    %23 = vector.load %arg3[%c0_7, %c0_8] : memref<1x32xf32, #tpu.memory_space<vmem>>, vector<1x32xf32>
    %24 = vector.broadcast %23 : vector<1x32xf32> to vector<16x32xf32>
    %25 = arith.mulf %22, %24 : vector<16x32xf32>
    %c0_9 = arith.constant 0 : index
    %c0_10 = arith.constant 0 : index
    %26 = vector.load %arg4[%c0_9, %c0_10] : memref<1x32xf32, #tpu.memory_space<vmem>>, vector<1x32xf32>
    %27 = vector.broadcast %26 : vector<1x32xf32> to vector<16x32xf32>
    %28 = arith.addf %25, %27 : vector<16x32xf32>
    %29 = arith.truncf %28 : vector<16x32xf32> to vector<16x32xbf16>
    %c0_11 = arith.constant 0 : index
    %c0_12 = arith.constant 0 : index
    %30 = vector.load %arg5[%c0_11, %c0_12] : memref<16x32xbf16, #tpu.memory_space<vmem>>, vector<16x32xbf16>
    tpu.vector_store %arg5[%c0_11, %c0_12], %29 {strides = array<i32>} : memref<16x32xbf16, #tpu.memory_space<vmem>>, vector<16x32xbf16>,
    return
  }
  func.func @transform_0(%arg0: i32) -> (i32, i32) {
    %c0_i32 = arith.constant 0 : i32
    %c0_i32_0 = arith.constant 0 : i32
    return %arg0, %c0_i32 : i32, i32
  }
  func.func @transform_1(%arg0: i32) -> (i32, i32) {
    %c0_i32 = arith.constant 0 : i32
    %c0_i32_0 = arith.constant 0 : i32
    return %arg0, %c0_i32 : i32, i32
  }
  func.func @transform_2(%arg0: i32) -> (i32, i32) {
    %c0_i32 = arith.constant 0 : i32
    %c0_i32_0 = arith.constant 0 : i32
    %c0_i32_1 = arith.constant 0 : i32
    return %c0_i32, %c0_i32_0 : i32, i32
  }
  func.func @transform_3(%arg0: i32) -> (i32, i32) {
    %c0_i32 = arith.constant 0 : i32
    %c0_i32_0 = arith.constant 0 : i32
    %c0_i32_1 = arith.constant 0 : i32
    return %c0_i32, %c0_i32_0 : i32, i32
  }
  func.func @transform_4(%arg0: i32) -> (i32, i32) {
    %c0_i32 = arith.constant 0 : i32
    %c0_i32_0 = arith.constant 0 : i32
    return %arg0, %c0_i32 : i32, i32
  }
}

module attributes {stable_mosaic.version = 11 : i64} {
  func.func @_flash_attn_kernel(%arg0: i32, %arg1: i32, %arg2: i32, %arg3: i32, %arg4: memref<1x1x8x4xbf16, #tpu.memory_space<vmem>>, %arg5: memref<1x1x8x4xbf16, #tpu.memory_space<vmem>>, %arg6: memref<1x1x8x4xbf16, #tpu.memory_space<vmem>>, %arg7: memref<1x1x8xf32, #tpu.memory_space<vmem>>, %arg8: memref<1x1x8x4xbf16, #tpu.memory_space<vmem>>, %arg9: memref<8x1xf32, #tpu.memory_space<vmem>>, %arg10: memref<8x1xf32, #tpu.memory_space<vmem>>, %arg11: memref<8x4xf32, #tpu.memory_space<vmem>>) attributes {dimension_semantics = [#tpu.dimension_semantics<parallel>, #tpu.dimension_semantics<parallel>, #tpu.dimension_semantics<parallel>, #tpu.dimension_semantics<arbitrary>], iteration_bounds = array<i64: 2, 8, 1, 1>, scalar_prefetch = 0 : i64, scratch_operands = 3 : i64, tpu.core_type = #tpu.core_type<tc>, window_params = [{transform_indices = @transform_0, window_bounds = array<i64: 1, 1, 8, 4>}, {transform_indices = @transform_1, window_bounds = array<i64: 1, 1, 8, 4>}, {transform_indices = @transform_2, window_bounds = array<i64: 1, 1, 8, 4>}, {transform_indices = @transform_3, window_bounds = array<i64: 1, 1, 8>}, {transform_indices = @transform_4, window_bounds = array<i64: 1, 1, 8, 4>}]} {
    %c0_i32 = arith.constant 0 : i32
    %0 = arith.cmpi eq, %arg3, %c0_i32 : i32
    %1 = arith.extui %0 : i1 to i32
    %c0_i32_0 = arith.constant 0 : i32
    %2 = arith.cmpi ne, %1, %c0_i32_0 : i32
    scf.if %2 {
      %cst_33 = arith.constant 0xFF800000 : f32
      %42 = vector.broadcast %cst_33 : f32 to vector<8x1xf32>
      %c0_34 = arith.constant 0 : index
      %c0_35 = arith.constant 0 : index
      %43 = vector.load %arg9[%c0_34, %c0_35] : memref<8x1xf32, #tpu.memory_space<vmem>>, vector<8x1xf32>
      tpu.vector_store %arg9[%c0_34, %c0_35], %42 {strides = array<i32>} : memref<8x1xf32, #tpu.memory_space<vmem>>, vector<8x1xf32>,
      %cst_36 = arith.constant 0.000000e+00 : f32
      %44 = vector.broadcast %cst_36 : f32 to vector<8x1xf32>
      %c0_37 = arith.constant 0 : index
      %c0_38 = arith.constant 0 : index
      %45 = vector.load %arg10[%c0_37, %c0_38] : memref<8x1xf32, #tpu.memory_space<vmem>>, vector<8x1xf32>
      tpu.vector_store %arg10[%c0_37, %c0_38], %44 {strides = array<i32>} : memref<8x1xf32, #tpu.memory_space<vmem>>, vector<8x1xf32>,
      %cst_39 = arith.constant 0.000000e+00 : f32
      %46 = vector.broadcast %cst_39 : f32 to vector<8x4xf32>
      %c0_40 = arith.constant 0 : index
      %c0_41 = arith.constant 0 : index
      %47 = vector.load %arg11[%c0_40, %c0_41] : memref<8x4xf32, #tpu.memory_space<vmem>>, vector<8x4xf32>
      tpu.vector_store %arg11[%c0_40, %c0_41], %46 {strides = array<i32>} : memref<8x4xf32, #tpu.memory_space<vmem>>, vector<8x4xf32>,
    } else {
    }
    %c0 = arith.constant 0 : index
    %c0_1 = arith.constant 0 : index
    %c0_2 = arith.constant 0 : index
    %c0_3 = arith.constant 0 : index
    %3 = vector.load %arg4[%c0, %c0_1, %c0_2, %c0_3] : memref<1x1x8x4xbf16, #tpu.memory_space<vmem>>, vector<1x1x8x4xbf16>
    %4 = vector.shape_cast %3 : vector<1x1x8x4xbf16> to vector<8x4xbf16>
    %c0_4 = arith.constant 0 : index
    %c0_5 = arith.constant 0 : index
    %c0_6 = arith.constant 0 : index
    %c0_7 = arith.constant 0 : index
    %5 = vector.load %arg5[%c0_4, %c0_5, %c0_6, %c0_7] : memref<1x1x8x4xbf16, #tpu.memory_space<vmem>>, vector<1x1x8x4xbf16>
    %6 = vector.shape_cast %5 : vector<1x1x8x4xbf16> to vector<8x4xbf16>
    %c0_8 = arith.constant 0 : index
    %c0_9 = arith.constant 0 : index
    %c0_10 = arith.constant 0 : index
    %c0_11 = arith.constant 0 : index
    %7 = vector.load %arg6[%c0_8, %c0_9, %c0_10, %c0_11] : memref<1x1x8x4xbf16, #tpu.memory_space<vmem>>, vector<1x1x8x4xbf16>
    %8 = vector.shape_cast %7 : vector<1x1x8x4xbf16> to vector<8x4xbf16>
    %cst = arith.constant dense<0.000000e+00> : vector<8x8xf32>
    %9 = tpu.matmul %4, %6, %cst {dimension_numbers = #tpu.dot_dimension_numbers<[1], [1], [0], [0], [0, 0, 1, 0], [], []>} : vector<8x4xbf16>, vector<8x4xbf16>, vector<8x8xf32> -> vector<8x8xf32>
    %cst_12 = arith.constant 5.000000e-01 : f32
    %10 = vector.broadcast %cst_12 : f32 to vector<8x8xf32>
    %11 = arith.mulf %9, %10 : vector<8x8xf32>
    %c0_13 = arith.constant 0 : index
    %c0_14 = arith.constant 0 : index
    %c0_15 = arith.constant 0 : index
    %12 = vector.load %arg7[%c0_13, %c0_14, %c0_15] : memref<1x1x8xf32, #tpu.memory_space<vmem>>, vector<1x1x8xf32>
    %13 = vector.shape_cast %12 : vector<1x1x8xf32> to vector<1x8xf32>
    %14 = vector.broadcast %13 : vector<1x8xf32> to vector<8x8xf32>
    %15 = arith.addf %11, %14 : vector<8x8xf32>
    %c0_16 = arith.constant 0 : index
    %c0_17 = arith.constant 0 : index
    %16 = vector.load %arg9[%c0_16, %c0_17] : memref<8x1xf32, #tpu.memory_space<vmem>>, vector<8x1xf32>
    %cst_18 = arith.constant dense<0xFF800000> : vector<8xf32>
    %17 = vector.multi_reduction <maximumf>, %15, %cst_18 [1] : vector<8x8xf32> to vector<8xf32>
    %18 = vector.shape_cast %17 : vector<8xf32> to vector<8x1xf32>
    %19 = arith.maximumf %16, %18 : vector<8x1xf32>
    %20 = arith.subf %16, %19 : vector<8x1xf32>
    %21 = math.exp %20 : vector<8x1xf32>
    %22 = vector.broadcast %19 : vector<8x1xf32> to vector<8x8xf32>
    %23 = arith.subf %15, %22 : vector<8x8xf32>
    %24 = math.exp %23 : vector<8x8xf32>
    %c0_19 = arith.constant 0 : index
    %c0_20 = arith.constant 0 : index
    %25 = vector.load %arg10[%c0_19, %c0_20] : memref<8x1xf32, #tpu.memory_space<vmem>>, vector<8x1xf32>
    %26 = arith.mulf %21, %25 : vector<8x1xf32>
    %cst_21 = arith.constant dense<0.000000e+00> : vector<8xf32>
    %27 = vector.multi_reduction <add>, %24, %cst_21 [1] : vector<8x8xf32> to vector<8xf32>
    %28 = vector.shape_cast %27 : vector<8xf32> to vector<8x1xf32>
    %29 = arith.addf %26, %28 : vector<8x1xf32>
    %c0_22 = arith.constant 0 : index
    %c0_23 = arith.constant 0 : index
    %30 = vector.load %arg10[%c0_22, %c0_23] : memref<8x1xf32, #tpu.memory_space<vmem>>, vector<8x1xf32>
    tpu.vector_store %arg10[%c0_22, %c0_23], %29 {strides = array<i32>} : memref<8x1xf32, #tpu.memory_space<vmem>>, vector<8x1xf32>,
    %c0_24 = arith.constant 0 : index
    %c0_25 = arith.constant 0 : index
    %31 = vector.load %arg11[%c0_24, %c0_25] : memref<8x4xf32, #tpu.memory_space<vmem>>, vector<8x4xf32>
    %32 = vector.broadcast %21 : vector<8x1xf32> to vector<8x4xf32>
    %33 = arith.mulf %32, %31 : vector<8x4xf32>
    %34 = arith.truncf %24 : vector<8x8xf32> to vector<8x8xbf16>
    %cst_26 = arith.constant dense<0.000000e+00> : vector<8x4xf32>
    %35 = tpu.matmul %34, %8, %cst_26 {dimension_numbers = #tpu.dot_dimension_numbers<[1], [0], [0], [1], [0, 0, 1, 1], [], []>} : vector<8x8xbf16>, vector<8x4xbf16>, vector<8x4xf32> -> vector<8x4xf32>
    %36 = arith.addf %33, %35 : vector<8x4xf32>
    %c0_27 = arith.constant 0 : index
    %c0_28 = arith.constant 0 : index
    %37 = vector.load %arg11[%c0_27, %c0_28] : memref<8x4xf32, #tpu.memory_space<vmem>>, vector<8x4xf32>
    tpu.vector_store %arg11[%c0_27, %c0_28], %36 {strides = array<i32>} : memref<8x4xf32, #tpu.memory_space<vmem>>, vector<8x4xf32>,
    %c0_29 = arith.constant 0 : index
    %c0_30 = arith.constant 0 : index
    %38 = vector.load %arg9[%c0_29, %c0_30] : memref<8x1xf32, #tpu.memory_space<vmem>>, vector<8x1xf32>
    tpu.vector_store %arg9[%c0_29, %c0_30], %19 {strides = array<i32>} : memref<8x1xf32, #tpu.memory_space<vmem>>, vector<8x1xf32>,
    %c0_i32_31 = arith.constant 0 : i32
    %39 = arith.cmpi eq, %arg3, %c0_i32_31 : i32
    %40 = arith.extui %39 : i1 to i32
    %c0_i32_32 = arith.constant 0 : i32
    %41 = arith.cmpi ne, %40, %c0_i32_32 : i32
    scf.if %41 {
      %c0_33 = arith.constant 0 : index
      %c0_34 = arith.constant 0 : index
      %42 = vector.load %arg11[%c0_33, %c0_34] : memref<8x4xf32, #tpu.memory_space<vmem>>, vector<8x4xf32>
      %c0_35 = arith.constant 0 : index
      %c0_36 = arith.constant 0 : index
      %43 = vector.load %arg10[%c0_35, %c0_36] : memref<8x1xf32, #tpu.memory_space<vmem>>, vector<8x1xf32>
      %44 = tpu.reciprocal %43 {approx = true} : vector<8x1xf32> -> vector<8x1xf32>
      %45 = vector.broadcast %44 : vector<8x1xf32> to vector<8x4xf32>
      %46 = arith.mulf %42, %45 : vector<8x4xf32>
      %47 = arith.truncf %46 : vector<8x4xf32> to vector<8x4xbf16>
      %c0_37 = arith.constant 0 : index
      %c0_38 = arith.constant 0 : index
      %c0_39 = arith.constant 0 : index
      %c0_40 = arith.constant 0 : index
      %48 = vector.load %arg8[%c0_37, %c0_38, %c0_39, %c0_40] : memref<1x1x8x4xbf16, #tpu.memory_space<vmem>>, vector<1x1x8x4xbf16>
      %49 = vector.shape_cast %48 : vector<1x1x8x4xbf16> to vector<8x4xbf16>
      %50 = vector.shape_cast %47 : vector<8x4xbf16> to vector<1x1x8x4xbf16>
      tpu.vector_store %arg8[%c0_37, %c0_38, %c0_39, %c0_40], %50 {strides = array<i32>} : memref<1x1x8x4xbf16, #tpu.memory_space<vmem>>, vector<1x1x8x4xbf16>,
    } else {
    }
    return
  }
  func.func @transform_0(%arg0: i32, %arg1: i32, %arg2: i32, %arg3: i32) -> (i32, i32, i32, i32) {
    %c0_i32 = arith.constant 0 : i32
    %c0_i32_0 = arith.constant 0 : i32
    return %arg0, %arg1, %arg2, %c0_i32 : i32, i32, i32, i32
  }
  func.func @transform_1(%arg0: i32, %arg1: i32, %arg2: i32, %arg3: i32) -> (i32, i32, i32, i32) {
    %c0_i32 = arith.constant 0 : i32
    %c0_i32_0 = arith.constant 0 : i32
    return %arg0, %arg1, %arg3, %c0_i32 : i32, i32, i32, i32
  }
  func.func @transform_2(%arg0: i32, %arg1: i32, %arg2: i32, %arg3: i32) -> (i32, i32, i32, i32) {
    %c0_i32 = arith.constant 0 : i32
    %c0_i32_0 = arith.constant 0 : i32
    return %arg0, %arg1, %arg3, %c0_i32 : i32, i32, i32, i32
  }
  func.func @transform_3(%arg0: i32, %arg1: i32, %arg2: i32, %arg3: i32) -> (i32, i32, i32) {
    %c0_i32 = arith.constant 0 : i32
    %c0_i32_0 = arith.constant 0 : i32
    return %arg0, %c0_i32, %arg3 : i32, i32, i32
  }
  func.func @transform_4(%arg0: i32, %arg1: i32, %arg2: i32, %arg3: i32) -> (i32, i32, i32, i32) {
    %c0_i32 = arith.constant 0 : i32
    %c0_i32_0 = arith.constant 0 : i32
    return %arg0, %arg1, %arg2, %c0_i32 : i32, i32, i32, i32
  }
}

module attributes {stable_mosaic.version = 11 : i64} {
  func.func @_ffn_kernel(%arg0: i32, %arg1: i32, %arg2: memref<16x32xbf16, #tpu.memory_space<vmem>>, %arg3: memref<32x128xbf16, #tpu.memory_space<vmem>>, %arg4: memref<1x128xf32, #tpu.memory_space<vmem>>, %arg5: memref<128x32xbf16, #tpu.memory_space<vmem>>, %arg6: memref<1x32xf32, #tpu.memory_space<vmem>>, %arg7: memref<16x32xbf16, #tpu.memory_space<vmem>>, %arg8: memref<16x32xf32, #tpu.memory_space<vmem>>) attributes {dimension_semantics = [#tpu.dimension_semantics<parallel>, #tpu.dimension_semantics<arbitrary>], iteration_bounds = array<i64: 1, 1>, scalar_prefetch = 0 : i64, scratch_operands = 1 : i64, tpu.core_type = #tpu.core_type<tc>, window_params = [{transform_indices = @transform_0, window_bounds = array<i64: 16, 32>}, {transform_indices = @transform_1, window_bounds = array<i64: 32, 128>}, {transform_indices = @transform_2, window_bounds = array<i64: 1, 128>}, {transform_indices = @transform_3, window_bounds = array<i64: 128, 32>}, {pipeline_mode = #tpu.pipeline_mode<synchronous>, transform_indices = @transform_4, window_bounds = array<i64: 1, 32>}, {transform_indices = @transform_5, window_bounds = array<i64: 16, 32>}]} {
    %c0_i32 = arith.constant 0 : i32
    %0 = arith.cmpi eq, %arg1, %c0_i32 : i32
    %1 = arith.extui %0 : i1 to i32
    %c0_i32_0 = arith.constant 0 : i32
    %2 = arith.cmpi ne, %1, %c0_i32_0 : i32
    scf.if %2 {
      %cst_16 = arith.constant 0.000000e+00 : f32
      %20 = vector.broadcast %cst_16 : f32 to vector<16x32xf32>
      %c0_17 = arith.constant 0 : index
      %c0_18 = arith.constant 0 : index
      %21 = vector.load %arg8[%c0_17, %c0_18] : memref<16x32xf32, #tpu.memory_space<vmem>>, vector<16x32xf32>
      tpu.vector_store %arg8[%c0_17, %c0_18], %20 {strides = array<i32>} : memref<16x32xf32, #tpu.memory_space<vmem>>, vector<16x32xf32>,
    } else {
    }
    %c0 = arith.constant 0 : index
    %c0_1 = arith.constant 0 : index
    %3 = vector.load %arg2[%c0, %c0_1] : memref<16x32xbf16, #tpu.memory_space<vmem>>, vector<16x32xbf16>
    %c0_2 = arith.constant 0 : index
    %c0_3 = arith.constant 0 : index
    %4 = vector.load %arg3[%c0_2, %c0_3] : memref<32x128xbf16, #tpu.memory_space<vmem>>, vector<32x128xbf16>
    %cst = arith.constant dense<0.000000e+00> : vector<16x128xf32>
    %5 = tpu.matmul %3, %4, %cst {dimension_numbers = #tpu.dot_dimension_numbers<[1], [0], [0], [1], [0, 0, 1, 1], [], []>} : vector<16x32xbf16>, vector<32x128xbf16>, vector<16x128xf32> -> vector<16x128xf32>
    %c0_4 = arith.constant 0 : index
    %c0_5 = arith.constant 0 : index
    %6 = vector.load %arg4[%c0_4, %c0_5] : memref<1x128xf32, #tpu.memory_space<vmem>>, vector<1x128xf32>
    %7 = vector.broadcast %6 : vector<1x128xf32> to vector<16x128xf32>
    %8 = arith.addf %5, %7 : vector<16x128xf32>
    %cst_6 = arith.constant 0.000000e+00 : f32
    %9 = vector.broadcast %cst_6 : f32 to vector<16x128xf32>
    %10 = arith.maximumf %8, %9 : vector<16x128xf32>
    %c0_7 = arith.constant 0 : index
    %c0_8 = arith.constant 0 : index
    %11 = vector.load %arg8[%c0_7, %c0_8] : memref<16x32xf32, #tpu.memory_space<vmem>>, vector<16x32xf32>
    %12 = arith.truncf %10 : vector<16x128xf32> to vector<16x128xbf16>
    %c0_9 = arith.constant 0 : index
    %c0_10 = arith.constant 0 : index
    %13 = vector.load %arg5[%c0_9, %c0_10] : memref<128x32xbf16, #tpu.memory_space<vmem>>, vector<128x32xbf16>
    %cst_11 = arith.constant dense<0.000000e+00> : vector<16x32xf32>
    %14 = tpu.matmul %12, %13, %cst_11 {dimension_numbers = #tpu.dot_dimension_numbers<[1], [0], [0], [1], [0, 0, 1, 1], [], []>} : vector<16x128xbf16>, vector<128x32xbf16>, vector<16x32xf32> -> vector<16x32xf32>
    %15 = arith.addf %11, %14 : vector<16x32xf32>
    %c0_12 = arith.constant 0 : index
    %c0_13 = arith.constant 0 : index
    %16 = vector.load %arg8[%c0_12, %c0_13] : memref<16x32xf32, #tpu.memory_space<vmem>>, vector<16x32xf32>
    tpu.vector_store %arg8[%c0_12, %c0_13], %15 {strides = array<i32>} : memref<16x32xf32, #tpu.memory_space<vmem>>, vector<16x32xf32>,
    %c0_i32_14 = arith.constant 0 : i32
    %17 = arith.cmpi eq, %arg1, %c0_i32_14 : i32
    %18 = arith.extui %17 : i1 to i32
    %c0_i32_15 = arith.constant 0 : i32
    %19 = arith.cmpi ne, %18, %c0_i32_15 : i32
    scf.if %19 {
      %c0_16 = arith.constant 0 : index
      %c0_17 = arith.constant 0 : index
      %20 = vector.load %arg8[%c0_16, %c0_17] : memref<16x32xf32, #tpu.memory_space<vmem>>, vector<16x32xf32>
      %c0_18 = arith.constant 0 : index
      %c0_19 = arith.constant 0 : index
      %21 = vector.load %arg6[%c0_18, %c0_19] : memref<1x32xf32, #tpu.memory_space<vmem>>, vector<1x32xf32>
      %22 = vector.broadcast %21 : vector<1x32xf32> to vector<16x32xf32>
      %23 = arith.addf %20, %22 : vector<16x32xf32>
      %24 = arith.truncf %23 : vector<16x32xf32> to vector<16x32xbf16>
      %c0_20 = arith.constant 0 : index
      %c0_21 = arith.constant 0 : index
      %25 = vector.load %arg7[%c0_20, %c0_21] : memref<16x32xbf16, #tpu.memory_space<vmem>>, vector<16x32xbf16>
      tpu.vector_store %arg7[%c0_20, %c0_21], %24 {strides = array<i32>} : memref<16x32xbf16, #tpu.memory_space<vmem>>, vector<16x32xbf16>,
    } else {
    }
    return
  }
  func.func @transform_0(%arg0: i32, %arg1: i32) -> (i32, i32) {
    %c0_i32 = arith.constant 0 : i32
    %c0_i32_0 = arith.constant 0 : i32
    return %arg0, %c0_i32 : i32, i32
  }
  func.func @transform_1(%arg0: i32, %arg1: i32) -> (i32, i32) {
    %c0_i32 = arith.constant 0 : i32
    %c0_i32_0 = arith.constant 0 : i32
    return %c0_i32, %arg1 : i32, i32
  }
  func.func @transform_2(%arg0: i32, %arg1: i32) -> (i32, i32) {
    %c0_i32 = arith.constant 0 : i32
    %c0_i32_0 = arith.constant 0 : i32
    return %c0_i32, %arg1 : i32, i32
  }
  func.func @transform_3(%arg0: i32, %arg1: i32) -> (i32, i32) {
    %c0_i32 = arith.constant 0 : i32
    %c0_i32_0 = arith.constant 0 : i32
    return %arg1, %c0_i32 : i32, i32
  }
  func.func @transform_4(%arg0: i32, %arg1: i32) -> (i32, i32) {
    %c0_i32 = arith.constant 0 : i32
    %c0_i32_0 = arith.constant 0 : i32
    %c0_i32_1 = arith.constant 0 : i32
    return %c0_i32, %c0_i32_0 : i32, i32
  }
  func.func @transform_5(%arg0: i32, %arg1: i32) -> (i32, i32) {
    %c0_i32 = arith.constant 0 : i32
    %c0_i32_0 = arith.constant 0 : i32
    return %arg0, %c0_i32 : i32, i32
  }
}

module attributes {stable_mosaic.version = 11 : i64} {
  func.func @_linear_kernel(%arg0: i32, %arg1: i32, %arg2: i32, %arg3: memref<16x32xbf16, #tpu.memory_space<vmem>>, %arg4: memref<32x19xbf16, #tpu.memory_space<vmem>>, %arg5: memref<1x19xf32, #tpu.memory_space<vmem>>, %arg6: memref<16x19xf32, #tpu.memory_space<vmem>>, %arg7: memref<16x19xf32, #tpu.memory_space<vmem>>) attributes {dimension_semantics = [#tpu.dimension_semantics<parallel>, #tpu.dimension_semantics<parallel>, #tpu.dimension_semantics<arbitrary>], iteration_bounds = array<i64: 1, 1, 1>, scalar_prefetch = 0 : i64, scratch_operands = 1 : i64, tpu.core_type = #tpu.core_type<tc>, window_params = [{transform_indices = @transform_0, window_bounds = array<i64: 16, 32>}, {transform_indices = @transform_1, window_bounds = array<i64: 32, 19>}, {transform_indices = @transform_2, window_bounds = array<i64: 1, 19>}, {transform_indices = @transform_3, window_bounds = array<i64: 16, 19>}]} {
    %c0_i32 = arith.constant 0 : i32
    %0 = arith.cmpi eq, %arg2, %c0_i32 : i32
    %1 = arith.extui %0 : i1 to i32
    %c0_i32_0 = arith.constant 0 : i32
    %2 = arith.cmpi ne, %1, %c0_i32_0 : i32
    scf.if %2 {
      %cst_10 = arith.constant 0.000000e+00 : f32
      %12 = vector.broadcast %cst_10 : f32 to vector<16x19xf32>
      %c0_11 = arith.constant 0 : index
      %c0_12 = arith.constant 0 : index
      %13 = vector.load %arg7[%c0_11, %c0_12] : memref<16x19xf32, #tpu.memory_space<vmem>>, vector<16x19xf32>
      tpu.vector_store %arg7[%c0_11, %c0_12], %12 {strides = array<i32>} : memref<16x19xf32, #tpu.memory_space<vmem>>, vector<16x19xf32>,
    } else {
    }
    %c0 = arith.constant 0 : index
    %c0_1 = arith.constant 0 : index
    %3 = vector.load %arg7[%c0, %c0_1] : memref<16x19xf32, #tpu.memory_space<vmem>>, vector<16x19xf32>
    %c0_2 = arith.constant 0 : index
    %c0_3 = arith.constant 0 : index
    %4 = vector.load %arg3[%c0_2, %c0_3] : memref<16x32xbf16, #tpu.memory_space<vmem>>, vector<16x32xbf16>
    %c0_4 = arith.constant 0 : index
    %c0_5 = arith.constant 0 : index
    %5 = vector.load %arg4[%c0_4, %c0_5] : memref<32x19xbf16, #tpu.memory_space<vmem>>, vector<32x19xbf16>
    %cst = arith.constant dense<0.000000e+00> : vector<16x19xf32>
    %6 = tpu.matmul %4, %5, %cst {dimension_numbers = #tpu.dot_dimension_numbers<[1], [0], [0], [1], [0, 0, 1, 1], [], []>} : vector<16x32xbf16>, vector<32x19xbf16>, vector<16x19xf32> -> vector<16x19xf32>
    %7 = arith.addf %3, %6 : vector<16x19xf32>
    %c0_6 = arith.constant 0 : index
    %c0_7 = arith.constant 0 : index
    %8 = vector.load %arg7[%c0_6, %c0_7] : memref<16x19xf32, #tpu.memory_space<vmem>>, vector<16x19xf32>
    tpu.vector_store %arg7[%c0_6, %c0_7], %7 {strides = array<i32>} : memref<16x19xf32, #tpu.memory_space<vmem>>, vector<16x19xf32>,
    %c0_i32_8 = arith.constant 0 : i32
    %9 = arith.cmpi eq, %arg2, %c0_i32_8 : i32
    %10 = arith.extui %9 : i1 to i32
    %c0_i32_9 = arith.constant 0 : i32
    %11 = arith.cmpi ne, %10, %c0_i32_9 : i32
    scf.if %11 {
      %c0_10 = arith.constant 0 : index
      %c0_11 = arith.constant 0 : index
      %12 = vector.load %arg7[%c0_10, %c0_11] : memref<16x19xf32, #tpu.memory_space<vmem>>, vector<16x19xf32>
      %c0_12 = arith.constant 0 : index
      %c0_13 = arith.constant 0 : index
      %13 = vector.load %arg5[%c0_12, %c0_13] : memref<1x19xf32, #tpu.memory_space<vmem>>, vector<1x19xf32>
      %14 = vector.broadcast %13 : vector<1x19xf32> to vector<16x19xf32>
      %15 = arith.addf %12, %14 : vector<16x19xf32>
      %c0_14 = arith.constant 0 : index
      %c0_15 = arith.constant 0 : index
      %16 = vector.load %arg6[%c0_14, %c0_15] : memref<16x19xf32, #tpu.memory_space<vmem>>, vector<16x19xf32>
      tpu.vector_store %arg6[%c0_14, %c0_15], %15 {strides = array<i32>} : memref<16x19xf32, #tpu.memory_space<vmem>>, vector<16x19xf32>,
    } else {
    }
    return
  }
  func.func @transform_0(%arg0: i32, %arg1: i32, %arg2: i32) -> (i32, i32) {
    %c0_i32 = arith.constant 0 : i32
    return %arg0, %arg2 : i32, i32
  }
  func.func @transform_1(%arg0: i32, %arg1: i32, %arg2: i32) -> (i32, i32) {
    %c0_i32 = arith.constant 0 : i32
    return %arg2, %arg1 : i32, i32
  }
  func.func @transform_2(%arg0: i32, %arg1: i32, %arg2: i32) -> (i32, i32) {
    %c0_i32 = arith.constant 0 : i32
    %c0_i32_0 = arith.constant 0 : i32
    return %c0_i32, %arg1 : i32, i32
  }
  func.func @transform_3(%arg0: i32, %arg1: i32, %arg2: i32) -> (i32, i32) {
    %c0_i32 = arith.constant 0 : i32
    return %arg0, %arg1 : i32, i32
  }
}

module attributes {stable_mosaic.version = 11 : i64} {
  func.func @_linear_kernel(%arg0: i32, %arg1: i32, %arg2: i32, %arg3: memref<16x32xbf16, #tpu.memory_space<vmem>>, %arg4: memref<32x64xbf16, #tpu.memory_space<vmem>>, %arg5: memref<1x64xf32, #tpu.memory_space<vmem>>, %arg6: memref<16x64xbf16, #tpu.memory_space<vmem>>, %arg7: memref<16x64xf32, #tpu.memory_space<vmem>>) attributes {dimension_semantics = [#tpu.dimension_semantics<parallel>, #tpu.dimension_semantics<parallel>, #tpu.dimension_semantics<arbitrary>], iteration_bounds = array<i64: 1, 1, 1>, scalar_prefetch = 0 : i64, scratch_operands = 1 : i64, tpu.core_type = #tpu.core_type<tc>, window_params = [{transform_indices = @transform_0, window_bounds = array<i64: 16, 32>}, {transform_indices = @transform_1, window_bounds = array<i64: 32, 64>}, {transform_indices = @transform_2, window_bounds = array<i64: 1, 64>}, {transform_indices = @transform_3, window_bounds = array<i64: 16, 64>}]} {
    %c0_i32 = arith.constant 0 : i32
    %0 = arith.cmpi eq, %arg2, %c0_i32 : i32
    %1 = arith.extui %0 : i1 to i32
    %c0_i32_0 = arith.constant 0 : i32
    %2 = arith.cmpi ne, %1, %c0_i32_0 : i32
    scf.if %2 {
      %cst_10 = arith.constant 0.000000e+00 : f32
      %12 = vector.broadcast %cst_10 : f32 to vector<16x64xf32>
      %c0_11 = arith.constant 0 : index
      %c0_12 = arith.constant 0 : index
      %13 = vector.load %arg7[%c0_11, %c0_12] : memref<16x64xf32, #tpu.memory_space<vmem>>, vector<16x64xf32>
      tpu.vector_store %arg7[%c0_11, %c0_12], %12 {strides = array<i32>} : memref<16x64xf32, #tpu.memory_space<vmem>>, vector<16x64xf32>,
    } else {
    }
    %c0 = arith.constant 0 : index
    %c0_1 = arith.constant 0 : index
    %3 = vector.load %arg7[%c0, %c0_1] : memref<16x64xf32, #tpu.memory_space<vmem>>, vector<16x64xf32>
    %c0_2 = arith.constant 0 : index
    %c0_3 = arith.constant 0 : index
    %4 = vector.load %arg3[%c0_2, %c0_3] : memref<16x32xbf16, #tpu.memory_space<vmem>>, vector<16x32xbf16>
    %c0_4 = arith.constant 0 : index
    %c0_5 = arith.constant 0 : index
    %5 = vector.load %arg4[%c0_4, %c0_5] : memref<32x64xbf16, #tpu.memory_space<vmem>>, vector<32x64xbf16>
    %cst = arith.constant dense<0.000000e+00> : vector<16x64xf32>
    %6 = tpu.matmul %4, %5, %cst {dimension_numbers = #tpu.dot_dimension_numbers<[1], [0], [0], [1], [0, 0, 1, 1], [], []>} : vector<16x32xbf16>, vector<32x64xbf16>, vector<16x64xf32> -> vector<16x64xf32>
    %7 = arith.addf %3, %6 : vector<16x64xf32>
    %c0_6 = arith.constant 0 : index
    %c0_7 = arith.constant 0 : index
    %8 = vector.load %arg7[%c0_6, %c0_7] : memref<16x64xf32, #tpu.memory_space<vmem>>, vector<16x64xf32>
    tpu.vector_store %arg7[%c0_6, %c0_7], %7 {strides = array<i32>} : memref<16x64xf32, #tpu.memory_space<vmem>>, vector<16x64xf32>,
    %c0_i32_8 = arith.constant 0 : i32
    %9 = arith.cmpi eq, %arg2, %c0_i32_8 : i32
    %10 = arith.extui %9 : i1 to i32
    %c0_i32_9 = arith.constant 0 : i32
    %11 = arith.cmpi ne, %10, %c0_i32_9 : i32
    scf.if %11 {
      %c0_10 = arith.constant 0 : index
      %c0_11 = arith.constant 0 : index
      %12 = vector.load %arg7[%c0_10, %c0_11] : memref<16x64xf32, #tpu.memory_space<vmem>>, vector<16x64xf32>
      %c0_12 = arith.constant 0 : index
      %c0_13 = arith.constant 0 : index
      %13 = vector.load %arg5[%c0_12, %c0_13] : memref<1x64xf32, #tpu.memory_space<vmem>>, vector<1x64xf32>
      %14 = vector.broadcast %13 : vector<1x64xf32> to vector<16x64xf32>
      %15 = arith.addf %12, %14 : vector<16x64xf32>
      %16 = arith.truncf %15 : vector<16x64xf32> to vector<16x64xbf16>
      %c0_14 = arith.constant 0 : index
      %c0_15 = arith.constant 0 : index
      %17 = vector.load %arg6[%c0_14, %c0_15] : memref<16x64xbf16, #tpu.memory_space<vmem>>, vector<16x64xbf16>
      tpu.vector_store %arg6[%c0_14, %c0_15], %16 {strides = array<i32>} : memref<16x64xbf16, #tpu.memory_space<vmem>>, vector<16x64xbf16>,
    } else {
    }
    return
  }
  func.func @transform_0(%arg0: i32, %arg1: i32, %arg2: i32) -> (i32, i32) {
    %c0_i32 = arith.constant 0 : i32
    return %arg0, %arg2 : i32, i32
  }
  func.func @transform_1(%arg0: i32, %arg1: i32, %arg2: i32) -> (i32, i32) {
    %c0_i32 = arith.constant 0 : i32
    return %arg2, %arg1 : i32, i32
  }
  func.func @transform_2(%arg0: i32, %arg1: i32, %arg2: i32) -> (i32, i32) {
    %c0_i32 = arith.constant 0 : i32
    %c0_i32_0 = arith.constant 0 : i32
    return %c0_i32, %arg1 : i32, i32
  }
  func.func @transform_3(%arg0: i32, %arg1: i32, %arg2: i32) -> (i32, i32) {
    %c0_i32 = arith.constant 0 : i32
    return %arg0, %arg1 : i32, i32
  }
}

</mosaic_0001>

<llo_original>
// kernel: transformer_forward.49
$region0: #{transformer_forward.49}
  #allocation0 [shape = 'u32[]', space=smem, size = 0x4, offset = 0x4, fixed_abs, tag = 'smem constant byte address 0x4 - core index']
  #allocation1 [shape = 'u32[72,128]{1,0:T(1,128)}', space=vmem, size = 0x9000, scoped, tag = 'internal scratch']
  #allocation2 [shape = 'f32[16,32]{1,0:T(8,128)}', space=vmem, size = 0x2000, scoped, tag = 'scratch operand']
  %s0 = inlined_call_operand.vmem [shape: bf16[16,32], index: 0, kind: input, shape index: {}]
  %s1 = inlined_call_operand.vmem [shape: bf16[32,32], index: 1, kind: input, shape index: {}]
  %s2 = inlined_call_operand.vmem [shape: f32[1,32], index: 2, kind: input, shape index: {}]
  %s3 = inlined_call_operand.vmem [shape: bf16[16,32], index: 3, kind: output, shape index: {}]
  %s4 = sld [smem:[#allocation0]]
  $region30: #{transformer_forward.49} parent=0
    _
  %s6 = ssub.s32 1, %s4
  %s7 = scalar_select 0, %s6, %s4
  // Predicated region
  $region2: #{transformer_forward.49} parent=0 // pred_check
    _
  $region3: #{transformer_forward.49} parent=0 // pred_check_branch
    %9 = sbr.rel (0) target = $region5
  $region4: #{transformer_forward.49} parent=0 // pred_region
    _
  $region5: #{transformer_forward.49} parent=0 // pred_fallthru
    _
  // Predicated region
  $region6: #{transformer_forward.49} parent=0 // pred_check
    _
  $region7: #{transformer_forward.49} parent=0 // pred_check_branch
    %11 = sbr.rel (0) target = $region9
  $region8: #{transformer_forward.49} parent=0 // pred_region
    _
  $region9: #{transformer_forward.49} parent=0 // pred_fallthru
    _
  // Predicated region
  $region10: #{transformer_forward.49} parent=0 // pred_check
    _
  $region11: #{transformer_forward.49} parent=0 // pred_check_branch
    %13 = sbr.rel (0) target = $region13
  $region12: #{transformer_forward.49} parent=0 // pred_region
    _
  $region13: #{transformer_forward.49} parent=0 // pred_fallthru
    _
  %p15 = scmp.eq.s32.totalorder 0, 0
  // Predicated region
  $region14: #{transformer_forward.49} parent=0 // pred_check
    %p16 = pneg %p15
  $region15: #{transformer_forward.49} parent=0 // pred_check_branch
    %18 = sbr.rel (%p16) target = $region17
  $region16: #{transformer_forward.49} parent=0 // pred_region
    %vm19 = vcmask 261120
    %20 = vst.msk [vmem:[#allocation2] sm:$0xff] %vm19, 0.0
    %21 = vst.msk [vmem:[#allocation2 + $0x8] sm:$0xff] %vm19, 0.0
  $region17: #{transformer_forward.49} parent=0 // pred_fallthru
    _
  %v22 = vld [vmem:[#allocation2] sm:$0xff]
  %v23 = vld [vmem:[#allocation2 + $0x8] sm:$0xff]
  %v24 = vld [vmem:[%s0] sm:$0xf]
  %v25 = vld [vmem:[%s0 + $0x4] sm:$0xf]
  %v26 = vld [vmem:[%s1] sm:$0xf]
  %v27 = vld [vmem:[%s1 + $0x4] sm:$0xf]
  %v28 = vld [vmem:[%s1 + $0x8] sm:$0xf]
  %v29 = vld [vmem:[%s1 + $0xc] sm:$0xf]
  %v32 = vunpack.c.l.b16 %v24
  %v33 = vunpack.c.l.b16 %v25
  %v34 = vpack.c.b16 %v33, %v32
  %v39 = vunpack.c.l.b16 %v26
  %v40 = vunpack.c.l.b16 %v27
  %v41 = vunpack.c.l.b16 %v28
  %v42 = vunpack.c.l.b16 %v29
  %v43 = vpack.c.b16 %v40, %v39
  %v44 = vpack.c.b16 %v42, %v41
  %vm47 = vcmask 261120
  %v49 = vsel %vm47, %v34, 0
  %51 = vmatpush.bf16.msra.mxu0 0
  %52 = vmatpush.bf16.msra.mxu0 0
  %53 = vmatpush.bf16.msra.mxu0 0
  %54 = vmatpush.bf16.msra.mxu0 0
  %55 = vmatpush.bf16.msra.mxu0 0
  %56 = vmatpush.bf16.msra.mxu0 0
  %57 = vmatpush.bf16.msra.mxu0 %v44
  %58 = vmatpush.bf16.msra.mxu0 %v43
  %59 = vmatmul.bf16.gmra.mxu0 %v49
  %v60 = vpop.f32.mrf.mxu0
  %v61 = vadd.f32 0.0, %v60
  %v62 = vpop.f32.mrf.mxu0
  %v63 = vadd.f32 0.0, %v62
  %64 = vdwg.mxu0
  %v65 = vadd.f32 %v22, %v61
  %v66 = vadd.f32 %v23, %v63
  %67 = vst.msk [vmem:[#allocation2] sm:$0xff] %vm47, %v65
  %68 = vst.msk [vmem:[#allocation2 + $0x8] sm:$0xff] %vm47, %v66
  // Predicated region
  $region18: #{transformer_forward.49} parent=0 // pred_check
    %p69 = pneg %p15
  $region19: #{transformer_forward.49} parent=0 // pred_check_branch
    %71 = sbr.rel (%p69) target = $region21
  $region20: #{transformer_forward.49} parent=0 // pred_region
    %v72 = vld [vmem:[#allocation2] sm:$0xff]
    %v73 = vld [vmem:[#allocation2 + $0x8] sm:$0xff]
    %v74 = vld [vmem:[%s2] sm:$0x1]
    %v76 = vperm.slane %v74, 0
    %v78 = vadd.f32 %v72, %v76
    %v79 = vadd.f32 %v73, %v76
    %v80 = vpack.c.bf16 %v78, %v78
    %v81 = vpack.c.bf16 %v79, %v79
    %vm82 = vcmask 257024
    %83 = vst.msk [vmem:[%s3] sm:$0xf] %vm82, %v80
    %84 = vst.msk [vmem:[%s3 + $0x4] sm:$0xf] %vm82, %v81
  $region21: #{transformer_forward.49} parent=0 // pred_fallthru
    _
  // Predicated region
  $region22: #{transformer_forward.49} parent=0 // pred_check
    _
  $region23: #{transformer_forward.49} parent=0 // pred_check_branch
    %86 = sbr.rel (0) target = $region25
  $region24: #{transformer_forward.49} parent=0 // pred_region
    _
  $region25: #{transformer_forward.49} parent=0 // pred_fallthru
    _
  // Predicated region
  $region26: #{transformer_forward.49} parent=0 // pred_check
    _
  $region27: #{transformer_forward.49} parent=0 // pred_check_branch
    %88 = sbr.rel (0) target = $region29
  $region28: #{transformer_forward.49} parent=0 // pred_region
    _
  $region29: #{transformer_forward.49} parent=0 // pred_fallthru
    _

// kernel: transformer_forward.47
$region0: #{transformer_forward.47}
  #allocation0 [shape = 'u32[]', space=smem, size = 0x4, offset = 0x4, fixed_abs, tag = 'smem constant byte address 0x4 - core index']
  #allocation1 [shape = 'u32[72,128]{1,0:T(1,128)}', space=vmem, size = 0x9000, scoped, tag = 'internal scratch']
  #allocation2 [shape = 'f32[16,96]{1,0:T(8,128)}', space=vmem, size = 0x2000, scoped, tag = 'scratch operand']
  %s0 = inlined_call_operand.vmem [shape: bf16[16,32], index: 0, kind: input, shape index: {}]
  %s1 = inlined_call_operand.vmem [shape: bf16[32,96], index: 1, kind: input, shape index: {}]
  %s2 = inlined_call_operand.vmem [shape: f32[1,96], index: 2, kind: input, shape index: {}]
  %s3 = inlined_call_operand.vmem [shape: bf16[16,96], index: 3, kind: output, shape index: {}]
  %s4 = sld [smem:[#allocation0]]
  $region30: #{transformer_forward.47} parent=0
    _
  %s6 = ssub.s32 1, %s4
  %s7 = scalar_select 0, %s6, %s4
  // Predicated region
  $region2: #{transformer_forward.47} parent=0 // pred_check
    _
  $region3: #{transformer_forward.47} parent=0 // pred_check_branch
    %9 = sbr.rel (0) target = $region5
  $region4: #{transformer_forward.47} parent=0 // pred_region
    _
  $region5: #{transformer_forward.47} parent=0 // pred_fallthru
    _
  // Predicated region
  $region6: #{transformer_forward.47} parent=0 // pred_check
    _
  $region7: #{transformer_forward.47} parent=0 // pred_check_branch
    %11 = sbr.rel (0) target = $region9
  $region8: #{transformer_forward.47} parent=0 // pred_region
    _
  $region9: #{transformer_forward.47} parent=0 // pred_fallthru
    _
  // Predicated region
  $region10: #{transformer_forward.47} parent=0 // pred_check
    _
  $region11: #{transformer_forward.47} parent=0 // pred_check_branch
    %13 = sbr.rel (0) target = $region13
  $region12: #{transformer_forward.47} parent=0 // pred_region
    _
  $region13: #{transformer_forward.47} parent=0 // pred_fallthru
    _
  %p15 = scmp.eq.s32.totalorder 0, 0
  // Predicated region
  $region14: #{transformer_forward.47} parent=0 // pred_check
    %p16 = pneg %p15
  $region15: #{transformer_forward.47} parent=0 // pred_check_branch
    %18 = sbr.rel (%p16) target = $region17
  $region16: #{transformer_forward.47} parent=0 // pred_region
    %vm19 = vcmask 785408
    %20 = vst.msk [vmem:[#allocation2] sm:$0xff] %vm19, 0.0
    %21 = vst.msk [vmem:[#allocation2 + $0x8] sm:$0xff] %vm19, 0.0
  $region17: #{transformer_forward.47} parent=0 // pred_fallthru
    _
  %v22 = vld [vmem:[#allocation2] sm:$0xff]
  %v23 = vld [vmem:[#allocation2 + $0x8] sm:$0xff]
  %v24 = vld [vmem:[%s0] sm:$0xf]
  %v25 = vld [vmem:[%s0 + $0x4] sm:$0xf]
  %v26 = vld [vmem:[%s1] sm:$0xf]
  %v27 = vld [vmem:[%s1 + $0x4] sm:$0xf]
  %v28 = vld [vmem:[%s1 + $0x8] sm:$0xf]
  %v29 = vld [vmem:[%s1 + $0xc] sm:$0xf]
  %v32 = vunpack.c.l.b16 %v24
  %v33 = vunpack.c.l.b16 %v25
  %v34 = vpack.c.b16 %v33, %v32
  %v39 = vunpack.c.l.b16 %v26
  %v40 = vunpack.c.l.b16 %v27
  %v41 = vunpack.c.l.b16 %v28
  %v42 = vunpack.c.l.b16 %v29
  %v43 = vpack.c.b16 %v40, %v39
  %v44 = vpack.c.b16 %v42, %v41
  %vm47 = vcmask 261120
  %v49 = vsel %vm47, %v34, 0
  %51 = vmatpush.bf16.msra.mxu0 0
  %52 = vmatpush.bf16.msra.mxu0 0
  %53 = vmatpush.bf16.msra.mxu0 0
  %54 = vmatpush.bf16.msra.mxu0 0
  %55 = vmatpush.bf16.msra.mxu0 0
  %56 = vmatpush.bf16.msra.mxu0 0
  %57 = vmatpush.bf16.msra.mxu0 %v44
  %58 = vmatpush.bf16.msra.mxu0 %v43
  %59 = vmatmul.bf16.gmra.mxu0 %v49
  %v60 = vpop.f32.mrf.mxu0
  %v61 = vadd.f32 0.0, %v60
  %v62 = vpop.f32.mrf.mxu0
  %v63 = vadd.f32 0.0, %v62
  %64 = vdwg.mxu0
  %v65 = vadd.f32 %v22, %v61
  %v66 = vadd.f32 %v23, %v63
  %vm67 = vcmask 785408
  %68 = vst.msk [vmem:[#allocation2] sm:$0xff] %vm67, %v65
  %69 = vst.msk [vmem:[#allocation2 + $0x8] sm:$0xff] %vm67, %v66
  // Predicated region
  $region18: #{transformer_forward.47} parent=0 // pred_check
    %p70 = pneg %p15
  $region19: #{transformer_forward.47} parent=0 // pred_check_branch
    %72 = sbr.rel (%p70) target = $region21
  $region20: #{transformer_forward.47} parent=0 // pred_region
    %v73 = vld [vmem:[#allocation2] sm:$0xff]
    %v74 = vld [vmem:[#allocation2 + $0x8] sm:$0xff]
    %v75 = vld [vmem:[%s2] sm:$0x1]
    %v77 = vperm.slane %v75, 0
    %v79 = vadd.f32 %v73, %v77
    %v80 = vadd.f32 %v74, %v77
    %v81 = vpack.c.bf16 %v79, %v79
    %v82 = vpack.c.bf16 %v80, %v80
    %vm83 = vcmask 781312
    %84 = vst.msk [vmem:[%s3] sm:$0xf] %vm83, %v81
    %85 = vst.msk [vmem:[%s3 + $0x4] sm:$0xf] %vm83, %v82
  $region21: #{transformer_forward.47} parent=0 // pred_fallthru
    _
  // Predicated region
  $region22: #{transformer_forward.47} parent=0 // pred_check
    _
  $region23: #{transformer_forward.47} parent=0 // pred_check_branch
    %87 = sbr.rel (0) target = $region25
  $region24: #{transformer_forward.47} parent=0 // pred_region
    _
  $region25: #{transformer_forward.47} parent=0 // pred_fallthru
    _
  // Predicated region
  $region26: #{transformer_forward.47} parent=0 // pred_check
    _
  $region27: #{transformer_forward.47} parent=0 // pred_check_branch
    %89 = sbr.rel (0) target = $region29
  $region28: #{transformer_forward.47} parent=0 // pred_region
    _
  $region29: #{transformer_forward.47} parent=0 // pred_fallthru
    _

// kernel: transformer_forward.50
$region0: #{transformer_forward.50}
  #allocation0 [shape = 'u32[]', space=smem, size = 0x4, offset = 0x4, fixed_abs, tag = 'smem constant byte address 0x4 - core index']
  #allocation1 [shape = 'u32[72,128]{1,0:T(1,128)}', space=vmem, size = 0x9000, scoped, tag = 'internal scratch']
  %s0 = inlined_call_operand.vmem [shape: bf16[16,32], index: 0, kind: input, shape index: {}]
  %s1 = inlined_call_operand.vmem [shape: bf16[16,32], index: 1, kind: input, shape index: {}]
  %s2 = inlined_call_operand.vmem [shape: f32[1,32], index: 2, kind: input, shape index: {}]
  %s3 = inlined_call_operand.vmem [shape: f32[1,32], index: 3, kind: input, shape index: {}]
  %s4 = inlined_call_operand.vmem [shape: bf16[16,32], index: 4, kind: output, shape index: {}]
  %s5 = sld [smem:[#allocation0]]
  $region26: #{transformer_forward.50} parent=0
    _
  %s7 = ssub.s32 1, %s5
  %s8 = scalar_select 0, %s7, %s5
  // Predicated region
  $region2: #{transformer_forward.50} parent=0 // pred_check
    _
  $region3: #{transformer_forward.50} parent=0 // pred_check_branch
    %10 = sbr.rel (0) target = $region5
  $region4: #{transformer_forward.50} parent=0 // pred_region
    _
  $region5: #{transformer_forward.50} parent=0 // pred_fallthru
    _
  // Predicated region
  $region6: #{transformer_forward.50} parent=0 // pred_check
    _
  $region7: #{transformer_forward.50} parent=0 // pred_check_branch
    %12 = sbr.rel (0) target = $region9
  $region8: #{transformer_forward.50} parent=0 // pred_region
    _
  $region9: #{transformer_forward.50} parent=0 // pred_fallthru
    _
  // Predicated region
  $region10: #{transformer_forward.50} parent=0 // pred_check
    _
  $region11: #{transformer_forward.50} parent=0 // pred_check_branch
    %14 = sbr.rel (0) target = $region13
  $region12: #{transformer_forward.50} parent=0 // pred_region
    _
  $region13: #{transformer_forward.50} parent=0 // pred_fallthru
    _
  // Predicated region
  $region14: #{transformer_forward.50} parent=0 // pred_check
    _
  $region15: #{transformer_forward.50} parent=0 // pred_check_branch
    %16 = sbr.rel (0) target = $region17
  $region16: #{transformer_forward.50} parent=0 // pred_region
    _
  $region17: #{transformer_forward.50} parent=0 // pred_fallthru
    _
  %v17 = vld [vmem:[%s0] sm:$0xf]
  %v18 = vld [vmem:[%s0 + $0x4] sm:$0xf]
  %v19 = vunpack.c.l.bf16 %v17
  %v20 = vunpack.c.l.bf16 %v18
  %v21 = vld [vmem:[%s1] sm:$0xf]
  %v22 = vld [vmem:[%s1 + $0x4] sm:$0xf]
  %v23 = vunpack.c.l.bf16 %v21
  %v24 = vunpack.c.l.bf16 %v22
  %v25 = vadd.f32 %v19, %v23
  %v26 = vadd.f32 %v20, %v24
  %vm27 = vcmask 261120
  %v28 = vsel %vm27, %v25, 0.0
  %29 = vadd.xlane.f32.xlu0 %v28
  %v30 = vpop.xlane.xlu0 %29
  %v31 = vsel %vm27, %v26, 0.0
  %32 = vadd.xlane.f32.xlu0 %v31
  %v33 = vpop.xlane.xlu0 %32
  %v34 = vrcp.pop 32.0
  %v35 = vmul.f32 32.0, %v34
  %v36 = vsub.f32 1.0, %v35
  %v37 = vmul.f32 %v34, %v36
  %v38 = vadd.f32 %v34, %v37
  %vm39 = vweird.f32 %v34
  %v40 = vsel %vm39, %v34, %v38
  %v41 = vmul.f32 %v30, %v40
  %v42 = vmul.f32 %v33, %v40
  %v43 = vsub.f32 %v25, %v41
  %v44 = vsub.f32 %v26, %v42
  %v45 = vmul.f32 %v43, %v43
  %v46 = vmul.f32 %v44, %v44
  %v47 = vsel %vm27, %v45, 0.0
  %48 = vadd.xlane.f32.xlu0 %v47
  %v49 = vpop.xlane.xlu0 %48
  %v50 = vsel %vm27, %v46, 0.0
  %51 = vadd.xlane.f32.xlu0 %v50
  %v52 = vpop.xlane.xlu0 %51
  %v53 = vmul.f32 %v49, %v40
  %v54 = vmul.f32 %v52, %v40
  %v55 = vadd.f32 %v53, 1e-05
  %v56 = vadd.f32 %v54, 1e-05
  %v57 = vrsqrt.pop %v55
  %v58 = vmul.f32 %v57, %v55
  %v59 = vmul.f32 %v58, %v57
  %v60 = vmul.f32 0.5, %v59
  %v61 = vsub.f32 1.5, %v60
  %v62 = vmul.f32 %v57, %v61
  %vm63 = vweird.f32 %v55
  %vm64 = vweird.f32 %v57
  %vm65 = vmor %vm63, %vm64
  %v66 = vsel %vm65, %v57, %v62
  %v67 = vrsqrt.pop %v56
  %v68 = vmul.f32 %v67, %v56
  %v69 = vmul.f32 %v68, %v67
  %v70 = vmul.f32 0.5, %v69
  %v71 = vsub.f32 1.5, %v70
  %v72 = vmul.f32 %v67, %v71
  %vm73 = vweird.f32 %v56
  %vm74 = vweird.f32 %v67
  %vm75 = vmor %vm73, %vm74
  %v76 = vsel %vm75, %v67, %v72
  %v77 = vmul.f32 %v43, %v66
  %v78 = vmul.f32 %v44, %v76
  %v79 = vld [vmem:[%s2] sm:$0x1]
  %v81 = vperm.slane %v79, 0
  %v83 = vmul.f32 %v77, %v81
  %v84 = vmul.f32 %v78, %v81
  %v85 = vld [vmem:[%s3] sm:$0x1]
  %v87 = vperm.slane %v85, 0
  %v89 = vadd.f32 %v83, %v87
  %v90 = vadd.f32 %v84, %v87
  %v91 = vpack.c.bf16 %v89, %v89
  %v92 = vpack.c.bf16 %v90, %v90
  %vm93 = vcmask 257024
  %94 = vst.msk [vmem:[%s4] sm:$0xf] %vm93, %v91
  %95 = vst.msk [vmem:[%s4 + $0x4] sm:$0xf] %vm93, %v92
  // Predicated region
  $region18: #{transformer_forward.50} parent=0 // pred_check
    _
  $region19: #{transformer_forward.50} parent=0 // pred_check_branch
    %97 = sbr.rel (0) target = $region21
  $region20: #{transformer_forward.50} parent=0 // pred_region
    _
  $region21: #{transformer_forward.50} parent=0 // pred_fallthru
    _
  // Predicated region
  $region22: #{transformer_forward.50} parent=0 // pred_check
    _
  $region23: #{transformer_forward.50} parent=0 // pred_check_branch
    %99 = sbr.rel (0) target = $region25
  $region24: #{transformer_forward.50} parent=0 // pred_region
    _
  $region25: #{transformer_forward.50} parent=0 // pred_fallthru
    _

// kernel: transformer_forward.48
$region0: #{transformer_forward.48}
  #allocation0 [shape = 'u32[]', space=smem, size = 0x4, offset = 0x4, fixed_abs, tag = 'smem constant byte address 0x4 - core index']
  #allocation1 [shape = 'u32[72,128]{1,0:T(1,128)}', space=vmem, size = 0x9000, scoped, tag = 'internal scratch']
  #allocation2 [shape = 'f32[8,1]{1,0:T(8,128)}', space=vmem, size = 0x1000, scoped, tag = 'scratch operand']
  #allocation3 [shape = 'f32[8,1]{1,0:T(8,128)}', space=vmem, size = 0x1000, scoped, tag = 'scratch operand']
  #allocation4 [shape = 'f32[8,4]{1,0:T(8,128)}', space=vmem, size = 0x1000, scoped, tag = 'scratch operand']
  %s0 = inlined_call_operand.vmem [shape: bf16[2,8,8,4], index: 0, kind: input, shape index: {}]
  %s1 = inlined_call_operand.vmem [shape: bf16[2,8,8,4], index: 1, kind: input, shape index: {}]
  %s2 = inlined_call_operand.vmem [shape: bf16[2,8,8,4], index: 2, kind: input, shape index: {}]
  %s3 = inlined_call_operand.vmem [shape: f32[2,1,8], index: 3, kind: input, shape index: {}]
  %s4 = inlined_call_operand.vmem [shape: bf16[2,8,8,4], index: 4, kind: output, shape index: {}]
  %s5 = sld [smem:[#allocation0]]
  $region57: #{transformer_forward.48} parent=0
    _
  %s7 = ssub.s32 1, %s5
  %s8 = scalar_select 0, %s7, %s5
  loop: start=0, step=1, limit=18
  $region2: #{transformer_forward.48} parent=0 // loop_pre_header
    _
  $region3: #{transformer_forward.48} parent=0 // loop_header
    %s10 = sphi 0, %s14
    %p11 = scmp.ge.s32.totalorder %s10, 18
    %s17 = sphi 0, %s43
    %s18 = sphi 0, %s39
    %s19 = sphi 0, %s35
    %s20 = sphi 0, %s31
    %s21 = sphi 0, %s17
    %s22 = sphi 0, %s18
    %s23 = sphi 0, %s19
    %s24 = sphi 0, %s20
    %s25 = sphi 0, %s21
    %s26 = sphi 0, %s22
    %s27 = sphi 0, %s23
    %s28 = sphi 0, %s24
    %s50 = sphi 0, %s52
    %s53 = sphi 0, %s50
    %s54 = sphi 0, %s53
    %s70 = sphi 0, %s54
    %s80 = sphi 0, %s82
    %s83 = sphi 0, %s80
    %s84 = sphi 0, %s83
    %s100 = sphi 0, %s84
    %s110 = sphi 0, %s112
    %s113 = sphi 0, %s110
    %s114 = sphi 0, %s113
    %s130 = sphi 0, %s114
    %s138 = sphi 0, %s140
    %s141 = sphi 0, %s138
    %s142 = sphi 0, %s141
    %s158 = sphi 0, %s142
    %s168 = sphi 0, %s170
    %s171 = sphi 0, %s168
    %s172 = sphi 0, %s171
    %s188 = sphi 0, %s172
  $region4: #{transformer_forward.48} parent=0 // loop_header_branch
    %13 = sbr.rel (%p11) target = $region8
  $region5: #{transformer_forward.48} parent=0 // loop_body
    %s15 = ssub.s32 %s10, 1
    %s16 = ssub.s32 %s10, 2
    %s29 = sadd.s32 1, %s20
    %p30 = scmp.ge.s32.totalorder %s29, 1
    %s31 = scalar_select %p30, 0, %s29
    %s32 = sadd.s32 1, %s19
    %s33 = scalar_select %p30, %s32, %s19
    %p34 = scmp.ge.s32.totalorder %s33, 1
    %s35 = scalar_select %p34, 0, %s33
    %s36 = sadd.s32 1, %s18
    %s37 = scalar_select %p34, %s36, %s18
    %p38 = scmp.ge.s32.totalorder %s37, 8
    %s39 = scalar_select %p38, 0, %s37
    %s40 = sadd.s32 1, %s17
    %s41 = scalar_select %p38, %s40, %s17
    %p42 = scmp.ge.s32.totalorder %s41, 2
    %s43 = scalar_select %p42, 0, %s41
    %s44 = ssub.s32 %s17, %s43
    %s45 = ssub.s32 %s18, %s39
    %s46 = sor.u32 %s44, %s45
    %s47 = ssub.s32 %s19, %s35
    %s48 = sor.u32 %s46, %s47
    %p49 = scmp.eq.s32.totalorder %s48, 0
    %s51 = sadd.s32 %s50, 1
    %s52 = scalar_select %p49, %s50, %s51
    %p55 = pneg %p49
    %p56 = scmp.eq.s32.totalorder %s10, 15
    %p57 = por %p55, %p56
    %p58 = scmp.ne.s32.totalorder %s50, %s53
    %p59 = scmp.eq.s32.totalorder %s10, 0
    %p60 = por %p58, %p59
    %p61 = scmp.ne.s32.totalorder %s50, %s53
    %p62 = scmp.eq.s32.totalorder %s15, 15
    %p63 = por %p61, %p62
    %p64 = scmp.ne.s32.totalorder %s53, %s54
    %p65 = scmp.eq.s32.totalorder %s15, 0
    %p66 = por %p64, %p65
    %p67 = scmp.ne.s32.totalorder %s53, %s54
    %p68 = scmp.eq.s32.totalorder %s16, 15
    %p69 = por %p67, %p68
    %p71 = scmp.ne.s32.totalorder %s54, %s70
    %p72 = scmp.eq.s32.totalorder %s16, 0
    %p73 = por %p71, %p72
    %s74 = ssub.s32 %s17, %s43
    %s75 = ssub.s32 %s18, %s39
    %s76 = sor.u32 %s74, %s75
    %s77 = ssub.s32 %s20, %s31
    %s78 = sor.u32 %s76, %s77
    %p79 = scmp.eq.s32.totalorder %s78, 0
    %s81 = sadd.s32 %s80, 1
    %s82 = scalar_select %p79, %s80, %s81
    %p85 = pneg %p79
    %p86 = scmp.eq.s32.totalorder %s10, 15
    %p87 = por %p85, %p86
    %p88 = scmp.ne.s32.totalorder %s80, %s83
    %p89 = scmp.eq.s32.totalorder %s10, 0
    %p90 = por %p88, %p89
    %p91 = scmp.ne.s32.totalorder %s80, %s83
    %p92 = scmp.eq.s32.totalorder %s15, 15
    %p93 = por %p91, %p92
    %p94 = scmp.ne.s32.totalorder %s83, %s84
    %p95 = scmp.eq.s32.totalorder %s15, 0
    %p96 = por %p94, %p95
    %p97 = scmp.ne.s32.totalorder %s83, %s84
    %p98 = scmp.eq.s32.totalorder %s16, 15
    %p99 = por %p97, %p98
    %p101 = scmp.ne.s32.totalorder %s84, %s100
    %p102 = scmp.eq.s32.totalorder %s16, 0
    %p103 = por %p101, %p102
    %s104 = ssub.s32 %s17, %s43
    %s105 = ssub.s32 %s18, %s39
    %s106 = sor.u32 %s104, %s105
    %s107 = ssub.s32 %s20, %s31
    %s108 = sor.u32 %s106, %s107
    %p109 = scmp.eq.s32.totalorder %s108, 0
    %s111 = sadd.s32 %s110, 1
    %s112 = scalar_select %p109, %s110, %s111
    %p115 = pneg %p109
    %p116 = scmp.eq.s32.totalorder %s10, 15
    %p117 = por %p115, %p116
    %p118 = scmp.ne.s32.totalorder %s110, %s113
    %p119 = scmp.eq.s32.totalorder %s10, 0
    %p120 = por %p118, %p119
    %p121 = scmp.ne.s32.totalorder %s110, %s113
    %p122 = scmp.eq.s32.totalorder %s15, 15
    %p123 = por %p121, %p122
    %p124 = scmp.ne.s32.totalorder %s113, %s114
    %p125 = scmp.eq.s32.totalorder %s15, 0
    %p126 = por %p124, %p125
    %p127 = scmp.ne.s32.totalorder %s113, %s114
    %p128 = scmp.eq.s32.totalorder %s16, 15
    %p129 = por %p127, %p128
    %p131 = scmp.ne.s32.totalorder %s114, %s130
    %p132 = scmp.eq.s32.totalorder %s16, 0
    %p133 = por %p131, %p132
    %s134 = ssub.s32 %s17, %s43
    %s135 = ssub.s32 %s20, %s31
    %s136 = sor.u32 %s134, %s135
    %p137 = scmp.eq.s32.totalorder %s136, 0
    %s139 = sadd.s32 %s138, 1
    %s140 = scalar_select %p137, %s138, %s139
    %p143 = pneg %p137
    %p144 = scmp.eq.s32.totalorder %s10, 15
    %p145 = por %p143, %p144
    %p146 = scmp.ne.s32.totalorder %s138, %s141
    %p147 = scmp.eq.s32.totalorder %s10, 0
    %p148 = por %p146, %p147
    %p149 = scmp.ne.s32.totalorder %s138, %s141
    %p150 = scmp.eq.s32.totalorder %s15, 15
    %p151 = por %p149, %p150
    %p152 = scmp.ne.s32.totalorder %s141, %s142
    %p153 = scmp.eq.s32.totalorder %s15, 0
    %p154 = por %p152, %p153
    %p155 = scmp.ne.s32.totalorder %s141, %s142
    %p156 = scmp.eq.s32.totalorder %s16, 15
    %p157 = por %p155, %p156
    %p159 = scmp.ne.s32.totalorder %s142, %s158
    %p160 = scmp.eq.s32.totalorder %s16, 0
    %p161 = por %p159, %p160
    %s162 = ssub.s32 %s17, %s43
    %s163 = ssub.s32 %s18, %s39
    %s164 = sor.u32 %s162, %s163
    %s165 = ssub.s32 %s19, %s35
    %s166 = sor.u32 %s164, %s165
    %p167 = scmp.eq.s32.totalorder %s166, 0
    %s169 = sadd.s32 %s168, 1
    %s170 = scalar_select %p167, %s168, %s169
    %p173 = pneg %p167
    %p174 = scmp.eq.s32.totalorder %s10, 15
    %p175 = por %p173, %p174
    %p176 = scmp.ne.s32.totalorder %s168, %s171
    %p177 = scmp.eq.s32.totalorder %s10, 0
    %p178 = por %p176, %p177
    %p179 = scmp.ne.s32.totalorder %s168, %s171
    %p180 = scmp.eq.s32.totalorder %s15, 15
    %p181 = por %p179, %p180
    %p182 = scmp.ne.s32.totalorder %s171, %s172
    %p183 = scmp.eq.s32.totalorder %s15, 0
    %p184 = por %p182, %p183
    %p185 = scmp.ne.s32.totalorder %s171, %s172
    %p186 = scmp.eq.s32.totalorder %s16, 15
    %p187 = por %p185, %p186
    %p189 = scmp.ne.s32.totalorder %s172, %s188
    %p190 = scmp.eq.s32.totalorder %s16, 0
    %p191 = por %p189, %p190
    %p192 = scmp.le.s32.totalorder 1, %s10
    %p193 = scmp.lt.s32.totalorder %s10, 17
    %p194 = pnand %p192, %p193
    %p195 = pneg %p194
    // Predicated region
    $region9: #{transformer_forward.48} parent=5 // pred_check
      _
    $region10: #{transformer_forward.48} parent=5 // pred_check_branch
      %197 = sbr.rel (%p194) target = $region12
    $region11: #{transformer_forward.48} parent=5 // pred_region
      %s198 = ssub.s32 %s10, 1
    $region12: #{transformer_forward.48} parent=5 // pred_fallthru
      _
    %p199 = scmp.lt.s32.totalorder %s10, 16
    // Predicated region
    $region13: #{transformer_forward.48} parent=5 // pred_check
      %p200 = pneg %p199
    $region14: #{transformer_forward.48} parent=5 // pred_check_branch
      %202 = sbr.rel (%p200) target = $region16
    $region15: #{transformer_forward.48} parent=5 // pred_region
      // Predicated region
      $region17: #{transformer_forward.48} parent=15 // pred_check
        %p203 = pneg %p60
      $region18: #{transformer_forward.48} parent=15 // pred_check_branch
        %205 = sbr.rel (%p203) target = $region20
      $region19: #{transformer_forward.48} parent=15 // pred_region
        %p206 = scmp.lt.s32.totalorder %s17, 1
        %s207 = scalar_select %p206, %s17, 1
        %p208 = scmp.lt.s32.totalorder %s18, 7
        %s209 = scalar_select %p208, %s18, 7
        %p210 = scmp.lt.s32.totalorder %s19, 0
        %s211 = scalar_select %p210, %s19, 0
        %s212 = sadd.s32 %s211, %s209
        %s213 = smul.addr %s207, 8
        %s214 = sadd.s32 %s212, %s213
        %s215 = smul.addr %s214, 4
        %s216 = scalar_lea.vmem %s0, %s215
      $region20: #{transformer_forward.48} parent=15 // pred_fallthru
        _
      // Predicated region
      $region21: #{transformer_forward.48} parent=15 // pred_check
        %p217 = pneg %p90
      $region22: #{transformer_forward.48} parent=15 // pred_check_branch
        %219 = sbr.rel (%p217) target = $region24
      $region23: #{transformer_forward.48} parent=15 // pred_region
        %p220 = scmp.lt.s32.totalorder %s17, 1
        %s221 = scalar_select %p220, %s17, 1
        %p222 = scmp.lt.s32.totalorder %s18, 7
        %s223 = scalar_select %p222, %s18, 7
        %p224 = scmp.lt.s32.totalorder %s20, 0
        %s225 = scalar_select %p224, %s20, 0
        %s226 = sadd.s32 %s225, %s223
        %s227 = smul.addr %s221, 8
        %s228 = sadd.s32 %s226, %s227
        %s229 = smul.addr %s228, 4
        %s230 = scalar_lea.vmem %s1, %s229
      $region24: #{transformer_forward.48} parent=15 // pred_fallthru
        _
      // Predicated region
      $region25: #{transformer_forward.48} parent=15 // pred_check
        %p231 = pneg %p120
      $region26: #{transformer_forward.48} parent=15 // pred_check_branch
        %233 = sbr.rel (%p231) target = $region28
      $region27: #{transformer_forward.48} parent=15 // pred_region
        %p234 = scmp.lt.s32.totalorder %s17, 1
        %s235 = scalar_select %p234, %s17, 1
        %p236 = scmp.lt.s32.totalorder %s18, 7
        %s237 = scalar_select %p236, %s18, 7
        %p238 = scmp.lt.s32.totalorder %s20, 0
        %s239 = scalar_select %p238, %s20, 0
        %s240 = sadd.s32 %s239, %s237
        %s241 = smul.addr %s235, 8
        %s242 = sadd.s32 %s240, %s241
        %s243 = smul.addr %s242, 4
        %s244 = scalar_lea.vmem %s2, %s243
      $region28: #{transformer_forward.48} parent=15 // pred_fallthru
        _
      // Predicated region
      $region29: #{transformer_forward.48} parent=15 // pred_check
        %p245 = pneg %p148
      $region30: #{transformer_forward.48} parent=15 // pred_check_branch
        %247 = sbr.rel (%p245) target = $region32
      $region31: #{transformer_forward.48} parent=15 // pred_region
        %p248 = scmp.lt.s32.totalorder %s17, 1
        %s249 = scalar_select %p248, %s17, 1
        %p250 = scmp.lt.s32.totalorder %s20, 0
        %s251 = scalar_select %p250, %s20, 0
        %s252 = sadd.s32 %s251, %s249
        %s253 = scalar_lea.vmem %s3, %s252
      $region32: #{transformer_forward.48} parent=15 // pred_fallthru
        _
    $region16: #{transformer_forward.48} parent=5 // pred_fallthru
      _
    %p254 = scmp.le.s32.totalorder 1, %s10
    %p255 = scmp.lt.s32.totalorder %s10, 17
    %p256 = pnand %p254, %p255
    %p257 = pneg %p256
    // Predicated region
    $region33: #{transformer_forward.48} parent=5 // pred_check
      _
    $region34: #{transformer_forward.48} parent=5 // pred_check_branch
      %259 = sbr.rel (%p256) target = $region36
    $region35: #{transformer_forward.48} parent=5 // pred_region
      %s260 = ssub.s32 %s10, 1
      %p261 = scmp.lt.s32.totalorder %s21, 1
      %s262 = scalar_select %p261, %s21, 1
      %p263 = scmp.lt.s32.totalorder %s22, 7
      %s264 = scalar_select %p263, %s22, 7
      %p265 = scmp.lt.s32.totalorder %s23, 0
      %s266 = scalar_select %p265, %s23, 0
      %s267 = sadd.s32 %s266, %s264
      %s268 = smul.addr %s262, 8
      %s269 = sadd.s32 %s267, %s268
      %s270 = smul.addr %s269, 4
      %s271 = scalar_lea.vmem %s0, %s270
      %p272 = pneg %p66
      %p273 = pneg %p63
      %p274 = scmp.lt.s32.totalorder %s21, 1
      %s275 = scalar_select %p274, %s21, 1
      %p276 = scmp.lt.s32.totalorder %s22, 7
      %s277 = scalar_select %p276, %s22, 7
      %p278 = scmp.lt.s32.totalorder %s24, 0
      %s279 = scalar_select %p278, %s24, 0
      %s280 = sadd.s32 %s279, %s277
      %s281 = smul.addr %s275, 8
      %s282 = sadd.s32 %s280, %s281
      %s283 = smul.addr %s282, 4
      %s284 = scalar_lea.vmem %s1, %s283
      %p285 = pneg %p96
      %p286 = pneg %p93
      %p287 = scmp.lt.s32.totalorder %s21, 1
      %s288 = scalar_select %p287, %s21, 1
      %p289 = scmp.lt.s32.totalorder %s22, 7
      %s290 = scalar_select %p289, %s22, 7
      %p291 = scmp.lt.s32.totalorder %s24, 0
      %s292 = scalar_select %p291, %s24, 0
      %s293 = sadd.s32 %s292, %s290
      %s294 = smul.addr %s288, 8
      %s295 = sadd.s32 %s293, %s294
      %s296 = smul.addr %s295, 4
      %s297 = scalar_lea.vmem %s2, %s296
      %p298 = pneg %p126
      %p299 = pneg %p123
      %p300 = scmp.lt.s32.totalorder %s21, 1
      %s301 = scalar_select %p300, %s21, 1
      %p302 = scmp.lt.s32.totalorder %s24, 0
      %s303 = scalar_select %p302, %s24, 0
      %s304 = sadd.s32 %s303, %s301
      %s305 = scalar_lea.vmem %s3, %s304
      %p306 = pneg %p154
      %p307 = pneg %p151
      %p308 = pneg %p184
      %p309 = pneg %p181
      %p310 = scmp.lt.s32.totalorder %s21, 1
      %s311 = scalar_select %p310, %s21, 1
      %p312 = scmp.lt.s32.totalorder %s22, 7
      %s313 = scalar_select %p312, %s22, 7
      %p314 = scmp.lt.s32.totalorder %s23, 0
      %s315 = scalar_select %p314, %s23, 0
      %s316 = sadd.s32 %s315, %s313
      %s317 = smul.addr %s311, 8
      %s318 = sadd.s32 %s316, %s317
      %s319 = smul.addr %s318, 4
      %s320 = scalar_lea.vmem %s4, %s319
      %p321 = scmp.lt.s32.totalorder %s21, 1
      %s322 = scalar_select %p321, %s21, 1
      %p323 = scmp.lt.s32.totalorder %s22, 7
      %s324 = scalar_select %p323, %s22, 7
      %p325 = scmp.lt.s32.totalorder %s23, 0
      %s326 = scalar_select %p325, %s23, 0
      %s327 = sadd.s32 %s326, %s324
      %s328 = smul.addr %s322, 8
      %s329 = sadd.s32 %s327, %s328
      %s330 = smul.addr %s329, 4
      %s331 = scalar_lea.vmem %s0, %s330
      %p332 = scmp.lt.s32.totalorder %s21, 1
      %s333 = scalar_select %p332, %s21, 1
      %p334 = scmp.lt.s32.totalorder %s22, 7
      %s335 = scalar_select %p334, %s22, 7
      %p336 = scmp.lt.s32.totalorder %s24, 0
      %s337 = scalar_select %p336, %s24, 0
      %s338 = sadd.s32 %s337, %s335
      %s339 = smul.addr %s333, 8
      %s340 = sadd.s32 %s338, %s339
      %s341 = smul.addr %s340, 4
      %s342 = scalar_lea.vmem %s1, %s341
      %p343 = scmp.lt.s32.totalorder %s21, 1
      %s344 = scalar_select %p343, %s21, 1
      %p345 = scmp.lt.s32.totalorder %s22, 7
      %s346 = scalar_select %p345, %s22, 7
      %p347 = scmp.lt.s32.totalorder %s24, 0
      %s348 = scalar_select %p347, %s24, 0
      %s349 = sadd.s32 %s348, %s346
      %s350 = smul.addr %s344, 8
      %s351 = sadd.s32 %s349, %s350
      %s352 = smul.addr %s351, 4
      %s353 = scalar_lea.vmem %s2, %s352
      %p354 = scmp.lt.s32.totalorder %s21, 1
      %s355 = scalar_select %p354, %s21, 1
      %p356 = scmp.lt.s32.totalorder %s24, 0
      %s357 = scalar_select %p356, %s24, 0
      %s358 = sadd.s32 %s357, %s355
      %s359 = scalar_lea.vmem %s3, %s358
      %p360 = scmp.lt.s32.totalorder %s21, 1
      %s361 = scalar_select %p360, %s21, 1
      %p362 = scmp.lt.s32.totalorder %s22, 7
      %s363 = scalar_select %p362, %s22, 7
      %p364 = scmp.lt.s32.totalorder %s23, 0
      %s365 = scalar_select %p364, %s23, 0
      %s366 = sadd.s32 %s365, %s363
      %s367 = smul.addr %s361, 8
      %s368 = sadd.s32 %s366, %s367
      %s369 = smul.addr %s368, 4
      %s370 = scalar_lea.vmem %s4, %s369
      %p372 = scmp.eq.s32.totalorder %s24, 0
      // Predicated region
      $region37: #{transformer_forward.48} parent=35 // pred_check
        %p373 = pneg %p372
      $region38: #{transformer_forward.48} parent=35 // pred_check_branch
        %375 = sbr.rel (%p373) target = $region40
      $region39: #{transformer_forward.48} parent=35 // pred_region
        %vm376 = vcmask 7168
        %377 = vst.msk [vmem:[#allocation2] sm:$0xff] %vm376, -inf
        %378 = vst.msk [vmem:[#allocation3] sm:$0xff] %vm376, 0.0
        %vm379 = vcmask 31744
        %380 = vst.msk [vmem:[#allocation4] sm:$0xff] %vm379, 0.0
      $region40: #{transformer_forward.48} parent=35 // pred_fallthru
        _
      %v381 = vld [vmem:[%s331] sm:$0xf]
      %v382 = vld [vmem:[%s342] sm:$0xf]
      %v383 = vld [vmem:[%s353] sm:$0xf]
      %vm384 = vcmask 31744
      %v386 = vsel %vm384, %v381, 0
      %v389 = vsel %vm384, %v382, 0
      %391 = vmatpush.bf16.xpose.msra.mxu0 0
      %392 = vmatpush.bf16.xpose.msra.mxu0 0
      %393 = vmatpush.bf16.xpose.msra.mxu0 0
      %394 = vmatpush.bf16.xpose.msra.mxu0 0
      %395 = vmatpush.bf16.xpose.msra.mxu0 0
      %396 = vmatpush.bf16.xpose.msra.mxu0 0
      %397 = vmatpush.bf16.xpose.msra.mxu0 0
      %398 = vmatpush.bf16.xpose.msra.mxu0 %v389
      %399 = vmatmul.bf16.gmra.mxu0 %v386
      %v400 = vpop.f32.mrf.mxu0
      %v401 = vadd.f32 0.0, %v400
      %v402 = vpop.f32.mrf.mxu0
      %403 = vdwg.mxu0
      %v404 = vmul.f32 %v401, 0.5
      %v405 = vld [vmem:[%s359] sm:$0x1]
      %v407 = vperm.slane %v405, 0
      %v409 = vadd.f32 %v404, %v407
      %v410 = vlaneseq
      %v411 = vshrl.u32 %v410, 7
      %s412 = smul.u32 %s23, 8
      %v413 = vstv %s412
      %v414 = vadd.s32 %v411, %v413
      %v415 = vlaneseq
      %v416 = vand.u32 %v415, 127
      %s417 = smul.u32 %s24, 8
      %v418 = vstv %s417
      %v419 = vadd.s32 %v416, %v418
      %vm420 = vcmp.ge.s32.totalorder %v414, %v419
      %v421 = vsel %vm420, %v409, -1e+09
      %v422 = vld [vmem:[#allocation2] sm:$0xff]
      %vm423 = vcmask 64512
      %v424 = vsel %vm423, %v421, -inf
      %425 = vmax.xlane.f32.xlu0 %v424
      %v426 = vpop.xlane.xlu0 %425
      %v427 = vmax.f32 %v422, %v426
      %v428 = vsub.f32 %v422, %v427
      %v429 = vmul.f32 %v428, 1.442695
      %v430 = vpow.pop %v429
      %432 = vset.pattern.permute.xlu0 0
      %433 = vperm.xlu0 %432, %v427
      %v434 = vpop.permute.xlu0 %433
      %v436 = vsub.f32 %v421, %v434
      %v437 = vmul.f32 %v436, 1.442695
      %v438 = vpow.pop %v437
      %v439 = vld [vmem:[#allocation3] sm:$0xff]
      %v440 = vmul.f32 %v430, %v439
      %v441 = vsel %vm423, %v438, 0.0
      %442 = vadd.xlane.f32.xlu0 %v441
      %v443 = vpop.xlane.xlu0 %442
      %v444 = vadd.f32 %v440, %v443
      %vm445 = vcmask 7168
      %446 = vst.msk [vmem:[#allocation3] sm:$0xff] %vm445, %v444
      %v447 = vld [vmem:[#allocation4] sm:$0xff]
      %449 = vset.pattern.permute.xlu0 0
      %450 = vperm.xlu0 %449, %v430
      %v451 = vpop.permute.xlu0 %450
      %v453 = vmul.f32 %v451, %v447
      %v454 = vpack.c.bf16 %v438, %v438
      %v456 = vsel %vm423, %v454, 0
      %vm458 = vcmask 1043456
      %v460 = vsel %vm458, %v383, 0
      %462 = vmatpush.bf16.msra.mxu0 0
      %463 = vmatpush.bf16.msra.mxu0 0
      %464 = vmatpush.bf16.msra.mxu0 0
      %465 = vmatpush.bf16.msra.mxu0 0
      %466 = vmatpush.bf16.msra.mxu0 0
      %467 = vmatpush.bf16.msra.mxu0 0
      %468 = vmatpush.bf16.msra.mxu0 0
      %469 = vmatpush.bf16.msra.mxu0 %v460
      %470 = vmatmul.bf16.gmra.mxu0 %v456
      %v471 = vpop.f32.mrf.mxu0
      %v472 = vadd.f32 0.0, %v471
      %v473 = vpop.f32.mrf.mxu0
      %474 = vdwg.mxu0
      %v475 = vadd.f32 %v453, %v472
      %476 = vst.msk [vmem:[#allocation4] sm:$0xff] %vm384, %v475
      %477 = vst.msk [vmem:[#allocation2] sm:$0xff] %vm445, %v427
      // Predicated region
      $region41: #{transformer_forward.48} parent=35 // pred_check
        %p478 = pneg %p372
      $region42: #{transformer_forward.48} parent=35 // pred_check_branch
        %480 = sbr.rel (%p478) target = $region44
      $region43: #{transformer_forward.48} parent=35 // pred_region
        %v481 = vld [vmem:[#allocation4] sm:$0xff]
        %v482 = vld [vmem:[#allocation3] sm:$0xff]
        %v483 = vrcp.pop %v482
        %485 = vset.pattern.permute.xlu0 0
        %486 = vperm.xlu0 %485, %v483
        %v487 = vpop.permute.xlu0 %486
        %v489 = vmul.f32 %v481, %v487
        %v490 = vpack.c.bf16 %v489, %v489
        %vm491 = vcmask 27648
        %492 = vst.msk [vmem:[%s370] sm:$0xf] %vm491, %v490
      $region44: #{transformer_forward.48} parent=35 // pred_fallthru
        _
      %p493 = scmp.lt.s32.totalorder %s21, 1
      %s494 = scalar_select %p493, %s21, 1
      %p495 = scmp.lt.s32.totalorder %s22, 7
      %s496 = scalar_select %p495, %s22, 7
      %p497 = scmp.lt.s32.totalorder %s23, 0
      %s498 = scalar_select %p497, %s23, 0
      %s499 = sadd.s32 %s498, %s496
      %s500 = smul.addr %s494, 8
      %s501 = sadd.s32 %s499, %s500
      %s502 = smul.addr %s501, 4
      %s503 = scalar_lea.vmem %s4, %s502
      // Predicated region
      $region45: #{transformer_forward.48} parent=35 // pred_check
        %p504 = pneg %p181
      $region46: #{transformer_forward.48} parent=35 // pred_check_branch
        %506 = sbr.rel (%p504) target = $region48
      $region47: #{transformer_forward.48} parent=35 // pred_region
        _
      $region48: #{transformer_forward.48} parent=35 // pred_fallthru
        _
    $region36: #{transformer_forward.48} parent=5 // pred_fallthru
      _
    %p507 = scmp.le.s32.totalorder 2, %s10
    // Predicated region
    $region49: #{transformer_forward.48} parent=5 // pred_check
      %p508 = pneg %p507
    $region50: #{transformer_forward.48} parent=5 // pred_check_branch
      %510 = sbr.rel (%p508) target = $region52
    $region51: #{transformer_forward.48} parent=5 // pred_region
      %s511 = ssub.s32 %s10, 2
      // Predicated region
      $region53: #{transformer_forward.48} parent=51 // pred_check
        %p512 = pneg %p187
      $region54: #{transformer_forward.48} parent=51 // pred_check_branch
        %514 = sbr.rel (%p512) target = $region56
      $region55: #{transformer_forward.48} parent=51 // pred_region
        %p515 = scmp.lt.s32.totalorder %s25, 1
        %s516 = scalar_select %p515, %s25, 1
        %p517 = scmp.lt.s32.totalorder %s26, 7
        %s518 = scalar_select %p517, %s26, 7
        %p519 = scmp.lt.s32.totalorder %s27, 0
        %s520 = scalar_select %p519, %s27, 0
        %s521 = sadd.s32 %s520, %s518
        %s522 = smul.addr %s516, 8
        %s523 = sadd.s32 %s521, %s522
        %s524 = smul.addr %s523, 4
        %s525 = scalar_lea.vmem %s4, %s524
      $region56: #{transformer_forward.48} parent=51 // pred_fallthru
        _
    $region52: #{transformer_forward.48} parent=5 // pred_fallthru
      _
  $region6: #{transformer_forward.48} parent=0 // loop_footer
    %s14 = sadd.s32 1, %s10
  $region7: #{transformer_forward.48} parent=0 // loop_footer_branch
    %9 = sbr.rel target = $region3
  $region8: #{transformer_forward.48} parent=0 // loop_exit
    _

// kernel: transformer_forward.36
$region0: #{transformer_forward.36}
  #allocation0 [shape = 'u32[]', space=smem, size = 0x4, offset = 0x4, fixed_abs, tag = 'smem constant byte address 0x4 - core index']
  #allocation1 [shape = 'u32[72,128]{1,0:T(1,128)}', space=vmem, size = 0x9000, scoped, tag = 'internal scratch']
  #allocation2 [shape = 'f32[8,1]{1,0:T(8,128)}', space=vmem, size = 0x1000, scoped, tag = 'scratch operand']
  #allocation3 [shape = 'f32[8,1]{1,0:T(8,128)}', space=vmem, size = 0x1000, scoped, tag = 'scratch operand']
  #allocation4 [shape = 'f32[8,4]{1,0:T(8,128)}', space=vmem, size = 0x1000, scoped, tag = 'scratch operand']
  %s0 = inlined_call_operand.vmem [shape: bf16[2,8,8,4], index: 0, kind: input, shape index: {}]
  %s1 = inlined_call_operand.vmem [shape: bf16[2,8,8,4], index: 1, kind: input, shape index: {}]
  %s2 = inlined_call_operand.vmem [shape: bf16[2,8,8,4], index: 2, kind: input, shape index: {}]
  %s3 = inlined_call_operand.vmem [shape: f32[2,1,8], index: 3, kind: input, shape index: {}]
  %s4 = inlined_call_operand.vmem [shape: bf16[2,8,8,4], index: 4, kind: output, shape index: {}]
  %s5 = sld [smem:[#allocation0]]
  $region57: #{transformer_forward.36} parent=0
    _
  %s7 = ssub.s32 1, %s5
  %s8 = scalar_select 0, %s7, %s5
  loop: start=0, step=1, limit=18
  $region2: #{transformer_forward.36} parent=0 // loop_pre_header
    _
  $region3: #{transformer_forward.36} parent=0 // loop_header
    %s10 = sphi 0, %s14
    %p11 = scmp.ge.s32.totalorder %s10, 18
    %s17 = sphi 0, %s43
    %s18 = sphi 0, %s39
    %s19 = sphi 0, %s35
    %s20 = sphi 0, %s31
    %s21 = sphi 0, %s17
    %s22 = sphi 0, %s18
    %s23 = sphi 0, %s19
    %s24 = sphi 0, %s20
    %s25 = sphi 0, %s21
    %s26 = sphi 0, %s22
    %s27 = sphi 0, %s23
    %s28 = sphi 0, %s24
    %s50 = sphi 0, %s52
    %s53 = sphi 0, %s50
    %s54 = sphi 0, %s53
    %s70 = sphi 0, %s54
    %s80 = sphi 0, %s82
    %s83 = sphi 0, %s80
    %s84 = sphi 0, %s83
    %s100 = sphi 0, %s84
    %s110 = sphi 0, %s112
    %s113 = sphi 0, %s110
    %s114 = sphi 0, %s113
    %s130 = sphi 0, %s114
    %s138 = sphi 0, %s140
    %s141 = sphi 0, %s138
    %s142 = sphi 0, %s141
    %s158 = sphi 0, %s142
    %s168 = sphi 0, %s170
    %s171 = sphi 0, %s168
    %s172 = sphi 0, %s171
    %s188 = sphi 0, %s172
  $region4: #{transformer_forward.36} parent=0 // loop_header_branch
    %13 = sbr.rel (%p11) target = $region8
  $region5: #{transformer_forward.36} parent=0 // loop_body
    %s15 = ssub.s32 %s10, 1
    %s16 = ssub.s32 %s10, 2
    %s29 = sadd.s32 1, %s20
    %p30 = scmp.ge.s32.totalorder %s29, 1
    %s31 = scalar_select %p30, 0, %s29
    %s32 = sadd.s32 1, %s19
    %s33 = scalar_select %p30, %s32, %s19
    %p34 = scmp.ge.s32.totalorder %s33, 1
    %s35 = scalar_select %p34, 0, %s33
    %s36 = sadd.s32 1, %s18
    %s37 = scalar_select %p34, %s36, %s18
    %p38 = scmp.ge.s32.totalorder %s37, 8
    %s39 = scalar_select %p38, 0, %s37
    %s40 = sadd.s32 1, %s17
    %s41 = scalar_select %p38, %s40, %s17
    %p42 = scmp.ge.s32.totalorder %s41, 2
    %s43 = scalar_select %p42, 0, %s41
    %s44 = ssub.s32 %s17, %s43
    %s45 = ssub.s32 %s18, %s39
    %s46 = sor.u32 %s44, %s45
    %s47 = ssub.s32 %s19, %s35
    %s48 = sor.u32 %s46, %s47
    %p49 = scmp.eq.s32.totalorder %s48, 0
    %s51 = sadd.s32 %s50, 1
    %s52 = scalar_select %p49, %s50, %s51
    %p55 = pneg %p49
    %p56 = scmp.eq.s32.totalorder %s10, 15
    %p57 = por %p55, %p56
    %p58 = scmp.ne.s32.totalorder %s50, %s53
    %p59 = scmp.eq.s32.totalorder %s10, 0
    %p60 = por %p58, %p59
    %p61 = scmp.ne.s32.totalorder %s50, %s53
    %p62 = scmp.eq.s32.totalorder %s15, 15
    %p63 = por %p61, %p62
    %p64 = scmp.ne.s32.totalorder %s53, %s54
    %p65 = scmp.eq.s32.totalorder %s15, 0
    %p66 = por %p64, %p65
    %p67 = scmp.ne.s32.totalorder %s53, %s54
    %p68 = scmp.eq.s32.totalorder %s16, 15
    %p69 = por %p67, %p68
    %p71 = scmp.ne.s32.totalorder %s54, %s70
    %p72 = scmp.eq.s32.totalorder %s16, 0
    %p73 = por %p71, %p72
    %s74 = ssub.s32 %s17, %s43
    %s75 = ssub.s32 %s18, %s39
    %s76 = sor.u32 %s74, %s75
    %s77 = ssub.s32 %s20, %s31
    %s78 = sor.u32 %s76, %s77
    %p79 = scmp.eq.s32.totalorder %s78, 0
    %s81 = sadd.s32 %s80, 1
    %s82 = scalar_select %p79, %s80, %s81
    %p85 = pneg %p79
    %p86 = scmp.eq.s32.totalorder %s10, 15
    %p87 = por %p85, %p86
    %p88 = scmp.ne.s32.totalorder %s80, %s83
    %p89 = scmp.eq.s32.totalorder %s10, 0
    %p90 = por %p88, %p89
    %p91 = scmp.ne.s32.totalorder %s80, %s83
    %p92 = scmp.eq.s32.totalorder %s15, 15
    %p93 = por %p91, %p92
    %p94 = scmp.ne.s32.totalorder %s83, %s84
    %p95 = scmp.eq.s32.totalorder %s15, 0
    %p96 = por %p94, %p95
    %p97 = scmp.ne.s32.totalorder %s83, %s84
    %p98 = scmp.eq.s32.totalorder %s16, 15
    %p99 = por %p97, %p98
    %p101 = scmp.ne.s32.totalorder %s84, %s100
    %p102 = scmp.eq.s32.totalorder %s16, 0
    %p103 = por %p101, %p102
    %s104 = ssub.s32 %s17, %s43
    %s105 = ssub.s32 %s18, %s39
    %s106 = sor.u32 %s104, %s105
    %s107 = ssub.s32 %s20, %s31
    %s108 = sor.u32 %s106, %s107
    %p109 = scmp.eq.s32.totalorder %s108, 0
    %s111 = sadd.s32 %s110, 1
    %s112 = scalar_select %p109, %s110, %s111
    %p115 = pneg %p109
    %p116 = scmp.eq.s32.totalorder %s10, 15
    %p117 = por %p115, %p116
    %p118 = scmp.ne.s32.totalorder %s110, %s113
    %p119 = scmp.eq.s32.totalorder %s10, 0
    %p120 = por %p118, %p119
    %p121 = scmp.ne.s32.totalorder %s110, %s113
    %p122 = scmp.eq.s32.totalorder %s15, 15
    %p123 = por %p121, %p122
    %p124 = scmp.ne.s32.totalorder %s113, %s114
    %p125 = scmp.eq.s32.totalorder %s15, 0
    %p126 = por %p124, %p125
    %p127 = scmp.ne.s32.totalorder %s113, %s114
    %p128 = scmp.eq.s32.totalorder %s16, 15
    %p129 = por %p127, %p128
    %p131 = scmp.ne.s32.totalorder %s114, %s130
    %p132 = scmp.eq.s32.totalorder %s16, 0
    %p133 = por %p131, %p132
    %s134 = ssub.s32 %s17, %s43
    %s135 = ssub.s32 %s20, %s31
    %s136 = sor.u32 %s134, %s135
    %p137 = scmp.eq.s32.totalorder %s136, 0
    %s139 = sadd.s32 %s138, 1
    %s140 = scalar_select %p137, %s138, %s139
    %p143 = pneg %p137
    %p144 = scmp.eq.s32.totalorder %s10, 15
    %p145 = por %p143, %p144
    %p146 = scmp.ne.s32.totalorder %s138, %s141
    %p147 = scmp.eq.s32.totalorder %s10, 0
    %p148 = por %p146, %p147
    %p149 = scmp.ne.s32.totalorder %s138, %s141
    %p150 = scmp.eq.s32.totalorder %s15, 15
    %p151 = por %p149, %p150
    %p152 = scmp.ne.s32.totalorder %s141, %s142
    %p153 = scmp.eq.s32.totalorder %s15, 0
    %p154 = por %p152, %p153
    %p155 = scmp.ne.s32.totalorder %s141, %s142
    %p156 = scmp.eq.s32.totalorder %s16, 15
    %p157 = por %p155, %p156
    %p159 = scmp.ne.s32.totalorder %s142, %s158
    %p160 = scmp.eq.s32.totalorder %s16, 0
    %p161 = por %p159, %p160
    %s162 = ssub.s32 %s17, %s43
    %s163 = ssub.s32 %s18, %s39
    %s164 = sor.u32 %s162, %s163
    %s165 = ssub.s32 %s19, %s35
    %s166 = sor.u32 %s164, %s165
    %p167 = scmp.eq.s32.totalorder %s166, 0
    %s169 = sadd.s32 %s168, 1
    %s170 = scalar_select %p167, %s168, %s169
    %p173 = pneg %p167
    %p174 = scmp.eq.s32.totalorder %s10, 15
    %p175 = por %p173, %p174
    %p176 = scmp.ne.s32.totalorder %s168, %s171
    %p177 = scmp.eq.s32.totalorder %s10, 0
    %p178 = por %p176, %p177
    %p179 = scmp.ne.s32.totalorder %s168, %s171
    %p180 = scmp.eq.s32.totalorder %s15, 15
    %p181 = por %p179, %p180
    %p182 = scmp.ne.s32.totalorder %s171, %s172
    %p183 = scmp.eq.s32.totalorder %s15, 0
    %p184 = por %p182, %p183
    %p185 = scmp.ne.s32.totalorder %s171, %s172
    %p186 = scmp.eq.s32.totalorder %s16, 15
    %p187 = por %p185, %p186
    %p189 = scmp.ne.s32.totalorder %s172, %s188
    %p190 = scmp.eq.s32.totalorder %s16, 0
    %p191 = por %p189, %p190
    %p192 = scmp.le.s32.totalorder 1, %s10
    %p193 = scmp.lt.s32.totalorder %s10, 17
    %p194 = pnand %p192, %p193
    %p195 = pneg %p194
    // Predicated region
    $region9: #{transformer_forward.36} parent=5 // pred_check
      _
    $region10: #{transformer_forward.36} parent=5 // pred_check_branch
      %197 = sbr.rel (%p194) target = $region12
    $region11: #{transformer_forward.36} parent=5 // pred_region
      %s198 = ssub.s32 %s10, 1
    $region12: #{transformer_forward.36} parent=5 // pred_fallthru
      _
    %p199 = scmp.lt.s32.totalorder %s10, 16
    // Predicated region
    $region13: #{transformer_forward.36} parent=5 // pred_check
      %p200 = pneg %p199
    $region14: #{transformer_forward.36} parent=5 // pred_check_branch
      %202 = sbr.rel (%p200) target = $region16
    $region15: #{transformer_forward.36} parent=5 // pred_region
      // Predicated region
      $region17: #{transformer_forward.36} parent=15 // pred_check
        %p203 = pneg %p60
      $region18: #{transformer_forward.36} parent=15 // pred_check_branch
        %205 = sbr.rel (%p203) target = $region20
      $region19: #{transformer_forward.36} parent=15 // pred_region
        %p206 = scmp.lt.s32.totalorder %s17, 1
        %s207 = scalar_select %p206, %s17, 1
        %p208 = scmp.lt.s32.totalorder %s18, 7
        %s209 = scalar_select %p208, %s18, 7
        %p210 = scmp.lt.s32.totalorder %s19, 0
        %s211 = scalar_select %p210, %s19, 0
        %s212 = sadd.s32 %s211, %s209
        %s213 = smul.addr %s207, 8
        %s214 = sadd.s32 %s212, %s213
        %s215 = smul.addr %s214, 4
        %s216 = scalar_lea.vmem %s0, %s215
      $region20: #{transformer_forward.36} parent=15 // pred_fallthru
        _
      // Predicated region
      $region21: #{transformer_forward.36} parent=15 // pred_check
        %p217 = pneg %p90
      $region22: #{transformer_forward.36} parent=15 // pred_check_branch
        %219 = sbr.rel (%p217) target = $region24
      $region23: #{transformer_forward.36} parent=15 // pred_region
        %p220 = scmp.lt.s32.totalorder %s17, 1
        %s221 = scalar_select %p220, %s17, 1
        %p222 = scmp.lt.s32.totalorder %s18, 7
        %s223 = scalar_select %p222, %s18, 7
        %p224 = scmp.lt.s32.totalorder %s20, 0
        %s225 = scalar_select %p224, %s20, 0
        %s226 = sadd.s32 %s225, %s223
        %s227 = smul.addr %s221, 8
        %s228 = sadd.s32 %s226, %s227
        %s229 = smul.addr %s228, 4
        %s230 = scalar_lea.vmem %s1, %s229
      $region24: #{transformer_forward.36} parent=15 // pred_fallthru
        _
      // Predicated region
      $region25: #{transformer_forward.36} parent=15 // pred_check
        %p231 = pneg %p120
      $region26: #{transformer_forward.36} parent=15 // pred_check_branch
        %233 = sbr.rel (%p231) target = $region28
      $region27: #{transformer_forward.36} parent=15 // pred_region
        %p234 = scmp.lt.s32.totalorder %s17, 1
        %s235 = scalar_select %p234, %s17, 1
        %p236 = scmp.lt.s32.totalorder %s18, 7
        %s237 = scalar_select %p236, %s18, 7
        %p238 = scmp.lt.s32.totalorder %s20, 0
        %s239 = scalar_select %p238, %s20, 0
        %s240 = sadd.s32 %s239, %s237
        %s241 = smul.addr %s235, 8
        %s242 = sadd.s32 %s240, %s241
        %s243 = smul.addr %s242, 4
        %s244 = scalar_lea.vmem %s2, %s243
      $region28: #{transformer_forward.36} parent=15 // pred_fallthru
        _
      // Predicated region
      $region29: #{transformer_forward.36} parent=15 // pred_check
        %p245 = pneg %p148
      $region30: #{transformer_forward.36} parent=15 // pred_check_branch
        %247 = sbr.rel (%p245) target = $region32
      $region31: #{transformer_forward.36} parent=15 // pred_region
        %p248 = scmp.lt.s32.totalorder %s17, 1
        %s249 = scalar_select %p248, %s17, 1
        %p250 = scmp.lt.s32.totalorder %s20, 0
        %s251 = scalar_select %p250, %s20, 0
        %s252 = sadd.s32 %s251, %s249
        %s253 = scalar_lea.vmem %s3, %s252
      $region32: #{transformer_forward.36} parent=15 // pred_fallthru
        _
    $region16: #{transformer_forward.36} parent=5 // pred_fallthru
      _
    %p254 = scmp.le.s32.totalorder 1, %s10
    %p255 = scmp.lt.s32.totalorder %s10, 17
    %p256 = pnand %p254, %p255
    %p257 = pneg %p256
    // Predicated region
    $region33: #{transformer_forward.36} parent=5 // pred_check
      _
    $region34: #{transformer_forward.36} parent=5 // pred_check_branch
      %259 = sbr.rel (%p256) target = $region36
    $region35: #{transformer_forward.36} parent=5 // pred_region
      %s260 = ssub.s32 %s10, 1
      %p261 = scmp.lt.s32.totalorder %s21, 1
      %s262 = scalar_select %p261, %s21, 1
      %p263 = scmp.lt.s32.totalorder %s22, 7
      %s264 = scalar_select %p263, %s22, 7
      %p265 = scmp.lt.s32.totalorder %s23, 0
      %s266 = scalar_select %p265, %s23, 0
      %s267 = sadd.s32 %s266, %s264
      %s268 = smul.addr %s262, 8
      %s269 = sadd.s32 %s267, %s268
      %s270 = smul.addr %s269, 4
      %s271 = scalar_lea.vmem %s0, %s270
      %p272 = pneg %p66
      %p273 = pneg %p63
      %p274 = scmp.lt.s32.totalorder %s21, 1
      %s275 = scalar_select %p274, %s21, 1
      %p276 = scmp.lt.s32.totalorder %s22, 7
      %s277 = scalar_select %p276, %s22, 7
      %p278 = scmp.lt.s32.totalorder %s24, 0
      %s279 = scalar_select %p278, %s24, 0
      %s280 = sadd.s32 %s279, %s277
      %s281 = smul.addr %s275, 8
      %s282 = sadd.s32 %s280, %s281
      %s283 = smul.addr %s282, 4
      %s284 = scalar_lea.vmem %s1, %s283
      %p285 = pneg %p96
      %p286 = pneg %p93
      %p287 = scmp.lt.s32.totalorder %s21, 1
      %s288 = scalar_select %p287, %s21, 1
      %p289 = scmp.lt.s32.totalorder %s22, 7
      %s290 = scalar_select %p289, %s22, 7
      %p291 = scmp.lt.s32.totalorder %s24, 0
      %s292 = scalar_select %p291, %s24, 0
      %s293 = sadd.s32 %s292, %s290
      %s294 = smul.addr %s288, 8
      %s295 = sadd.s32 %s293, %s294
      %s296 = smul.addr %s295, 4
      %s297 = scalar_lea.vmem %s2, %s296
      %p298 = pneg %p126
      %p299 = pneg %p123
      %p300 = scmp.lt.s32.totalorder %s21, 1
      %s301 = scalar_select %p300, %s21, 1
      %p302 = scmp.lt.s32.totalorder %s24, 0
      %s303 = scalar_select %p302, %s24, 0
      %s304 = sadd.s32 %s303, %s301
      %s305 = scalar_lea.vmem %s3, %s304
      %p306 = pneg %p154
      %p307 = pneg %p151
      %p308 = pneg %p184
      %p309 = pneg %p181
      %p310 = scmp.lt.s32.totalorder %s21, 1
      %s311 = scalar_select %p310, %s21, 1
      %p312 = scmp.lt.s32.totalorder %s22, 7
      %s313 = scalar_select %p312, %s22, 7
      %p314 = scmp.lt.s32.totalorder %s23, 0
      %s315 = scalar_select %p314, %s23, 0
      %s316 = sadd.s32 %s315, %s313
      %s317 = smul.addr %s311, 8
      %s318 = sadd.s32 %s316, %s317
      %s319 = smul.addr %s318, 4
      %s320 = scalar_lea.vmem %s4, %s319
      %p321 = scmp.lt.s32.totalorder %s21, 1
      %s322 = scalar_select %p321, %s21, 1
      %p323 = scmp.lt.s32.totalorder %s22, 7
      %s324 = scalar_select %p323, %s22, 7
      %p325 = scmp.lt.s32.totalorder %s23, 0
      %s326 = scalar_select %p325, %s23, 0
      %s327 = sadd.s32 %s326, %s324
      %s328 = smul.addr %s322, 8
      %s329 = sadd.s32 %s327, %s328
      %s330 = smul.addr %s329, 4
      %s331 = scalar_lea.vmem %s0, %s330
      %p332 = scmp.lt.s32.totalorder %s21, 1
      %s333 = scalar_select %p332, %s21, 1
      %p334 = scmp.lt.s32.totalorder %s22, 7
      %s335 = scalar_select %p334, %s22, 7
      %p336 = scmp.lt.s32.totalorder %s24, 0
      %s337 = scalar_select %p336, %s24, 0
      %s338 = sadd.s32 %s337, %s335
      %s339 = smul.addr %s333, 8
      %s340 = sadd.s32 %s338, %s339
      %s341 = smul.addr %s340, 4
      %s342 = scalar_lea.vmem %s1, %s341
      %p343 = scmp.lt.s32.totalorder %s21, 1
      %s344 = scalar_select %p343, %s21, 1
      %p345 = scmp.lt.s32.totalorder %s22, 7
      %s346 = scalar_select %p345, %s22, 7
      %p347 = scmp.lt.s32.totalorder %s24, 0
      %s348 = scalar_select %p347, %s24, 0
      %s349 = sadd.s32 %s348, %s346
      %s350 = smul.addr %s344, 8
      %s351 = sadd.s32 %s349, %s350
      %s352 = smul.addr %s351, 4
      %s353 = scalar_lea.vmem %s2, %s352
      %p354 = scmp.lt.s32.totalorder %s21, 1
      %s355 = scalar_select %p354, %s21, 1
      %p356 = scmp.lt.s32.totalorder %s24, 0
      %s357 = scalar_select %p356, %s24, 0
      %s358 = sadd.s32 %s357, %s355
      %s359 = scalar_lea.vmem %s3, %s358
      %p360 = scmp.lt.s32.totalorder %s21, 1
      %s361 = scalar_select %p360, %s21, 1
      %p362 = scmp.lt.s32.totalorder %s22, 7
      %s363 = scalar_select %p362, %s22, 7
      %p364 = scmp.lt.s32.totalorder %s23, 0
      %s365 = scalar_select %p364, %s23, 0
      %s366 = sadd.s32 %s365, %s363
      %s367 = smul.addr %s361, 8
      %s368 = sadd.s32 %s366, %s367
      %s369 = smul.addr %s368, 4
      %s370 = scalar_lea.vmem %s4, %s369
      %p372 = scmp.eq.s32.totalorder %s24, 0
      // Predicated region
      $region37: #{transformer_forward.36} parent=35 // pred_check
        %p373 = pneg %p372
      $region38: #{transformer_forward.36} parent=35 // pred_check_branch
        %375 = sbr.rel (%p373) target = $region40
      $region39: #{transformer_forward.36} parent=35 // pred_region
        %vm376 = vcmask 7168
        %377 = vst.msk [vmem:[#allocation2] sm:$0xff] %vm376, -inf
        %378 = vst.msk [vmem:[#allocation3] sm:$0xff] %vm376, 0.0
        %vm379 = vcmask 31744
        %380 = vst.msk [vmem:[#allocation4] sm:$0xff] %vm379, 0.0
      $region40: #{transformer_forward.36} parent=35 // pred_fallthru
        _
      %v381 = vld [vmem:[%s331] sm:$0xf]
      %v382 = vld [vmem:[%s342] sm:$0xf]
      %v383 = vld [vmem:[%s353] sm:$0xf]
      %vm384 = vcmask 31744
      %v386 = vsel %vm384, %v381, 0
      %v389 = vsel %vm384, %v382, 0
      %391 = vmatpush.bf16.xpose.msra.mxu0 0
      %392 = vmatpush.bf16.xpose.msra.mxu0 0
      %393 = vmatpush.bf16.xpose.msra.mxu0 0
      %394 = vmatpush.bf16.xpose.msra.mxu0 0
      %395 = vmatpush.bf16.xpose.msra.mxu0 0
      %396 = vmatpush.bf16.xpose.msra.mxu0 0
      %397 = vmatpush.bf16.xpose.msra.mxu0 0
      %398 = vmatpush.bf16.xpose.msra.mxu0 %v389
      %399 = vmatmul.bf16.gmra.mxu0 %v386
      %v400 = vpop.f32.mrf.mxu0
      %v401 = vadd.f32 0.0, %v400
      %v402 = vpop.f32.mrf.mxu0
      %403 = vdwg.mxu0
      %v404 = vmul.f32 %v401, 0.5
      %v405 = vld [vmem:[%s359] sm:$0x1]
      %v407 = vperm.slane %v405, 0
      %v409 = vadd.f32 %v404, %v407
      %v410 = vld [vmem:[#allocation2] sm:$0xff]
      %vm411 = vcmask 64512
      %v412 = vsel %vm411, %v409, -inf
      %413 = vmax.xlane.f32.xlu0 %v412
      %v414 = vpop.xlane.xlu0 %413
      %v415 = vmax.f32 %v410, %v414
      %v416 = vsub.f32 %v410, %v415
      %v417 = vmul.f32 %v416, 1.442695
      %v418 = vpow.pop %v417
      %420 = vset.pattern.permute.xlu0 0
      %421 = vperm.xlu0 %420, %v415
      %v422 = vpop.permute.xlu0 %421
      %v424 = vsub.f32 %v409, %v422
      %v425 = vmul.f32 %v424, 1.442695
      %v426 = vpow.pop %v425
      %v427 = vld [vmem:[#allocation3] sm:$0xff]
      %v428 = vmul.f32 %v418, %v427
      %v429 = vsel %vm411, %v426, 0.0
      %430 = vadd.xlane.f32.xlu0 %v429
      %v431 = vpop.xlane.xlu0 %430
      %v432 = vadd.f32 %v428, %v431
      %vm433 = vcmask 7168
      %434 = vst.msk [vmem:[#allocation3] sm:$0xff] %vm433, %v432
      %v435 = vld [vmem:[#allocation4] sm:$0xff]
      %437 = vset.pattern.permute.xlu0 0
      %438 = vperm.xlu0 %437, %v418
      %v439 = vpop.permute.xlu0 %438
      %v441 = vmul.f32 %v439, %v435
      %v442 = vpack.c.bf16 %v426, %v426
      %v444 = vsel %vm411, %v442, 0
      %vm446 = vcmask 1043456
      %v448 = vsel %vm446, %v383, 0
      %450 = vmatpush.bf16.msra.mxu0 0
      %451 = vmatpush.bf16.msra.mxu0 0
      %452 = vmatpush.bf16.msra.mxu0 0
      %453 = vmatpush.bf16.msra.mxu0 0
      %454 = vmatpush.bf16.msra.mxu0 0
      %455 = vmatpush.bf16.msra.mxu0 0
      %456 = vmatpush.bf16.msra.mxu0 0
      %457 = vmatpush.bf16.msra.mxu0 %v448
      %458 = vmatmul.bf16.gmra.mxu0 %v444
      %v459 = vpop.f32.mrf.mxu0
      %v460 = vadd.f32 0.0, %v459
      %v461 = vpop.f32.mrf.mxu0
      %462 = vdwg.mxu0
      %v463 = vadd.f32 %v441, %v460
      %464 = vst.msk [vmem:[#allocation4] sm:$0xff] %vm384, %v463
      %465 = vst.msk [vmem:[#allocation2] sm:$0xff] %vm433, %v415
      // Predicated region
      $region41: #{transformer_forward.36} parent=35 // pred_check
        %p466 = pneg %p372
      $region42: #{transformer_forward.36} parent=35 // pred_check_branch
        %468 = sbr.rel (%p466) target = $region44
      $region43: #{transformer_forward.36} parent=35 // pred_region
        %v469 = vld [vmem:[#allocation4] sm:$0xff]
        %v470 = vld [vmem:[#allocation3] sm:$0xff]
        %v471 = vrcp.pop %v470
        %473 = vset.pattern.permute.xlu0 0
        %474 = vperm.xlu0 %473, %v471
        %v475 = vpop.permute.xlu0 %474
        %v477 = vmul.f32 %v469, %v475
        %v478 = vpack.c.bf16 %v477, %v477
        %vm479 = vcmask 27648
        %480 = vst.msk [vmem:[%s370] sm:$0xf] %vm479, %v478
      $region44: #{transformer_forward.36} parent=35 // pred_fallthru
        _
      %p481 = scmp.lt.s32.totalorder %s21, 1
      %s482 = scalar_select %p481, %s21, 1
      %p483 = scmp.lt.s32.totalorder %s22, 7
      %s484 = scalar_select %p483, %s22, 7
      %p485 = scmp.lt.s32.totalorder %s23, 0
      %s486 = scalar_select %p485, %s23, 0
      %s487 = sadd.s32 %s486, %s484
      %s488 = smul.addr %s482, 8
      %s489 = sadd.s32 %s487, %s488
      %s490 = smul.addr %s489, 4
      %s491 = scalar_lea.vmem %s4, %s490
      // Predicated region
      $region45: #{transformer_forward.36} parent=35 // pred_check
        %p492 = pneg %p181
      $region46: #{transformer_forward.36} parent=35 // pred_check_branch
        %494 = sbr.rel (%p492) target = $region48
      $region47: #{transformer_forward.36} parent=35 // pred_region
        _
      $region48: #{transformer_forward.36} parent=35 // pred_fallthru
        _
    $region36: #{transformer_forward.36} parent=5 // pred_fallthru
      _
    %p495 = scmp.le.s32.totalorder 2, %s10
    // Predicated region
    $region49: #{transformer_forward.36} parent=5 // pred_check
      %p496 = pneg %p495
    $region50: #{transformer_forward.36} parent=5 // pred_check_branch
      %498 = sbr.rel (%p496) target = $region52
    $region51: #{transformer_forward.36} parent=5 // pred_region
      %s499 = ssub.s32 %s10, 2
      // Predicated region
      $region53: #{transformer_forward.36} parent=51 // pred_check
        %p500 = pneg %p187
      $region54: #{transformer_forward.36} parent=51 // pred_check_branch
        %502 = sbr.rel (%p500) target = $region56
      $region55: #{transformer_forward.36} parent=51 // pred_region
        %p503 = scmp.lt.s32.totalorder %s25, 1
        %s504 = scalar_select %p503, %s25, 1
        %p505 = scmp.lt.s32.totalorder %s26, 7
        %s506 = scalar_select %p505, %s26, 7
        %p507 = scmp.lt.s32.totalorder %s27, 0
        %s508 = scalar_select %p507, %s27, 0
        %s509 = sadd.s32 %s508, %s506
        %s510 = smul.addr %s504, 8
        %s511 = sadd.s32 %s509, %s510
        %s512 = smul.addr %s511, 4
        %s513 = scalar_lea.vmem %s4, %s512
      $region56: #{transformer_forward.36} parent=51 // pred_fallthru
        _
    $region52: #{transformer_forward.36} parent=5 // pred_fallthru
      _
  $region6: #{transformer_forward.36} parent=0 // loop_footer
    %s14 = sadd.s32 1, %s10
  $region7: #{transformer_forward.36} parent=0 // loop_footer_branch
    %9 = sbr.rel target = $region3
  $region8: #{transformer_forward.36} parent=0 // loop_exit
    _

// kernel: transformer_forward.39
$region0: #{transformer_forward.39}
  #allocation0 [shape = 'u32[]', space=smem, size = 0x4, offset = 0x4, fixed_abs, tag = 'smem constant byte address 0x4 - core index']
  #allocation1 [shape = 'u32[72,128]{1,0:T(1,128)}', space=vmem, size = 0x9000, scoped, tag = 'internal scratch']
  #allocation2 [shape = 'f32[16,32]{1,0:T(8,128)}', space=vmem, size = 0x2000, scoped, tag = 'scratch operand']
  %s0 = inlined_call_operand.vmem [shape: bf16[16,32], index: 0, kind: input, shape index: {}]
  %s1 = inlined_call_operand.vmem [shape: bf16[32,128], index: 1, kind: input, shape index: {}]
  %s2 = inlined_call_operand.vmem [shape: f32[1,128], index: 2, kind: input, shape index: {}]
  %s3 = inlined_call_operand.vmem [shape: bf16[128,32], index: 3, kind: input, shape index: {}]
  %s4 = inlined_call_operand.vmem [shape: f32[1,32], index: 4, kind: input, shape index: {}]
  %s5 = inlined_call_operand.vmem [shape: bf16[16,32], index: 5, kind: output, shape index: {}]
  %s6 = sld [smem:[#allocation0]]
  $region38: #{transformer_forward.39} parent=0
    _
  %s8 = ssub.s32 1, %s6
  %s9 = scalar_select 0, %s8, %s6
  // Predicated region
  $region2: #{transformer_forward.39} parent=0 // pred_check
    _
  $region3: #{transformer_forward.39} parent=0 // pred_check_branch
    %11 = sbr.rel (0) target = $region5
  $region4: #{transformer_forward.39} parent=0 // pred_region
    _
  $region5: #{transformer_forward.39} parent=0 // pred_fallthru
    _
  // Predicated region
  $region6: #{transformer_forward.39} parent=0 // pred_check
    _
  $region7: #{transformer_forward.39} parent=0 // pred_check_branch
    %13 = sbr.rel (0) target = $region9
  $region8: #{transformer_forward.39} parent=0 // pred_region
    _
  $region9: #{transformer_forward.39} parent=0 // pred_fallthru
    _
  // Predicated region
  $region10: #{transformer_forward.39} parent=0 // pred_check
    _
  $region11: #{transformer_forward.39} parent=0 // pred_check_branch
    %15 = sbr.rel (0) target = $region13
  $region12: #{transformer_forward.39} parent=0 // pred_region
    _
  $region13: #{transformer_forward.39} parent=0 // pred_fallthru
    _
  // Predicated region
  $region14: #{transformer_forward.39} parent=0 // pred_check
    _
  $region15: #{transformer_forward.39} parent=0 // pred_check_branch
    %17 = sbr.rel (0) target = $region17
  $region16: #{transformer_forward.39} parent=0 // pred_region
    _
  $region17: #{transformer_forward.39} parent=0 // pred_fallthru
    _
  // Predicated region
  $region18: #{transformer_forward.39} parent=0 // pred_check
    _
  $region19: #{transformer_forward.39} parent=0 // pred_check_branch
    %19 = sbr.rel (0) target = $region21
  $region20: #{transformer_forward.39} parent=0 // pred_region
    _
  $region21: #{transformer_forward.39} parent=0 // pred_fallthru
    _
  %p21 = scmp.eq.s32.totalorder 0, 0
  // Predicated region
  $region22: #{transformer_forward.39} parent=0 // pred_check
    %p22 = pneg %p21
  $region23: #{transformer_forward.39} parent=0 // pred_check_branch
    %24 = sbr.rel (%p22) target = $region25
  $region24: #{transformer_forward.39} parent=0 // pred_region
    %vm25 = vcmask 261120
    %26 = vst.msk [vmem:[#allocation2] sm:$0xff] %vm25, 0.0
    %27 = vst.msk [vmem:[#allocation2 + $0x8] sm:$0xff] %vm25, 0.0
  $region25: #{transformer_forward.39} parent=0 // pred_fallthru
    _
  %v28 = vld [vmem:[%s0] sm:$0xf]
  %v29 = vld [vmem:[%s0 + $0x4] sm:$0xf]
  %v30 = vld [vmem:[%s1] sm:$0xf]
  %v31 = vld [vmem:[%s1 + $0x4] sm:$0xf]
  %v32 = vld [vmem:[%s1 + $0x8] sm:$0xf]
  %v33 = vld [vmem:[%s1 + $0xc] sm:$0xf]
  %v34 = vld [vmem:[%s2] sm:$0x1]
  %v36 = vperm.slane %v34, 0
  %v40 = vunpack.c.l.b16 %v28
  %v41 = vunpack.c.l.b16 %v29
  %v42 = vpack.c.b16 %v41, %v40
  %v47 = vunpack.c.l.b16 %v30
  %v48 = vunpack.c.l.b16 %v31
  %v49 = vunpack.c.l.b16 %v32
  %v50 = vunpack.c.l.b16 %v33
  %v51 = vpack.c.b16 %v48, %v47
  %v52 = vpack.c.b16 %v50, %v49
  %vm55 = vcmask 261120
  %v57 = vsel %vm55, %v42, 0
  %59 = vmatpush.bf16.msra.mxu0 0
  %60 = vmatpush.bf16.msra.mxu0 0
  %61 = vmatpush.bf16.msra.mxu0 0
  %62 = vmatpush.bf16.msra.mxu0 0
  %63 = vmatpush.bf16.msra.mxu0 0
  %64 = vmatpush.bf16.msra.mxu0 0
  %65 = vmatpush.bf16.msra.mxu0 %v52
  %66 = vmatpush.bf16.msra.mxu0 %v51
  %67 = vmatmul.bf16.gmra.mxu0 %v57
  %v68 = vpop.f32.mrf.mxu0
  %v69 = vadd.f32 %v36, %v68
  %v70 = vpop.f32.mrf.mxu0
  %v71 = vadd.f32 %v36, %v70
  %72 = vdwg.mxu0
  %v73 = vmax.f32 %v69, 0.0
  %v74 = vmax.f32 %v71, 0.0
  %v75 = vld [vmem:[#allocation2] sm:$0xff]
  %v76 = vld [vmem:[#allocation2 + $0x8] sm:$0xff]
  %v77 = vpack.c.bf16 %v74, %v73
  %v78 = vld [vmem:[%s3] sm:$0xf]
  %v79 = vld [vmem:[%s3 + $0x4] sm:$0xf]
  %v80 = vld [vmem:[%s3 + $0x8] sm:$0xf]
  %v81 = vld [vmem:[%s3 + $0xc] sm:$0xf]
  %v82 = vld [vmem:[%s3 + $0x10] sm:$0xf]
  %v83 = vld [vmem:[%s3 + $0x14] sm:$0xf]
  %v84 = vld [vmem:[%s3 + $0x18] sm:$0xf]
  %v85 = vld [vmem:[%s3 + $0x1c] sm:$0xf]
  %v86 = vld [vmem:[%s3 + $0x20] sm:$0xf]
  %v87 = vld [vmem:[%s3 + $0x24] sm:$0xf]
  %v88 = vld [vmem:[%s3 + $0x28] sm:$0xf]
  %v89 = vld [vmem:[%s3 + $0x2c] sm:$0xf]
  %v90 = vld [vmem:[%s3 + $0x30] sm:$0xf]
  %v91 = vld [vmem:[%s3 + $0x34] sm:$0xf]
  %v92 = vld [vmem:[%s3 + $0x38] sm:$0xf]
  %v93 = vld [vmem:[%s3 + $0x3c] sm:$0xf]
  %v110 = vunpack.c.l.b16 %v78
  %v111 = vunpack.c.l.b16 %v79
  %v112 = vunpack.c.l.b16 %v80
  %v113 = vunpack.c.l.b16 %v81
  %v114 = vunpack.c.l.b16 %v82
  %v115 = vunpack.c.l.b16 %v83
  %v116 = vunpack.c.l.b16 %v84
  %v117 = vunpack.c.l.b16 %v85
  %v118 = vunpack.c.l.b16 %v86
  %v119 = vunpack.c.l.b16 %v87
  %v120 = vunpack.c.l.b16 %v88
  %v121 = vunpack.c.l.b16 %v89
  %v122 = vunpack.c.l.b16 %v90
  %v123 = vunpack.c.l.b16 %v91
  %v124 = vunpack.c.l.b16 %v92
  %v125 = vunpack.c.l.b16 %v93
  %v126 = vpack.c.b16 %v111, %v110
  %v127 = vpack.c.b16 %v113, %v112
  %v128 = vpack.c.b16 %v115, %v114
  %v129 = vpack.c.b16 %v117, %v116
  %v130 = vpack.c.b16 %v119, %v118
  %v131 = vpack.c.b16 %v121, %v120
  %v132 = vpack.c.b16 %v123, %v122
  %v133 = vpack.c.b16 %v125, %v124
  %142 = vmatpush.bf16.msra.mxu0 %v133
  %143 = vmatpush.bf16.msra.mxu0 %v132
  %144 = vmatpush.bf16.msra.mxu0 %v131
  %145 = vmatpush.bf16.msra.mxu0 %v130
  %146 = vmatpush.bf16.msra.mxu0 %v129
  %147 = vmatpush.bf16.msra.mxu0 %v128
  %148 = vmatpush.bf16.msra.mxu0 %v127
  %149 = vmatpush.bf16.msra.mxu0 %v126
  %150 = vmatmul.bf16.gmra.mxu0 %v77
  %v151 = vpop.f32.mrf.mxu0
  %v152 = vadd.f32 0.0, %v151
  %v153 = vpop.f32.mrf.mxu0
  %v154 = vadd.f32 0.0, %v153
  %155 = vdwg.mxu0
  %v156 = vadd.f32 %v75, %v152
  %v157 = vadd.f32 %v76, %v154
  %158 = vst.msk [vmem:[#allocation2] sm:$0xff] %vm55, %v156
  %159 = vst.msk [vmem:[#allocation2 + $0x8] sm:$0xff] %vm55, %v157
  // Predicated region
  $region26: #{transformer_forward.39} parent=0 // pred_check
    %p160 = pneg %p21
  $region27: #{transformer_forward.39} parent=0 // pred_check_branch
    %162 = sbr.rel (%p160) target = $region29
  $region28: #{transformer_forward.39} parent=0 // pred_region
    %v163 = vld [vmem:[#allocation2] sm:$0xff]
    %v164 = vld [vmem:[#allocation2 + $0x8] sm:$0xff]
    %v165 = vld [vmem:[%s4] sm:$0x1]
    %v167 = vperm.slane %v165, 0
    %v169 = vadd.f32 %v163, %v167
    %v170 = vadd.f32 %v164, %v167
    %v171 = vpack.c.bf16 %v169, %v169
    %v172 = vpack.c.bf16 %v170, %v170
    %vm173 = vcmask 257024
    %174 = vst.msk [vmem:[%s5] sm:$0xf] %vm173, %v171
    %175 = vst.msk [vmem:[%s5 + $0x4] sm:$0xf] %vm173, %v172
  $region29: #{transformer_forward.39} parent=0 // pred_fallthru
    _
  // Predicated region
  $region30: #{transformer_forward.39} parent=0 // pred_check
    _
  $region31: #{transformer_forward.39} parent=0 // pred_check_branch
    %177 = sbr.rel (0) target = $region33
  $region32: #{transformer_forward.39} parent=0 // pred_region
    _
  $region33: #{transformer_forward.39} parent=0 // pred_fallthru
    _
  // Predicated region
  $region34: #{transformer_forward.39} parent=0 // pred_check
    _
  $region35: #{transformer_forward.39} parent=0 // pred_check_branch
    %179 = sbr.rel (0) target = $region37
  $region36: #{transformer_forward.39} parent=0 // pred_region
    _
  $region37: #{transformer_forward.39} parent=0 // pred_fallthru
    _

// kernel: transformer_forward.69
$region0: #{transformer_forward.69}
  #allocation0 [shape = 'u32[]', space=smem, size = 0x4, offset = 0x4, fixed_abs, tag = 'smem constant byte address 0x4 - core index']
  #allocation1 [shape = 'u32[72,128]{1,0:T(1,128)}', space=vmem, size = 0x9000, scoped, tag = 'internal scratch']
  #allocation2 [shape = 'f32[16,19]{1,0:T(8,128)}', space=vmem, size = 0x2000, scoped, tag = 'scratch operand']
  %s0 = inlined_call_operand.vmem [shape: bf16[16,32], index: 0, kind: input, shape index: {}]
  %s1 = inlined_call_operand.vmem [shape: bf16[32,19], index: 1, kind: input, shape index: {}]
  %s2 = inlined_call_operand.vmem [shape: f32[1,19], index: 2, kind: input, shape index: {}]
  %s3 = inlined_call_operand.hbm [shape: f32[16,19], index: 3, kind: output, shape index: {}]
  %s4 = sld [smem:[#allocation0]]
  $region30: #{transformer_forward.69} parent=0
    _
  %s6 = ssub.s32 1, %s4
  %s7 = scalar_select 0, %s6, %s4
  $region1: #{transformer_forward.69} parent=0
    #allocation3 [shape = 'u8[8192]{0}', space=vmem, size = 0x2000, scoped, tag = 'output window, operand 0, single buffered']
    #allocation4 [shape = 's32[1]{0}', space=sflag, size = 0x4, scoped, tag = 'scoped memory for transformer_forward.69']
    %8 = vsyncpa [#allocation4], 0
    // Predicated region
    $region2: #{transformer_forward.69} parent=1 // pred_check
      _
    $region3: #{transformer_forward.69} parent=1 // pred_check_branch
      %10 = sbr.rel (0) target = $region5
    $region4: #{transformer_forward.69} parent=1 // pred_region
      _
    $region5: #{transformer_forward.69} parent=1 // pred_fallthru
      _
    // Predicated region
    $region6: #{transformer_forward.69} parent=1 // pred_check
      _
    $region7: #{transformer_forward.69} parent=1 // pred_check_branch
      %12 = sbr.rel (0) target = $region9
    $region8: #{transformer_forward.69} parent=1 // pred_region
      _
    $region9: #{transformer_forward.69} parent=1 // pred_fallthru
      _
    // Predicated region
    $region10: #{transformer_forward.69} parent=1 // pred_check
      _
    $region11: #{transformer_forward.69} parent=1 // pred_check_branch
      %14 = sbr.rel (0) target = $region13
    $region12: #{transformer_forward.69} parent=1 // pred_region
      _
    $region13: #{transformer_forward.69} parent=1 // pred_fallthru
      _
    %p16 = scmp.eq.s32.totalorder 0, 0
    // Predicated region
    $region14: #{transformer_forward.69} parent=1 // pred_check
      %p17 = pneg %p16
    $region15: #{transformer_forward.69} parent=1 // pred_check_branch
      %19 = sbr.rel (%p17) target = $region17
    $region16: #{transformer_forward.69} parent=1 // pred_region
      %vm20 = vcmask 154624
      %21 = vst.msk [vmem:[#allocation2] sm:$0xff] %vm20, 0.0
      %22 = vst.msk [vmem:[#allocation2 + $0x8] sm:$0xff] %vm20, 0.0
    $region17: #{transformer_forward.69} parent=1 // pred_fallthru
      _
    %v23 = vld [vmem:[#allocation2] sm:$0xff]
    %v24 = vld [vmem:[#allocation2 + $0x8] sm:$0xff]
    %v25 = vld [vmem:[%s0] sm:$0xf]
    %v26 = vld [vmem:[%s0 + $0x4] sm:$0xf]
    %v27 = vld [vmem:[%s1] sm:$0xf]
    %v28 = vld [vmem:[%s1 + $0x4] sm:$0xf]
    %v29 = vld [vmem:[%s1 + $0x8] sm:$0xf]
    %v30 = vld [vmem:[%s1 + $0xc] sm:$0xf]
    %v33 = vunpack.c.l.b16 %v25
    %v34 = vunpack.c.l.b16 %v26
    %v35 = vpack.c.b16 %v34, %v33
    %v40 = vunpack.c.l.b16 %v27
    %v41 = vunpack.c.l.b16 %v28
    %v42 = vunpack.c.l.b16 %v29
    %v43 = vunpack.c.l.b16 %v30
    %v44 = vpack.c.b16 %v41, %v40
    %v45 = vpack.c.b16 %v43, %v42
    %vm48 = vcmask 261120
    %v50 = vsel %vm48, %v35, 0
    %52 = vmatpush.bf16.msra.mxu0 0
    %53 = vmatpush.bf16.msra.mxu0 0
    %54 = vmatpush.bf16.msra.mxu0 0
    %55 = vmatpush.bf16.msra.mxu0 0
    %56 = vmatpush.bf16.msra.mxu0 0
    %57 = vmatpush.bf16.msra.mxu0 0
    %58 = vmatpush.bf16.msra.mxu0 %v45
    %59 = vmatpush.bf16.msra.mxu0 %v44
    %60 = vmatmul.bf16.gmra.mxu0 %v50
    %v61 = vpop.f32.mrf.mxu0
    %v62 = vadd.f32 0.0, %v61
    %v63 = vpop.f32.mrf.mxu0
    %v64 = vadd.f32 0.0, %v63
    %65 = vdwg.mxu0
    %v66 = vadd.f32 %v23, %v62
    %v67 = vadd.f32 %v24, %v64
    %vm68 = vcmask 154624
    %69 = vst.msk [vmem:[#allocation2] sm:$0xff] %vm68, %v66
    %70 = vst.msk [vmem:[#allocation2 + $0x8] sm:$0xff] %vm68, %v67
    // Predicated region
    $region18: #{transformer_forward.69} parent=1 // pred_check
      %p71 = pneg %p16
    $region19: #{transformer_forward.69} parent=1 // pred_check_branch
      %73 = sbr.rel (%p71) target = $region21
    $region20: #{transformer_forward.69} parent=1 // pred_region
      %v74 = vld [vmem:[#allocation2] sm:$0xff]
      %v75 = vld [vmem:[#allocation2 + $0x8] sm:$0xff]
      %v76 = vld [vmem:[%s2] sm:$0x1]
      %v78 = vperm.slane %v76, 0
      %v80 = vadd.f32 %v74, %v78
      %v81 = vadd.f32 %v75, %v78
      %82 = vst.msk [vmem:[#allocation3] sm:$0xff] %vm68, %v80
      %83 = vst.msk [vmem:[#allocation3 + $0x8] sm:$0xff] %vm68, %v81
    $region21: #{transformer_forward.69} parent=1 // pred_fallthru
      _
    // Predicated region
    $region22: #{transformer_forward.69} parent=1 // pred_check
      _
    $region23: #{transformer_forward.69} parent=1 // pred_check_branch
      %85 = sbr.rel (0) target = $region25
    $region24: #{transformer_forward.69} parent=1 // pred_region
      %87 = vsyncadd [#allocation4], 0
      %s88 = sshll.u32 [#allocation3], 4
      %s89 = int_to_ptr.vmem [resolvable:$true] %s88
      %s90 = sshll.u32 %s3, 4
      %s91 = int_to_ptr.hbm [resolvable:$true] %s90
      %96 = dma.vmem_to_hbm [thread:$0]  %s89, 256, %s91, [#allocation4], 128, 128, 8
    $region25: #{transformer_forward.69} parent=1 // pred_fallthru
      _
    // Predicated region
    $region26: #{transformer_forward.69} parent=1 // pred_check
      _
    $region27: #{transformer_forward.69} parent=1 // pred_check_branch
      %98 = sbr.rel (0) target = $region29
    $region28: #{transformer_forward.69} parent=1 // pred_region
      %100 = dma.done [#allocation4], 256
    $region29: #{transformer_forward.69} parent=1 // pred_fallthru
      _
    %101 = vsyncpa [#allocation4], 1

// kernel: transformer_forward.52
$region0: #{transformer_forward.52}
  #allocation0 [shape = 'u32[]', space=smem, size = 0x4, offset = 0x4, fixed_abs, tag = 'smem constant byte address 0x4 - core index']
  #allocation1 [shape = 'u32[72,128]{1,0:T(1,128)}', space=vmem, size = 0x9000, scoped, tag = 'internal scratch']
  #allocation2 [shape = 'f32[16,64]{1,0:T(8,128)}', space=vmem, size = 0x2000, scoped, tag = 'scratch operand']
  %s0 = inlined_call_operand.vmem [shape: bf16[16,32], index: 0, kind: input, shape index: {}]
  %s1 = inlined_call_operand.vmem [shape: bf16[32,64], index: 1, kind: input, shape index: {}]
  %s2 = inlined_call_operand.vmem [shape: f32[1,64], index: 2, kind: input, shape index: {}]
  %s3 = inlined_call_operand.vmem [shape: bf16[16,64], index: 3, kind: output, shape index: {}]
  %s4 = sld [smem:[#allocation0]]
  $region30: #{transformer_forward.52} parent=0
    _
  %s6 = ssub.s32 1, %s4
  %s7 = scalar_select 0, %s6, %s4
  // Predicated region
  $region2: #{transformer_forward.52} parent=0 // pred_check
    _
  $region3: #{transformer_forward.52} parent=0 // pred_check_branch
    %9 = sbr.rel (0) target = $region5
  $region4: #{transformer_forward.52} parent=0 // pred_region
    _
  $region5: #{transformer_forward.52} parent=0 // pred_fallthru
    _
  // Predicated region
  $region6: #{transformer_forward.52} parent=0 // pred_check
    _
  $region7: #{transformer_forward.52} parent=0 // pred_check_branch
    %11 = sbr.rel (0) target = $region9
  $region8: #{transformer_forward.52} parent=0 // pred_region
    _
  $region9: #{transformer_forward.52} parent=0 // pred_fallthru
    _
  // Predicated region
  $region10: #{transformer_forward.52} parent=0 // pred_check
    _
  $region11: #{transformer_forward.52} parent=0 // pred_check_branch
    %13 = sbr.rel (0) target = $region13
  $region12: #{transformer_forward.52} parent=0 // pred_region
    _
  $region13: #{transformer_forward.52} parent=0 // pred_fallthru
    _
  %p15 = scmp.eq.s32.totalorder 0, 0
  // Predicated region
  $region14: #{transformer_forward.52} parent=0 // pred_check
    %p16 = pneg %p15
  $region15: #{transformer_forward.52} parent=0 // pred_check_branch
    %18 = sbr.rel (%p16) target = $region17
  $region16: #{transformer_forward.52} parent=0 // pred_region
    %vm19 = vcmask 523264
    %20 = vst.msk [vmem:[#allocation2] sm:$0xff] %vm19, 0.0
    %21 = vst.msk [vmem:[#allocation2 + $0x8] sm:$0xff] %vm19, 0.0
  $region17: #{transformer_forward.52} parent=0 // pred_fallthru
    _
  %v22 = vld [vmem:[#allocation2] sm:$0xff]
  %v23 = vld [vmem:[#allocation2 + $0x8] sm:$0xff]
  %v24 = vld [vmem:[%s0] sm:$0xf]
  %v25 = vld [vmem:[%s0 + $0x4] sm:$0xf]
  %v26 = vld [vmem:[%s1] sm:$0xf]
  %v27 = vld [vmem:[%s1 + $0x4] sm:$0xf]
  %v28 = vld [vmem:[%s1 + $0x8] sm:$0xf]
  %v29 = vld [vmem:[%s1 + $0xc] sm:$0xf]
  %v32 = vunpack.c.l.b16 %v24
  %v33 = vunpack.c.l.b16 %v25
  %v34 = vpack.c.b16 %v33, %v32
  %v39 = vunpack.c.l.b16 %v26
  %v40 = vunpack.c.l.b16 %v27
  %v41 = vunpack.c.l.b16 %v28
  %v42 = vunpack.c.l.b16 %v29
  %v43 = vpack.c.b16 %v40, %v39
  %v44 = vpack.c.b16 %v42, %v41
  %vm47 = vcmask 261120
  %v49 = vsel %vm47, %v34, 0
  %51 = vmatpush.bf16.msra.mxu0 0
  %52 = vmatpush.bf16.msra.mxu0 0
  %53 = vmatpush.bf16.msra.mxu0 0
  %54 = vmatpush.bf16.msra.mxu0 0
  %55 = vmatpush.bf16.msra.mxu0 0
  %56 = vmatpush.bf16.msra.mxu0 0
  %57 = vmatpush.bf16.msra.mxu0 %v44
  %58 = vmatpush.bf16.msra.mxu0 %v43
  %59 = vmatmul.bf16.gmra.mxu0 %v49
  %v60 = vpop.f32.mrf.mxu0
  %v61 = vadd.f32 0.0, %v60
  %v62 = vpop.f32.mrf.mxu0
  %v63 = vadd.f32 0.0, %v62
  %64 = vdwg.mxu0
  %v65 = vadd.f32 %v22, %v61
  %v66 = vadd.f32 %v23, %v63
  %vm67 = vcmask 523264
  %68 = vst.msk [vmem:[#allocation2] sm:$0xff] %vm67, %v65
  %69 = vst.msk [vmem:[#allocation2 + $0x8] sm:$0xff] %vm67, %v66
  // Predicated region
  $region18: #{transformer_forward.52} parent=0 // pred_check
    %p70 = pneg %p15
  $region19: #{transformer_forward.52} parent=0 // pred_check_branch
    %72 = sbr.rel (%p70) target = $region21
  $region20: #{transformer_forward.52} parent=0 // pred_region
    %v73 = vld [vmem:[#allocation2] sm:$0xff]
    %v74 = vld [vmem:[#allocation2 + $0x8] sm:$0xff]
    %v75 = vld [vmem:[%s2] sm:$0x1]
    %v77 = vperm.slane %v75, 0
    %v79 = vadd.f32 %v73, %v77
    %v80 = vadd.f32 %v74, %v77
    %v81 = vpack.c.bf16 %v79, %v79
    %v82 = vpack.c.bf16 %v80, %v80
    %vm83 = vcmask 519168
    %84 = vst.msk [vmem:[%s3] sm:$0xf] %vm83, %v81
    %85 = vst.msk [vmem:[%s3 + $0x4] sm:$0xf] %vm83, %v82
  $region21: #{transformer_forward.52} parent=0 // pred_fallthru
    _
  // Predicated region
  $region22: #{transformer_forward.52} parent=0 // pred_check
    _
  $region23: #{transformer_forward.52} parent=0 // pred_check_branch
    %87 = sbr.rel (0) target = $region25
  $region24: #{transformer_forward.52} parent=0 // pred_region
    _
  $region25: #{transformer_forward.52} parent=0 // pred_fallthru
    _
  // Predicated region
  $region26: #{transformer_forward.52} parent=0 // pred_check
    _
  $region27: #{transformer_forward.52} parent=0 // pred_check_branch
    %89 = sbr.rel (0) target = $region29
  $region28: #{transformer_forward.52} parent=0 // pred_region
    _
  $region29: #{transformer_forward.52} parent=0 // pred_fallthru
    _

</llo_original>
